<compile_context>
chip_gen: v7x
topology: tpu7x:2x2x1
jax: 0.10.0
libtpu: 0.0.40
codegen_flags: <defaults>
</compile_context>

<pallas_src>
import jax
import jax.numpy as jnp
from jax.experimental import pallas as pl
from jax.experimental.pallas import tpu as pltpu

# ---------------- synthetic BERT config ----------------
VOCAB = 64
MAX_POS = 32
TYPE_VOCAB = 2
HIDDEN = 32
NUM_HEADS = 4
HEAD_DIM = HIDDEN // NUM_HEADS
INTERMEDIATE = 4 * HIDDEN            # 128 -> exactly one lane tile
NUM_LAYERS = 2
LN_EPS = 1e-12
NEG_INF = -1e9

# Padded / packed layout constants (lane-tile aligned).
HP = 128                             # hidden padded to one full 128-lane tile
DP = 128                             # per-head Q/K/V tile (head_dim 8 padded to 128 lanes)
Q_OFF = 0
K_OFF = NUM_HEADS * DP               # 512
V_OFF = 2 * NUM_HEADS * DP           # 1024
QKV_W = 3 * NUM_HEADS * DP           # 1536


# ---------------- fused encoder kernel ----------------
def _gelu(x):
    # TODO(synk): HF BERT default is erf-based exact GELU; tanh approximation used here.
    c = jnp.asarray(0.7978845608028654, x.dtype)  # sqrt(2/pi)
    return 0.5 * x * (1.0 + jnp.tanh(c * (x + 0.044715 * x * x * x)))


def _layernorm(x, g, b, lane_mask):
    # LayerNorm over the real HIDDEN lanes only (lanes >= HIDDEN carry zero padding).
    mu = jnp.sum(x, axis=-1, keepdims=True) * (1.0 / HIDDEN)
    d = jnp.where(lane_mask, x - mu, 0.0)
    var = jnp.sum(d * d, axis=-1, keepdims=True) * (1.0 / HIDDEN)
    return d * jax.lax.rsqrt(var + LN_EPS) * g + b


def _encoder_kernel(
    mask_ref, emb_ref,
    emb_ln_g_ref, emb_ln_b_ref,
    qkv_w_ref, qkv_b_ref,
    ao_w_ref, ao_b_ref, attn_ln_g_ref, attn_ln_b_ref,
    inter_w_ref, inter_b_ref,
    out_w_ref, out_b_ref, out_ln_g_ref, out_ln_b_ref,
    o_ref,
):
    # One grid step == one full sequence (grid axis is batch, "parallel" for v7x megacore).
    lane_mask = jax.lax.broadcasted_iota(jnp.int32, (1, HP), 1) < HIDDEN

    # Embedding LayerNorm (no residual).
    x = _layernorm(emb_ref[0], emb_ln_g_ref[...], emb_ln_b_ref[...], lane_mask)   # (S, HP) f32

    # Additive attention-mask bias computed in-kernel from the raw (1, S) mask row.
    bias = (1.0 - mask_ref[0]) * NEG_INF                                           # (1, S)

    # NOTE: layer/head loops are short & static at this toy size; a real 12-layer
    # BERT should make the layer index a grid axis with streamed per-layer weights.
    for l in range(NUM_LAYERS):
        # ---- fused QKV projection, one MXU pass; each head lives in its own lane tile ----
        qkv = jnp.dot(x.astype(jnp.bfloat16), qkv_w_ref[l],
                      preferred_element_type=jnp.float32) + qkv_b_ref[l]           # (S, 1536) f32
        qkv16 = qkv.astype(jnp.bfloat16)

        # ---- self-attention: all slices below are full 128-lane-tile slices ----
        heads = []
        for h in range(NUM_HEADS):
            q_h = qkv16[:, Q_OFF + h * DP:Q_OFF + (h + 1) * DP]    # (S, 128), 1/sqrt(D) pre-folded
            k_h = qkv16[:, K_OFF + h * DP:K_OFF + (h + 1) * DP]
            v_h = qkv16[:, V_OFF + h * DP:V_OFF + (h + 1) * DP]
            s = jax.lax.dot_general(q_h, k_h, (((1,), (1,)), ((), ())),
                                    preferred_element_type=jnp.float32)            # (S, S)
            s = s + bias
            s = s - jnp.max(s, axis=-1, keepdims=True)
            p = jnp.exp(s)
            p = p * pl.reciprocal(jnp.sum(p, axis=-1, keepdims=True), approx=True)
            heads.append(jnp.dot(p.astype(jnp.bfloat16), v_h,
                                 preferred_element_type=jnp.float32))              # (S, 128)
        ctx = jnp.concatenate(heads, axis=-1)                                       # (S, 512), registers only

        # ---- attention output projection + residual LN ----
        attn = jnp.dot(ctx.astype(jnp.bfloat16), ao_w_ref[l],
                       preferred_element_type=jnp.float32) + ao_b_ref[l]
        x = _layernorm(x + attn, attn_ln_g_ref[l], attn_ln_b_ref[l], lane_mask)

        # ---- FFN + residual LN ----
        inter = jnp.dot(x.astype(jnp.bfloat16), inter_w_ref[l],
                        preferred_element_type=jnp.float32) + inter_b_ref[l]
        inter = _gelu(inter)
        ffn = jnp.dot(inter.astype(jnp.bfloat16), out_w_ref[l],
                      preferred_element_type=jnp.float32) + out_b_ref[l]
        x = _layernorm(x + ffn, out_ln_g_ref[l], out_ln_b_ref[l], lane_mask)

    # Emit only the CLS row of this sequence (lane-dense 128-wide store).
    o_ref[0] = x[0:1, :].astype(o_ref.dtype)


# ---------------- parameters: deterministic synthetic init, packed/padded on host ----------------
def init_params(key):
    def normal(k, shape):
        return jax.random.normal(k, shape, jnp.float32) * 0.02

    scale = 1.0 / (HEAD_DIM ** 0.5)
    keys = jax.random.split(key, 3 + NUM_LAYERS)

    qkv_w, qkv_b, ao_w, ao_b = [], [], [], []
    inter_w, inter_b, out_w, out_b = [], [], [], []
    for l in range(NUM_LAYERS):
        lk = jax.random.split(keys[3 + l], 12)
        wq, wk, wv = (normal(lk[i], (HIDDEN, HIDDEN)) for i in range(3))
        bq, bk, bv = (normal(lk[3 + i], (1, HIDDEN)) for i in range(3))
        wo, bo = normal(lk[6], (HIDDEN, HIDDEN)), normal(lk[7], (1, HIDDEN))
        w1, b1 = normal(lk[8], (HIDDEN, INTERMEDIATE)), normal(lk[9], (1, INTERMEDIATE))
        w2, b2 = normal(lk[10], (INTERMEDIATE, HIDDEN)), normal(lk[11], (1, HIDDEN))

        # Pack QKV so every head's q/k/v projection owns a full 128-lane tile;
        # fold 1/sqrt(head_dim) into the Q weights/bias.
        wqkv = jnp.zeros((HP, QKV_W), jnp.float32)
        bqkv = jnp.zeros((1, QKV_W), jnp.float32)
        for h in range(NUM_HEADS):
            cs, ce = h * HEAD_DIM, (h + 1) * HEAD_DIM
            wqkv = wqkv.at[:HIDDEN, Q_OFF + h * DP:Q_OFF + h * DP + HEAD_DIM].set(wq[:, cs:ce] * scale)
            wqkv = wqkv.at[:HIDDEN, K_OFF + h * DP:K_OFF + h * DP + HEAD_DIM].set(wk[:, cs:ce])
            wqkv = wqkv.at[:HIDDEN, V_OFF + h * DP:V_OFF + h * DP + HEAD_DIM].set(wv[:, cs:ce])
            bqkv = bqkv.at[:, Q_OFF + h * DP:Q_OFF + h * DP + HEAD_DIM].set(bq[:, cs:ce] * scale)
            bqkv = bqkv.at[:, K_OFF + h * DP:K_OFF + h * DP + HEAD_DIM].set(bk[:, cs:ce])
            bqkv = bqkv.at[:, V_OFF + h * DP:V_OFF + h * DP + HEAD_DIM].set(bv[:, cs:ce])

        # Attention-output projection laid out for the head-tiled ctx (512 rows).
        wao = jnp.zeros((NUM_HEADS * DP, HP), jnp.float32)
        for h in range(NUM_HEADS):
            wao = wao.at[h * DP:h * DP + HEAD_DIM, :HIDDEN].set(wo[h * HEAD_DIM:(h + 1) * HEAD_DIM, :])
        bao = jnp.zeros((1, HP), jnp.float32).at[:, :HIDDEN].set(bo)

        # FFN padded to 128 lanes (INTERMEDIATE is already exactly one tile).
        w1p = jnp.zeros((HP, INTERMEDIATE), jnp.float32).at[:HIDDEN, :].set(w1)
        w2p = jnp.zeros((INTERMEDIATE, HP), jnp.float32).at[:, :HIDDEN].set(w2)
        b2p = jnp.zeros((1, HP), jnp.float32).at[:, :HIDDEN].set(b2)

        qkv_w.append(wqkv); qkv_b.append(bqkv)
        ao_w.append(wao); ao_b.append(bao)
        inter_w.append(w1p); inter_b.append(b1)
        out_w.append(w2p); out_b.append(b2p)

    def ln_gamma():
        return jnp.zeros((1, HP), jnp.float32).at[:, :HIDDEN].set(1.0)

    def ln_beta():
        return jnp.zeros((1, HP), jnp.float32)

    L = NUM_LAYERS
    return {
        "word_emb": normal(keys[0], (VOCAB, HIDDEN)),
        "pos_emb": normal(keys[1], (MAX_POS, HIDDEN)),
        "type_emb": normal(keys[2], (TYPE_VOCAB, HIDDEN)),
        "emb_ln_g": ln_gamma(),
        "emb_ln_b": ln_beta(),
        "qkv_w": jnp.stack(qkv_w).astype(jnp.bfloat16),        # (L, 128, 1536)
        "qkv_b": jnp.stack(qkv_b),                             # (L, 1, 1536) f32
        "attn_out_w": jnp.stack(ao_w).astype(jnp.bfloat16),    # (L, 512, 128)
        "attn_out_b": jnp.stack(ao_b),
        "attn_ln_g": jnp.stack([ln_gamma() for _ in range(L)]),
        "attn_ln_b": jnp.stack([ln_beta() for _ in range(L)]),
        "inter_w": jnp.stack(inter_w).astype(jnp.bfloat16),    # (L, 128, 128)
        "inter_b": jnp.stack(inter_b),
        "out_w": jnp.stack(out_w).astype(jnp.bfloat16),        # (L, 128, 128)
        "out_b": jnp.stack(out_b),
        "out_ln_g": jnp.stack([ln_gamma() for _ in range(L)]),
        "out_ln_b": jnp.stack([ln_beta() for _ in range(L)]),
    }


# ---------------- forward (TextEncoderBert.forward equivalent) ----------------
def _resident_spec(a):
    # Whole-array VMEM resident across the batch grid (constant block index -> no re-DMA).
    return pl.BlockSpec(a.shape, lambda b, _n=a.ndim: (0,) * _n)


def text_encoder_bert_forward(params, input_ids, attention_mask, token_type_ids):
    B, S = input_ids.shape

    # Embedding gathers are wrapper glue; everything downstream is one fused kernel.
    # TODO(synk): at realistic sizes, fuse the embedding gather into the kernel via scalar prefetch.
    word = jnp.take(params["word_emb"], input_ids, axis=0)             # (B, S, H)
    pos = params["pos_emb"][:S][None, :, :]                            # (1, S, H)
    typ = jnp.take(params["type_emb"], token_type_ids, axis=0)         # (B, S, H)
    emb = (word + pos + typ).astype(jnp.float32)
    emb = jnp.pad(emb, ((0, 0), (0, 0), (0, HP - HIDDEN)))             # (B, S, 128), zero-padded lanes
    mask3 = attention_mask.astype(jnp.float32).reshape(B, 1, S)        # (B, 1, S)

    weights = [
        params["emb_ln_g"], params["emb_ln_b"],
        params["qkv_w"], params["qkv_b"],
        params["attn_out_w"], params["attn_out_b"],
        params["attn_ln_g"], params["attn_ln_b"],
        params["inter_w"], params["inter_b"],
        params["out_w"], params["out_b"],
        params["out_ln_g"], params["out_ln_b"],
    ]

    cls = pl.pallas_call(
        _encoder_kernel,
        grid=(B,),
        out_shape=jax.ShapeDtypeStruct((B, 1, HP), jnp.float32),
        in_specs=[
            pl.BlockSpec((1, 1, S), lambda b: (b, 0, 0)),              # this sequence's mask row
            pl.BlockSpec((1, S, HP), lambda b: (b, 0, 0)),             # this sequence's embeddings
        ] + [_resident_spec(w) for w in weights],
        out_specs=pl.BlockSpec((1, 1, HP), lambda b: (b, 0, 0)),       # CLS row only, lane-dense
        compiler_params=pltpu.CompilerParams(
            dimension_semantics=("parallel",)),                        # v7x: sequences split across TCs
    )(mask3, emb, *weights)

    return cls[:, 0, :HIDDEN]                                          # (B, H) == last_hidden_state[:, 0]


if __name__ == "__main__":
    key = jax.random.PRNGKey(0)
    pkey, ikey = jax.random.split(key)
    params = init_params(pkey)

    B, S = 2, 8
    input_ids = jax.random.randint(ikey, (B, S), 0, VOCAB, dtype=jnp.int32)
    attention_mask = jnp.ones((B, S), jnp.int32).at[1, 6:].set(0)      # pad last 2 tokens of seq 1
    token_type_ids = jnp.zeros((B, S), jnp.int32)

    out = text_encoder_bert_forward(params, input_ids, attention_mask, token_type_ids)
    out = jax.block_until_ready(out)
    assert out.shape == (B, HIDDEN) and out.dtype == jnp.float32
    print("KERNEL_OK")
</pallas_src>

<mosaic_0001>
module attributes {stable_mosaic.version = 11 : i64} {
  func.func @_encoder_kernel(%arg0: i32, %arg1: memref<1x1x8xf32, #tpu.memory_space<vmem>>, %arg2: memref<1x8x128xf32, #tpu.memory_space<vmem>>, %arg3: memref<1x128xf32, #tpu.memory_space<vmem>>, %arg4: memref<1x128xf32, #tpu.memory_space<vmem>>, %arg5: memref<2x128x1536xbf16, #tpu.memory_space<vmem>>, %arg6: memref<2x1x1536xf32, #tpu.memory_space<vmem>>, %arg7: memref<2x512x128xbf16, #tpu.memory_space<vmem>>, %arg8: memref<2x1x128xf32, #tpu.memory_space<vmem>>, %arg9: memref<2x1x128xf32, #tpu.memory_space<vmem>>, %arg10: memref<2x1x128xf32, #tpu.memory_space<vmem>>, %arg11: memref<2x128x128xbf16, #tpu.memory_space<vmem>>, %arg12: memref<2x1x128xf32, #tpu.memory_space<vmem>>, %arg13: memref<2x128x128xbf16, #tpu.memory_space<vmem>>, %arg14: memref<2x1x128xf32, #tpu.memory_space<vmem>>, %arg15: memref<2x1x128xf32, #tpu.memory_space<vmem>>, %arg16: memref<2x1x128xf32, #tpu.memory_space<vmem>>, %arg17: memref<1x1x128xf32, #tpu.memory_space<vmem>>) attributes {dimension_semantics = [#tpu.dimension_semantics<parallel>], iteration_bounds = array<i64: 2>, scalar_prefetch = 0 : i64, scratch_operands = 0 : i64, tpu.core_type = #tpu.core_type<tc>, window_params = [{transform_indices = @transform_0, window_bounds = array<i64: 1, 1, 8>}, {transform_indices = @transform_1, window_bounds = array<i64: 1, 8, 128>}, {pipeline_mode = #tpu.pipeline_mode<synchronous>, transform_indices = @transform_2, window_bounds = array<i64: 1, 128>}, {pipeline_mode = #tpu.pipeline_mode<synchronous>, transform_indices = @transform_3, window_bounds = array<i64: 1, 128>}, {pipeline_mode = #tpu.pipeline_mode<synchronous>, transform_indices = @transform_4, window_bounds = array<i64: 2, 128, 1536>}, {pipeline_mode = #tpu.pipeline_mode<synchronous>, transform_indices = @transform_5, window_bounds = array<i64: 2, 1, 1536>}, {pipeline_mode = #tpu.pipeline_mode<synchronous>, transform_indices = @transform_6, window_bounds = array<i64: 2, 512, 128>}, {pipeline_mode = #tpu.pipeline_mode<synchronous>, transform_indices = @transform_7, window_bounds = array<i64: 2, 1, 128>}, {pipeline_mode = #tpu.pipeline_mode<synchronous>, transform_indices = @transform_8, window_bounds = array<i64: 2, 1, 128>}, {pipeline_mode = #tpu.pipeline_mode<synchronous>, transform_indices = @transform_9, window_bounds = array<i64: 2, 1, 128>}, {pipeline_mode = #tpu.pipeline_mode<synchronous>, transform_indices = @transform_10, window_bounds = array<i64: 2, 128, 128>}, {pipeline_mode = #tpu.pipeline_mode<synchronous>, transform_indices = @transform_11, window_bounds = array<i64: 2, 1, 128>}, {pipeline_mode = #tpu.pipeline_mode<synchronous>, transform_indices = @transform_12, window_bounds = array<i64: 2, 128, 128>}, {pipeline_mode = #tpu.pipeline_mode<synchronous>, transform_indices = @transform_13, window_bounds = array<i64: 2, 1, 128>}, {pipeline_mode = #tpu.pipeline_mode<synchronous>, transform_indices = @transform_14, window_bounds = array<i64: 2, 1, 128>}, {pipeline_mode = #tpu.pipeline_mode<synchronous>, transform_indices = @transform_15, window_bounds = array<i64: 2, 1, 128>}, {transform_indices = @transform_16, window_bounds = array<i64: 1, 1, 128>}]} {
    %0 = tpu.iota {dimensions = array<i32: 1>} : vector<1x128xi32>
    %c32_i32 = arith.constant 32 : i32
    %1 = vector.broadcast %c32_i32 : i32 to vector<1x128xi32>
    %2 = arith.cmpi slt, %0, %1 : vector<1x128xi32>
    %c0 = arith.constant 0 : index
    %c0_0 = arith.constant 0 : index
    %c0_1 = arith.constant 0 : index
    %3 = vector.load %arg2[%c0, %c0_0, %c0_1] : memref<1x8x128xf32, #tpu.memory_space<vmem>>, vector<1x8x128xf32>
    %4 = vector.shape_cast %3 : vector<1x8x128xf32> to vector<8x128xf32>
    %c0_2 = arith.constant 0 : index
    %c0_3 = arith.constant 0 : index
    %5 = vector.load %arg3[%c0_2, %c0_3] : memref<1x128xf32, #tpu.memory_space<vmem>>, vector<1x128xf32>
    %c0_4 = arith.constant 0 : index
    %c0_5 = arith.constant 0 : index
    %6 = vector.load %arg4[%c0_4, %c0_5] : memref<1x128xf32, #tpu.memory_space<vmem>>, vector<1x128xf32>
    %cst = arith.constant dense<0.000000e+00> : vector<8xf32>
    %7 = vector.multi_reduction <add>, %4, %cst [1] : vector<8x128xf32> to vector<8xf32>
    %8 = vector.shape_cast %7 : vector<8xf32> to vector<8x1xf32>
    %cst_6 = arith.constant 3.125000e-02 : f32
    %9 = vector.broadcast %cst_6 : f32 to vector<8x1xf32>
    %10 = arith.mulf %8, %9 : vector<8x1xf32>
    %11 = vector.broadcast %10 : vector<8x1xf32> to vector<8x128xf32>
    %12 = arith.subf %4, %11 : vector<8x128xf32>
    %cst_7 = arith.constant 0.000000e+00 : f32
    %13 = vector.shape_cast %2 : vector<1x128xi1> to vector<1x128xi1>
    %14 = vector.broadcast %13 : vector<1x128xi1> to vector<8x128xi1>
    %15 = vector.broadcast %cst_7 : f32 to vector<8x128xf32>
    %16 = arith.select %14, %12, %15 : vector<8x128xi1>, vector<8x128xf32>
    %17 = arith.mulf %16, %16 : vector<8x128xf32>
    %cst_8 = arith.constant dense<0.000000e+00> : vector<8xf32>
    %18 = vector.multi_reduction <add>, %17, %cst_8 [1] : vector<8x128xf32> to vector<8xf32>
    %19 = vector.shape_cast %18 : vector<8xf32> to vector<8x1xf32>
    %cst_9 = arith.constant 3.125000e-02 : f32
    %20 = vector.broadcast %cst_9 : f32 to vector<8x1xf32>
    %21 = arith.mulf %19, %20 : vector<8x1xf32>
    %cst_10 = arith.constant 9.99999996E-13 : f32
    %22 = vector.broadcast %cst_10 : f32 to vector<8x1xf32>
    %23 = arith.addf %21, %22 : vector<8x1xf32>
    %24 = math.rsqrt %23 : vector<8x1xf32>
    %25 = vector.broadcast %24 : vector<8x1xf32> to vector<8x128xf32>
    %26 = arith.mulf %16, %25 : vector<8x128xf32>
    %27 = vector.broadcast %5 : vector<1x128xf32> to vector<8x128xf32>
    %28 = arith.mulf %26, %27 : vector<8x128xf32>
    %29 = vector.broadcast %6 : vector<1x128xf32> to vector<8x128xf32>
    %30 = arith.addf %28, %29 : vector<8x128xf32>
    %c0_11 = arith.constant 0 : index
    %c0_12 = arith.constant 0 : index
    %c0_13 = arith.constant 0 : index
    %31 = vector.load %arg1[%c0_11, %c0_12, %c0_13] : memref<1x1x8xf32, #tpu.memory_space<vmem>>, vector<1x1x8xf32>
    %32 = vector.shape_cast %31 : vector<1x1x8xf32> to vector<1x8xf32>
    %cst_14 = arith.constant 1.000000e+00 : f32
    %33 = vector.broadcast %cst_14 : f32 to vector<1x8xf32>
    %34 = arith.subf %33, %32 : vector<1x8xf32>
    %cst_15 = arith.constant -1.000000e+09 : f32
    %35 = vector.broadcast %cst_15 : f32 to vector<1x8xf32>
    %36 = arith.mulf %34, %35 : vector<1x8xf32>
    %37 = arith.truncf %30 : vector<8x128xf32> to vector<8x128xbf16>
    %c0_16 = arith.constant 0 : index
    %c0_17 = arith.constant 0 : index
    %c0_18 = arith.constant 0 : index
    %38 = vector.load %arg5[%c0_16, %c0_17, %c0_18] : memref<2x128x1536xbf16, #tpu.memory_space<vmem>>, vector<1x128x1536xbf16>
    %39 = vector.shape_cast %38 : vector<1x128x1536xbf16> to vector<128x1536xbf16>
    %cst_19 = arith.constant dense<0.000000e+00> : vector<8x1536xf32>
    %40 = tpu.matmul %37, %39, %cst_19 {dimension_numbers = #tpu.dot_dimension_numbers<[1], [0], [0], [1], [0, 0, 1, 1], [], []>} : vector<8x128xbf16>, vector<128x1536xbf16>, vector<8x1536xf32> -> vector<8x1536xf32>
    %c0_20 = arith.constant 0 : index
    %c0_21 = arith.constant 0 : index
    %c0_22 = arith.constant 0 : index
    %41 = vector.load %arg6[%c0_20, %c0_21, %c0_22] : memref<2x1x1536xf32, #tpu.memory_space<vmem>>, vector<1x1x1536xf32>
    %42 = vector.shape_cast %41 : vector<1x1x1536xf32> to vector<1x1536xf32>
    %43 = vector.broadcast %42 : vector<1x1536xf32> to vector<8x1536xf32>
    %44 = arith.addf %40, %43 : vector<8x1536xf32>
    %45 = arith.truncf %44 : vector<8x1536xf32> to vector<8x1536xbf16>
    %46 = vector.extract_strided_slice %45 {offsets = [0, 0], sizes = [8, 128], strides = [1, 1]} : vector<8x1536xbf16> to vector<8x128xbf16>
    %47 = vector.extract_strided_slice %45 {offsets = [0, 512], sizes = [8, 128], strides = [1, 1]} : vector<8x1536xbf16> to vector<8x128xbf16>
    %48 = vector.extract_strided_slice %45 {offsets = [0, 1024], sizes = [8, 128], strides = [1, 1]} : vector<8x1536xbf16> to vector<8x128xbf16>
    %cst_23 = arith.constant dense<0.000000e+00> : vector<8x8xf32>
    %49 = tpu.matmul %46, %47, %cst_23 {dimension_numbers = #tpu.dot_dimension_numbers<[1], [1], [0], [0], [0, 0, 1, 0], [], []>} : vector<8x128xbf16>, vector<8x128xbf16>, vector<8x8xf32> -> vector<8x8xf32>
    %50 = vector.broadcast %36 : vector<1x8xf32> to vector<8x8xf32>
    %51 = arith.addf %49, %50 : vector<8x8xf32>
    %cst_24 = arith.constant dense<0xFF800000> : vector<8xf32>
    %52 = vector.multi_reduction <maximumf>, %51, %cst_24 [1] : vector<8x8xf32> to vector<8xf32>
    %53 = vector.shape_cast %52 : vector<8xf32> to vector<8x1xf32>
    %54 = vector.broadcast %53 : vector<8x1xf32> to vector<8x8xf32>
    %55 = arith.subf %51, %54 : vector<8x8xf32>
    %56 = math.exp %55 : vector<8x8xf32>
    %cst_25 = arith.constant dense<0.000000e+00> : vector<8xf32>
    %57 = vector.multi_reduction <add>, %56, %cst_25 [1] : vector<8x8xf32> to vector<8xf32>
    %58 = vector.shape_cast %57 : vector<8xf32> to vector<8x1xf32>
    %59 = tpu.reciprocal %58 {approx = true} : vector<8x1xf32> -> vector<8x1xf32>
    %60 = vector.broadcast %59 : vector<8x1xf32> to vector<8x8xf32>
    %61 = arith.mulf %56, %60 : vector<8x8xf32>
    %62 = arith.truncf %61 : vector<8x8xf32> to vector<8x8xbf16>
    %cst_26 = arith.constant dense<0.000000e+00> : vector<8x128xf32>
    %63 = tpu.matmul %62, %48, %cst_26 {dimension_numbers = #tpu.dot_dimension_numbers<[1], [0], [0], [1], [0, 0, 1, 1], [], []>} : vector<8x8xbf16>, vector<8x128xbf16>, vector<8x128xf32> -> vector<8x128xf32>
    %64 = vector.extract_strided_slice %45 {offsets = [0, 128], sizes = [8, 128], strides = [1, 1]} : vector<8x1536xbf16> to vector<8x128xbf16>
    %65 = vector.extract_strided_slice %45 {offsets = [0, 640], sizes = [8, 128], strides = [1, 1]} : vector<8x1536xbf16> to vector<8x128xbf16>
    %66 = vector.extract_strided_slice %45 {offsets = [0, 1152], sizes = [8, 128], strides = [1, 1]} : vector<8x1536xbf16> to vector<8x128xbf16>
    %cst_27 = arith.constant dense<0.000000e+00> : vector<8x8xf32>
    %67 = tpu.matmul %64, %65, %cst_27 {dimension_numbers = #tpu.dot_dimension_numbers<[1], [1], [0], [0], [0, 0, 1, 0], [], []>} : vector<8x128xbf16>, vector<8x128xbf16>, vector<8x8xf32> -> vector<8x8xf32>
    %68 = vector.broadcast %36 : vector<1x8xf32> to vector<8x8xf32>
    %69 = arith.addf %67, %68 : vector<8x8xf32>
    %cst_28 = arith.constant dense<0xFF800000> : vector<8xf32>
    %70 = vector.multi_reduction <maximumf>, %69, %cst_28 [1] : vector<8x8xf32> to vector<8xf32>
    %71 = vector.shape_cast %70 : vector<8xf32> to vector<8x1xf32>
    %72 = vector.broadcast %71 : vector<8x1xf32> to vector<8x8xf32>
    %73 = arith.subf %69, %72 : vector<8x8xf32>
    %74 = math.exp %73 : vector<8x8xf32>
    %cst_29 = arith.constant dense<0.000000e+00> : vector<8xf32>
    %75 = vector.multi_reduction <add>, %74, %cst_29 [1] : vector<8x8xf32> to vector<8xf32>
    %76 = vector.shape_cast %75 : vector<8xf32> to vector<8x1xf32>
    %77 = tpu.reciprocal %76 {approx = true} : vector<8x1xf32> -> vector<8x1xf32>
    %78 = vector.broadcast %77 : vector<8x1xf32> to vector<8x8xf32>
    %79 = arith.mulf %74, %78 : vector<8x8xf32>
    %80 = arith.truncf %79 : vector<8x8xf32> to vector<8x8xbf16>
    %cst_30 = arith.constant dense<0.000000e+00> : vector<8x128xf32>
    %81 = tpu.matmul %80, %66, %cst_30 {dimension_numbers = #tpu.dot_dimension_numbers<[1], [0], [0], [1], [0, 0, 1, 1], [], []>} : vector<8x8xbf16>, vector<8x128xbf16>, vector<8x128xf32> -> vector<8x128xf32>
    %82 = vector.extract_strided_slice %45 {offsets = [0, 256], sizes = [8, 128], strides = [1, 1]} : vector<8x1536xbf16> to vector<8x128xbf16>
    %83 = vector.extract_strided_slice %45 {offsets = [0, 768], sizes = [8, 128], strides = [1, 1]} : vector<8x1536xbf16> to vector<8x128xbf16>
    %84 = vector.extract_strided_slice %45 {offsets = [0, 1280], sizes = [8, 128], strides = [1, 1]} : vector<8x1536xbf16> to vector<8x128xbf16>
    %cst_31 = arith.constant dense<0.000000e+00> : vector<8x8xf32>
    %85 = tpu.matmul %82, %83, %cst_31 {dimension_numbers = #tpu.dot_dimension_numbers<[1], [1], [0], [0], [0, 0, 1, 0], [], []>} : vector<8x128xbf16>, vector<8x128xbf16>, vector<8x8xf32> -> vector<8x8xf32>
    %86 = vector.broadcast %36 : vector<1x8xf32> to vector<8x8xf32>
    %87 = arith.addf %85, %86 : vector<8x8xf32>
    %cst_32 = arith.constant dense<0xFF800000> : vector<8xf32>
    %88 = vector.multi_reduction <maximumf>, %87, %cst_32 [1] : vector<8x8xf32> to vector<8xf32>
    %89 = vector.shape_cast %88 : vector<8xf32> to vector<8x1xf32>
    %90 = vector.broadcast %89 : vector<8x1xf32> to vector<8x8xf32>
    %91 = arith.subf %87, %90 : vector<8x8xf32>
    %92 = math.exp %91 : vector<8x8xf32>
    %cst_33 = arith.constant dense<0.000000e+00> : vector<8xf32>
    %93 = vector.multi_reduction <add>, %92, %cst_33 [1] : vector<8x8xf32> to vector<8xf32>
    %94 = vector.shape_cast %93 : vector<8xf32> to vector<8x1xf32>
    %95 = tpu.reciprocal %94 {approx = true} : vector<8x1xf32> -> vector<8x1xf32>
    %96 = vector.broadcast %95 : vector<8x1xf32> to vector<8x8xf32>
    %97 = arith.mulf %92, %96 : vector<8x8xf32>
    %98 = arith.truncf %97 : vector<8x8xf32> to vector<8x8xbf16>
    %cst_34 = arith.constant dense<0.000000e+00> : vector<8x128xf32>
    %99 = tpu.matmul %98, %84, %cst_34 {dimension_numbers = #tpu.dot_dimension_numbers<[1], [0], [0], [1], [0, 0, 1, 1], [], []>} : vector<8x8xbf16>, vector<8x128xbf16>, vector<8x128xf32> -> vector<8x128xf32>
    %100 = vector.extract_strided_slice %45 {offsets = [0, 384], sizes = [8, 128], strides = [1, 1]} : vector<8x1536xbf16> to vector<8x128xbf16>
    %101 = vector.extract_strided_slice %45 {offsets = [0, 896], sizes = [8, 128], strides = [1, 1]} : vector<8x1536xbf16> to vector<8x128xbf16>
    %102 = vector.extract_strided_slice %45 {offsets = [0, 1408], sizes = [8, 128], strides = [1, 1]} : vector<8x1536xbf16> to vector<8x128xbf16>
    %cst_35 = arith.constant dense<0.000000e+00> : vector<8x8xf32>
    %103 = tpu.matmul %100, %101, %cst_35 {dimension_numbers = #tpu.dot_dimension_numbers<[1], [1], [0], [0], [0, 0, 1, 0], [], []>} : vector<8x128xbf16>, vector<8x128xbf16>, vector<8x8xf32> -> vector<8x8xf32>
    %104 = vector.broadcast %36 : vector<1x8xf32> to vector<8x8xf32>
    %105 = arith.addf %103, %104 : vector<8x8xf32>
    %cst_36 = arith.constant dense<0xFF800000> : vector<8xf32>
    %106 = vector.multi_reduction <maximumf>, %105, %cst_36 [1] : vector<8x8xf32> to vector<8xf32>
    %107 = vector.shape_cast %106 : vector<8xf32> to vector<8x1xf32>
    %108 = vector.broadcast %107 : vector<8x1xf32> to vector<8x8xf32>
    %109 = arith.subf %105, %108 : vector<8x8xf32>
    %110 = math.exp %109 : vector<8x8xf32>
    %cst_37 = arith.constant dense<0.000000e+00> : vector<8xf32>
    %111 = vector.multi_reduction <add>, %110, %cst_37 [1] : vector<8x8xf32> to vector<8xf32>
    %112 = vector.shape_cast %111 : vector<8xf32> to vector<8x1xf32>
    %113 = tpu.reciprocal %112 {approx = true} : vector<8x1xf32> -> vector<8x1xf32>
    %114 = vector.broadcast %113 : vector<8x1xf32> to vector<8x8xf32>
    %115 = arith.mulf %110, %114 : vector<8x8xf32>
    %116 = arith.truncf %115 : vector<8x8xf32> to vector<8x8xbf16>
    %cst_38 = arith.constant dense<0.000000e+00> : vector<8x128xf32>
    %117 = tpu.matmul %116, %102, %cst_38 {dimension_numbers = #tpu.dot_dimension_numbers<[1], [0], [0], [1], [0, 0, 1, 1], [], []>} : vector<8x8xbf16>, vector<8x128xbf16>, vector<8x128xf32> -> vector<8x128xf32>
    %118 = tpu.concatenate %63, %81, %99, %117 in 1 : vector<8x128xf32>, vector<8x128xf32>, vector<8x128xf32>, vector<8x128xf32> -> vector<8x512xf32>
    %119 = arith.truncf %118 : vector<8x512xf32> to vector<8x512xbf16>
    %c0_39 = arith.constant 0 : index
    %c0_40 = arith.constant 0 : index
    %c0_41 = arith.constant 0 : index
    %120 = vector.load %arg7[%c0_39, %c0_40, %c0_41] : memref<2x512x128xbf16, #tpu.memory_space<vmem>>, vector<1x512x128xbf16>
    %121 = vector.shape_cast %120 : vector<1x512x128xbf16> to vector<512x128xbf16>
    %cst_42 = arith.constant dense<0.000000e+00> : vector<8x128xf32>
    %122 = tpu.matmul %119, %121, %cst_42 {dimension_numbers = #tpu.dot_dimension_numbers<[1], [0], [0], [1], [0, 0, 1, 1], [], []>} : vector<8x512xbf16>, vector<512x128xbf16>, vector<8x128xf32> -> vector<8x128xf32>
    %c0_43 = arith.constant 0 : index
    %c0_44 = arith.constant 0 : index
    %c0_45 = arith.constant 0 : index
    %123 = vector.load %arg8[%c0_43, %c0_44, %c0_45] : memref<2x1x128xf32, #tpu.memory_space<vmem>>, vector<1x1x128xf32>
    %124 = vector.shape_cast %123 : vector<1x1x128xf32> to vector<1x128xf32>
    %125 = vector.broadcast %124 : vector<1x128xf32> to vector<8x128xf32>
    %126 = arith.addf %122, %125 : vector<8x128xf32>
    %127 = arith.addf %30, %126 : vector<8x128xf32>
    %c0_46 = arith.constant 0 : index
    %c0_47 = arith.constant 0 : index
    %c0_48 = arith.constant 0 : index
    %128 = vector.load %arg9[%c0_46, %c0_47, %c0_48] : memref<2x1x128xf32, #tpu.memory_space<vmem>>, vector<1x1x128xf32>
    %129 = vector.shape_cast %128 : vector<1x1x128xf32> to vector<1x128xf32>
    %c0_49 = arith.constant 0 : index
    %c0_50 = arith.constant 0 : index
    %c0_51 = arith.constant 0 : index
    %130 = vector.load %arg10[%c0_49, %c0_50, %c0_51] : memref<2x1x128xf32, #tpu.memory_space<vmem>>, vector<1x1x128xf32>
    %131 = vector.shape_cast %130 : vector<1x1x128xf32> to vector<1x128xf32>
    %cst_52 = arith.constant dense<0.000000e+00> : vector<8xf32>
    %132 = vector.multi_reduction <add>, %127, %cst_52 [1] : vector<8x128xf32> to vector<8xf32>
    %133 = vector.shape_cast %132 : vector<8xf32> to vector<8x1xf32>
    %cst_53 = arith.constant 3.125000e-02 : f32
    %134 = vector.broadcast %cst_53 : f32 to vector<8x1xf32>
    %135 = arith.mulf %133, %134 : vector<8x1xf32>
    %136 = vector.broadcast %135 : vector<8x1xf32> to vector<8x128xf32>
    %137 = arith.subf %127, %136 : vector<8x128xf32>
    %cst_54 = arith.constant 0.000000e+00 : f32
    %138 = vector.shape_cast %2 : vector<1x128xi1> to vector<1x128xi1>
    %139 = vector.broadcast %138 : vector<1x128xi1> to vector<8x128xi1>
    %140 = vector.broadcast %cst_54 : f32 to vector<8x128xf32>
    %141 = arith.select %139, %137, %140 : vector<8x128xi1>, vector<8x128xf32>
    %142 = arith.mulf %141, %141 : vector<8x128xf32>
    %cst_55 = arith.constant dense<0.000000e+00> : vector<8xf32>
    %143 = vector.multi_reduction <add>, %142, %cst_55 [1] : vector<8x128xf32> to vector<8xf32>
    %144 = vector.shape_cast %143 : vector<8xf32> to vector<8x1xf32>
    %cst_56 = arith.constant 3.125000e-02 : f32
    %145 = vector.broadcast %cst_56 : f32 to vector<8x1xf32>
    %146 = arith.mulf %144, %145 : vector<8x1xf32>
    %cst_57 = arith.constant 9.99999996E-13 : f32
    %147 = vector.broadcast %cst_57 : f32 to vector<8x1xf32>
    %148 = arith.addf %146, %147 : vector<8x1xf32>
    %149 = math.rsqrt %148 : vector<8x1xf32>
    %150 = vector.broadcast %149 : vector<8x1xf32> to vector<8x128xf32>
    %151 = arith.mulf %141, %150 : vector<8x128xf32>
    %152 = vector.broadcast %129 : vector<1x128xf32> to vector<8x128xf32>
    %153 = arith.mulf %151, %152 : vector<8x128xf32>
    %154 = vector.broadcast %131 : vector<1x128xf32> to vector<8x128xf32>
    %155 = arith.addf %153, %154 : vector<8x128xf32>
    %156 = arith.truncf %155 : vector<8x128xf32> to vector<8x128xbf16>
    %c0_58 = arith.constant 0 : index
    %c0_59 = arith.constant 0 : index
    %c0_60 = arith.constant 0 : index
    %157 = vector.load %arg11[%c0_58, %c0_59, %c0_60] : memref<2x128x128xbf16, #tpu.memory_space<vmem>>, vector<1x128x128xbf16>
    %158 = vector.shape_cast %157 : vector<1x128x128xbf16> to vector<128x128xbf16>
    %cst_61 = arith.constant dense<0.000000e+00> : vector<8x128xf32>
    %159 = tpu.matmul %156, %158, %cst_61 {dimension_numbers = #tpu.dot_dimension_numbers<[1], [0], [0], [1], [0, 0, 1, 1], [], []>} : vector<8x128xbf16>, vector<128x128xbf16>, vector<8x128xf32> -> vector<8x128xf32>
    %c0_62 = arith.constant 0 : index
    %c0_63 = arith.constant 0 : index
    %c0_64 = arith.constant 0 : index
    %160 = vector.load %arg12[%c0_62, %c0_63, %c0_64] : memref<2x1x128xf32, #tpu.memory_space<vmem>>, vector<1x1x128xf32>
    %161 = vector.shape_cast %160 : vector<1x1x128xf32> to vector<1x128xf32>
    %162 = vector.broadcast %161 : vector<1x128xf32> to vector<8x128xf32>
    %163 = arith.addf %159, %162 : vector<8x128xf32>
    %cst_65 = arith.constant 5.000000e-01 : f32
    %164 = vector.broadcast %cst_65 : f32 to vector<8x128xf32>
    %165 = arith.mulf %164, %163 : vector<8x128xf32>
    %cst_66 = arith.constant 4.471500e-02 : f32
    %166 = vector.broadcast %cst_66 : f32 to vector<8x128xf32>
    %167 = arith.mulf %166, %163 : vector<8x128xf32>
    %168 = arith.mulf %167, %163 : vector<8x128xf32>
    %169 = arith.mulf %168, %163 : vector<8x128xf32>
    %170 = arith.addf %163, %169 : vector<8x128xf32>
    %cst_67 = arith.constant 0.797884583 : f32
    %171 = vector.broadcast %cst_67 : f32 to vector<8x128xf32>
    %172 = arith.mulf %171, %170 : vector<8x128xf32>
    %173 = math.tanh %172 : vector<8x128xf32>
    %cst_68 = arith.constant 1.000000e+00 : f32
    %174 = vector.broadcast %cst_68 : f32 to vector<8x128xf32>
    %175 = arith.addf %174, %173 : vector<8x128xf32>
    %176 = arith.mulf %165, %175 : vector<8x128xf32>
    %177 = arith.truncf %176 : vector<8x128xf32> to vector<8x128xbf16>
    %c0_69 = arith.constant 0 : index
    %c0_70 = arith.constant 0 : index
    %c0_71 = arith.constant 0 : index
    %178 = vector.load %arg13[%c0_69, %c0_70, %c0_71] : memref<2x128x128xbf16, #tpu.memory_space<vmem>>, vector<1x128x128xbf16>
    %179 = vector.shape_cast %178 : vector<1x128x128xbf16> to vector<128x128xbf16>
    %cst_72 = arith.constant dense<0.000000e+00> : vector<8x128xf32>
    %180 = tpu.matmul %177, %179, %cst_72 {dimension_numbers = #tpu.dot_dimension_numbers<[1], [0], [0], [1], [0, 0, 1, 1], [], []>} : vector<8x128xbf16>, vector<128x128xbf16>, vector<8x128xf32> -> vector<8x128xf32>
    %c0_73 = arith.constant 0 : index
    %c0_74 = arith.constant 0 : index
    %c0_75 = arith.constant 0 : index
    %181 = vector.load %arg14[%c0_73, %c0_74, %c0_75] : memref<2x1x128xf32, #tpu.memory_space<vmem>>, vector<1x1x128xf32>
    %182 = vector.shape_cast %181 : vector<1x1x128xf32> to vector<1x128xf32>
    %183 = vector.broadcast %182 : vector<1x128xf32> to vector<8x128xf32>
    %184 = arith.addf %180, %183 : vector<8x128xf32>
    %185 = arith.addf %155, %184 : vector<8x128xf32>
    %c0_76 = arith.constant 0 : index
    %c0_77 = arith.constant 0 : index
    %c0_78 = arith.constant 0 : index
    %186 = vector.load %arg15[%c0_76, %c0_77, %c0_78] : memref<2x1x128xf32, #tpu.memory_space<vmem>>, vector<1x1x128xf32>
    %187 = vector.shape_cast %186 : vector<1x1x128xf32> to vector<1x128xf32>
    %c0_79 = arith.constant 0 : index
    %c0_80 = arith.constant 0 : index
    %c0_81 = arith.constant 0 : index
    %188 = vector.load %arg16[%c0_79, %c0_80, %c0_81] : memref<2x1x128xf32, #tpu.memory_space<vmem>>, vector<1x1x128xf32>
    %189 = vector.shape_cast %188 : vector<1x1x128xf32> to vector<1x128xf32>
    %cst_82 = arith.constant dense<0.000000e+00> : vector<8xf32>
    %190 = vector.multi_reduction <add>, %185, %cst_82 [1] : vector<8x128xf32> to vector<8xf32>
    %191 = vector.shape_cast %190 : vector<8xf32> to vector<8x1xf32>
    %cst_83 = arith.constant 3.125000e-02 : f32
    %192 = vector.broadcast %cst_83 : f32 to vector<8x1xf32>
    %193 = arith.mulf %191, %192 : vector<8x1xf32>
    %194 = vector.broadcast %193 : vector<8x1xf32> to vector<8x128xf32>
    %195 = arith.subf %185, %194 : vector<8x128xf32>
    %cst_84 = arith.constant 0.000000e+00 : f32
    %196 = vector.shape_cast %2 : vector<1x128xi1> to vector<1x128xi1>
    %197 = vector.broadcast %196 : vector<1x128xi1> to vector<8x128xi1>
    %198 = vector.broadcast %cst_84 : f32 to vector<8x128xf32>
    %199 = arith.select %197, %195, %198 : vector<8x128xi1>, vector<8x128xf32>
    %200 = arith.mulf %199, %199 : vector<8x128xf32>
    %cst_85 = arith.constant dense<0.000000e+00> : vector<8xf32>
    %201 = vector.multi_reduction <add>, %200, %cst_85 [1] : vector<8x128xf32> to vector<8xf32>
    %202 = vector.shape_cast %201 : vector<8xf32> to vector<8x1xf32>
    %cst_86 = arith.constant 3.125000e-02 : f32
    %203 = vector.broadcast %cst_86 : f32 to vector<8x1xf32>
    %204 = arith.mulf %202, %203 : vector<8x1xf32>
    %cst_87 = arith.constant 9.99999996E-13 : f32
    %205 = vector.broadcast %cst_87 : f32 to vector<8x1xf32>
    %206 = arith.addf %204, %205 : vector<8x1xf32>
    %207 = math.rsqrt %206 : vector<8x1xf32>
    %208 = vector.broadcast %207 : vector<8x1xf32> to vector<8x128xf32>
    %209 = arith.mulf %199, %208 : vector<8x128xf32>
    %210 = vector.broadcast %187 : vector<1x128xf32> to vector<8x128xf32>
    %211 = arith.mulf %209, %210 : vector<8x128xf32>
    %212 = vector.broadcast %189 : vector<1x128xf32> to vector<8x128xf32>
    %213 = arith.addf %211, %212 : vector<8x128xf32>
    %214 = arith.truncf %213 : vector<8x128xf32> to vector<8x128xbf16>
    %c1 = arith.constant 1 : index
    %c0_88 = arith.constant 0 : index
    %c0_89 = arith.constant 0 : index
    %215 = vector.load %arg5[%c1, %c0_88, %c0_89] : memref<2x128x1536xbf16, #tpu.memory_space<vmem>>, vector<1x128x1536xbf16>
    %216 = vector.shape_cast %215 : vector<1x128x1536xbf16> to vector<128x1536xbf16>
    %cst_90 = arith.constant dense<0.000000e+00> : vector<8x1536xf32>
    %217 = tpu.matmul %214, %216, %cst_90 {dimension_numbers = #tpu.dot_dimension_numbers<[1], [0], [0], [1], [0, 0, 1, 1], [], []>} : vector<8x128xbf16>, vector<128x1536xbf16>, vector<8x1536xf32> -> vector<8x1536xf32>
    %c1_91 = arith.constant 1 : index
    %c0_92 = arith.constant 0 : index
    %c0_93 = arith.constant 0 : index
    %218 = vector.load %arg6[%c1_91, %c0_92, %c0_93] : memref<2x1x1536xf32, #tpu.memory_space<vmem>>, vector<1x1x1536xf32>
    %219 = vector.shape_cast %218 : vector<1x1x1536xf32> to vector<1x1536xf32>
    %220 = vector.broadcast %219 : vector<1x1536xf32> to vector<8x1536xf32>
    %221 = arith.addf %217, %220 : vector<8x1536xf32>
    %222 = arith.truncf %221 : vector<8x1536xf32> to vector<8x1536xbf16>
    %223 = vector.extract_strided_slice %222 {offsets = [0, 0], sizes = [8, 128], strides = [1, 1]} : vector<8x1536xbf16> to vector<8x128xbf16>
    %224 = vector.extract_strided_slice %222 {offsets = [0, 512], sizes = [8, 128], strides = [1, 1]} : vector<8x1536xbf16> to vector<8x128xbf16>
    %225 = vector.extract_strided_slice %222 {offsets = [0, 1024], sizes = [8, 128], strides = [1, 1]} : vector<8x1536xbf16> to vector<8x128xbf16>
    %cst_94 = arith.constant dense<0.000000e+00> : vector<8x8xf32>
    %226 = tpu.matmul %223, %224, %cst_94 {dimension_numbers = #tpu.dot_dimension_numbers<[1], [1], [0], [0], [0, 0, 1, 0], [], []>} : vector<8x128xbf16>, vector<8x128xbf16>, vector<8x8xf32> -> vector<8x8xf32>
    %227 = vector.broadcast %36 : vector<1x8xf32> to vector<8x8xf32>
    %228 = arith.addf %226, %227 : vector<8x8xf32>
    %cst_95 = arith.constant dense<0xFF800000> : vector<8xf32>
    %229 = vector.multi_reduction <maximumf>, %228, %cst_95 [1] : vector<8x8xf32> to vector<8xf32>
    %230 = vector.shape_cast %229 : vector<8xf32> to vector<8x1xf32>
    %231 = vector.broadcast %230 : vector<8x1xf32> to vector<8x8xf32>
    %232 = arith.subf %228, %231 : vector<8x8xf32>
    %233 = math.exp %232 : vector<8x8xf32>
    %cst_96 = arith.constant dense<0.000000e+00> : vector<8xf32>
    %234 = vector.multi_reduction <add>, %233, %cst_96 [1] : vector<8x8xf32> to vector<8xf32>
    %235 = vector.shape_cast %234 : vector<8xf32> to vector<8x1xf32>
    %236 = tpu.reciprocal %235 {approx = true} : vector<8x1xf32> -> vector<8x1xf32>
    %237 = vector.broadcast %236 : vector<8x1xf32> to vector<8x8xf32>
    %238 = arith.mulf %233, %237 : vector<8x8xf32>
    %239 = arith.truncf %238 : vector<8x8xf32> to vector<8x8xbf16>
    %cst_97 = arith.constant dense<0.000000e+00> : vector<8x128xf32>
    %240 = tpu.matmul %239, %225, %cst_97 {dimension_numbers = #tpu.dot_dimension_numbers<[1], [0], [0], [1], [0, 0, 1, 1], [], []>} : vector<8x8xbf16>, vector<8x128xbf16>, vector<8x128xf32> -> vector<8x128xf32>
    %241 = vector.extract_strided_slice %222 {offsets = [0, 128], sizes = [8, 128], strides = [1, 1]} : vector<8x1536xbf16> to vector<8x128xbf16>
    %242 = vector.extract_strided_slice %222 {offsets = [0, 640], sizes = [8, 128], strides = [1, 1]} : vector<8x1536xbf16> to vector<8x128xbf16>
    %243 = vector.extract_strided_slice %222 {offsets = [0, 1152], sizes = [8, 128], strides = [1, 1]} : vector<8x1536xbf16> to vector<8x128xbf16>
    %cst_98 = arith.constant dense<0.000000e+00> : vector<8x8xf32>
    %244 = tpu.matmul %241, %242, %cst_98 {dimension_numbers = #tpu.dot_dimension_numbers<[1], [1], [0], [0], [0, 0, 1, 0], [], []>} : vector<8x128xbf16>, vector<8x128xbf16>, vector<8x8xf32> -> vector<8x8xf32>
    %245 = vector.broadcast %36 : vector<1x8xf32> to vector<8x8xf32>
    %246 = arith.addf %244, %245 : vector<8x8xf32>
    %cst_99 = arith.constant dense<0xFF800000> : vector<8xf32>
    %247 = vector.multi_reduction <maximumf>, %246, %cst_99 [1] : vector<8x8xf32> to vector<8xf32>
    %248 = vector.shape_cast %247 : vector<8xf32> to vector<8x1xf32>
    %249 = vector.broadcast %248 : vector<8x1xf32> to vector<8x8xf32>
    %250 = arith.subf %246, %249 : vector<8x8xf32>
    %251 = math.exp %250 : vector<8x8xf32>
    %cst_100 = arith.constant dense<0.000000e+00> : vector<8xf32>
    %252 = vector.multi_reduction <add>, %251, %cst_100 [1] : vector<8x8xf32> to vector<8xf32>
    %253 = vector.shape_cast %252 : vector<8xf32> to vector<8x1xf32>
    %254 = tpu.reciprocal %253 {approx = true} : vector<8x1xf32> -> vector<8x1xf32>
    %255 = vector.broadcast %254 : vector<8x1xf32> to vector<8x8xf32>
    %256 = arith.mulf %251, %255 : vector<8x8xf32>
    %257 = arith.truncf %256 : vector<8x8xf32> to vector<8x8xbf16>
    %cst_101 = arith.constant dense<0.000000e+00> : vector<8x128xf32>
    %258 = tpu.matmul %257, %243, %cst_101 {dimension_numbers = #tpu.dot_dimension_numbers<[1], [0], [0], [1], [0, 0, 1, 1], [], []>} : vector<8x8xbf16>, vector<8x128xbf16>, vector<8x128xf32> -> vector<8x128xf32>
    %259 = vector.extract_strided_slice %222 {offsets = [0, 256], sizes = [8, 128], strides = [1, 1]} : vector<8x1536xbf16> to vector<8x128xbf16>
    %260 = vector.extract_strided_slice %222 {offsets = [0, 768], sizes = [8, 128], strides = [1, 1]} : vector<8x1536xbf16> to vector<8x128xbf16>
    %261 = vector.extract_strided_slice %222 {offsets = [0, 1280], sizes = [8, 128], strides = [1, 1]} : vector<8x1536xbf16> to vector<8x128xbf16>
    %cst_102 = arith.constant dense<0.000000e+00> : vector<8x8xf32>
    %262 = tpu.matmul %259, %260, %cst_102 {dimension_numbers = #tpu.dot_dimension_numbers<[1], [1], [0], [0], [0, 0, 1, 0], [], []>} : vector<8x128xbf16>, vector<8x128xbf16>, vector<8x8xf32> -> vector<8x8xf32>
    %263 = vector.broadcast %36 : vector<1x8xf32> to vector<8x8xf32>
    %264 = arith.addf %262, %263 : vector<8x8xf32>
    %cst_103 = arith.constant dense<0xFF800000> : vector<8xf32>
    %265 = vector.multi_reduction <maximumf>, %264, %cst_103 [1] : vector<8x8xf32> to vector<8xf32>
    %266 = vector.shape_cast %265 : vector<8xf32> to vector<8x1xf32>
    %267 = vector.broadcast %266 : vector<8x1xf32> to vector<8x8xf32>
    %268 = arith.subf %264, %267 : vector<8x8xf32>
    %269 = math.exp %268 : vector<8x8xf32>
    %cst_104 = arith.constant dense<0.000000e+00> : vector<8xf32>
    %270 = vector.multi_reduction <add>, %269, %cst_104 [1] : vector<8x8xf32> to vector<8xf32>
    %271 = vector.shape_cast %270 : vector<8xf32> to vector<8x1xf32>
    %272 = tpu.reciprocal %271 {approx = true} : vector<8x1xf32> -> vector<8x1xf32>
    %273 = vector.broadcast %272 : vector<8x1xf32> to vector<8x8xf32>
    %274 = arith.mulf %269, %273 : vector<8x8xf32>
    %275 = arith.truncf %274 : vector<8x8xf32> to vector<8x8xbf16>
    %cst_105 = arith.constant dense<0.000000e+00> : vector<8x128xf32>
    %276 = tpu.matmul %275, %261, %cst_105 {dimension_numbers = #tpu.dot_dimension_numbers<[1], [0], [0], [1], [0, 0, 1, 1], [], []>} : vector<8x8xbf16>, vector<8x128xbf16>, vector<8x128xf32> -> vector<8x128xf32>
    %277 = vector.extract_strided_slice %222 {offsets = [0, 384], sizes = [8, 128], strides = [1, 1]} : vector<8x1536xbf16> to vector<8x128xbf16>
    %278 = vector.extract_strided_slice %222 {offsets = [0, 896], sizes = [8, 128], strides = [1, 1]} : vector<8x1536xbf16> to vector<8x128xbf16>
    %279 = vector.extract_strided_slice %222 {offsets = [0, 1408], sizes = [8, 128], strides = [1, 1]} : vector<8x1536xbf16> to vector<8x128xbf16>
    %cst_106 = arith.constant dense<0.000000e+00> : vector<8x8xf32>
    %280 = tpu.matmul %277, %278, %cst_106 {dimension_numbers = #tpu.dot_dimension_numbers<[1], [1], [0], [0], [0, 0, 1, 0], [], []>} : vector<8x128xbf16>, vector<8x128xbf16>, vector<8x8xf32> -> vector<8x8xf32>
    %281 = vector.broadcast %36 : vector<1x8xf32> to vector<8x8xf32>
    %282 = arith.addf %280, %281 : vector<8x8xf32>
    %cst_107 = arith.constant dense<0xFF800000> : vector<8xf32>
    %283 = vector.multi_reduction <maximumf>, %282, %cst_107 [1] : vector<8x8xf32> to vector<8xf32>
    %284 = vector.shape_cast %283 : vector<8xf32> to vector<8x1xf32>
    %285 = vector.broadcast %284 : vector<8x1xf32> to vector<8x8xf32>
    %286 = arith.subf %282, %285 : vector<8x8xf32>
    %287 = math.exp %286 : vector<8x8xf32>
    %cst_108 = arith.constant dense<0.000000e+00> : vector<8xf32>
    %288 = vector.multi_reduction <add>, %287, %cst_108 [1] : vector<8x8xf32> to vector<8xf32>
    %289 = vector.shape_cast %288 : vector<8xf32> to vector<8x1xf32>
    %290 = tpu.reciprocal %289 {approx = true} : vector<8x1xf32> -> vector<8x1xf32>
    %291 = vector.broadcast %290 : vector<8x1xf32> to vector<8x8xf32>
    %292 = arith.mulf %287, %291 : vector<8x8xf32>
    %293 = arith.truncf %292 : vector<8x8xf32> to vector<8x8xbf16>
    %cst_109 = arith.constant dense<0.000000e+00> : vector<8x128xf32>
    %294 = tpu.matmul %293, %279, %cst_109 {dimension_numbers = #tpu.dot_dimension_numbers<[1], [0], [0], [1], [0, 0, 1, 1], [], []>} : vector<8x8xbf16>, vector<8x128xbf16>, vector<8x128xf32> -> vector<8x128xf32>
    %295 = tpu.concatenate %240, %258, %276, %294 in 1 : vector<8x128xf32>, vector<8x128xf32>, vector<8x128xf32>, vector<8x128xf32> -> vector<8x512xf32>
    %296 = arith.truncf %295 : vector<8x512xf32> to vector<8x512xbf16>
    %c1_110 = arith.constant 1 : index
    %c0_111 = arith.constant 0 : index
    %c0_112 = arith.constant 0 : index
    %297 = vector.load %arg7[%c1_110, %c0_111, %c0_112] : memref<2x512x128xbf16, #tpu.memory_space<vmem>>, vector<1x512x128xbf16>
    %298 = vector.shape_cast %297 : vector<1x512x128xbf16> to vector<512x128xbf16>
    %cst_113 = arith.constant dense<0.000000e+00> : vector<8x128xf32>
    %299 = tpu.matmul %296, %298, %cst_113 {dimension_numbers = #tpu.dot_dimension_numbers<[1], [0], [0], [1], [0, 0, 1, 1], [], []>} : vector<8x512xbf16>, vector<512x128xbf16>, vector<8x128xf32> -> vector<8x128xf32>
    %c1_114 = arith.constant 1 : index
    %c0_115 = arith.constant 0 : index
    %c0_116 = arith.constant 0 : index
    %300 = vector.load %arg8[%c1_114, %c0_115, %c0_116] : memref<2x1x128xf32, #tpu.memory_space<vmem>>, vector<1x1x128xf32>
    %301 = vector.shape_cast %300 : vector<1x1x128xf32> to vector<1x128xf32>
    %302 = vector.broadcast %301 : vector<1x128xf32> to vector<8x128xf32>
    %303 = arith.addf %299, %302 : vector<8x128xf32>
    %304 = arith.addf %213, %303 : vector<8x128xf32>
    %c1_117 = arith.constant 1 : index
    %c0_118 = arith.constant 0 : index
    %c0_119 = arith.constant 0 : index
    %305 = vector.load %arg9[%c1_117, %c0_118, %c0_119] : memref<2x1x128xf32, #tpu.memory_space<vmem>>, vector<1x1x128xf32>
    %306 = vector.shape_cast %305 : vector<1x1x128xf32> to vector<1x128xf32>
    %c1_120 = arith.constant 1 : index
    %c0_121 = arith.constant 0 : index
    %c0_122 = arith.constant 0 : index
    %307 = vector.load %arg10[%c1_120, %c0_121, %c0_122] : memref<2x1x128xf32, #tpu.memory_space<vmem>>, vector<1x1x128xf32>
    %308 = vector.shape_cast %307 : vector<1x1x128xf32> to vector<1x128xf32>
    %cst_123 = arith.constant dense<0.000000e+00> : vector<8xf32>
    %309 = vector.multi_reduction <add>, %304, %cst_123 [1] : vector<8x128xf32> to vector<8xf32>
    %310 = vector.shape_cast %309 : vector<8xf32> to vector<8x1xf32>
    %cst_124 = arith.constant 3.125000e-02 : f32
    %311 = vector.broadcast %cst_124 : f32 to vector<8x1xf32>
    %312 = arith.mulf %310, %311 : vector<8x1xf32>
    %313 = vector.broadcast %312 : vector<8x1xf32> to vector<8x128xf32>
    %314 = arith.subf %304, %313 : vector<8x128xf32>
    %cst_125 = arith.constant 0.000000e+00 : f32
    %315 = vector.shape_cast %2 : vector<1x128xi1> to vector<1x128xi1>
    %316 = vector.broadcast %315 : vector<1x128xi1> to vector<8x128xi1>
    %317 = vector.broadcast %cst_125 : f32 to vector<8x128xf32>
    %318 = arith.select %316, %314, %317 : vector<8x128xi1>, vector<8x128xf32>
    %319 = arith.mulf %318, %318 : vector<8x128xf32>
    %cst_126 = arith.constant dense<0.000000e+00> : vector<8xf32>
    %320 = vector.multi_reduction <add>, %319, %cst_126 [1] : vector<8x128xf32> to vector<8xf32>
    %321 = vector.shape_cast %320 : vector<8xf32> to vector<8x1xf32>
    %cst_127 = arith.constant 3.125000e-02 : f32
    %322 = vector.broadcast %cst_127 : f32 to vector<8x1xf32>
    %323 = arith.mulf %321, %322 : vector<8x1xf32>
    %cst_128 = arith.constant 9.99999996E-13 : f32
    %324 = vector.broadcast %cst_128 : f32 to vector<8x1xf32>
    %325 = arith.addf %323, %324 : vector<8x1xf32>
    %326 = math.rsqrt %325 : vector<8x1xf32>
    %327 = vector.broadcast %326 : vector<8x1xf32> to vector<8x128xf32>
    %328 = arith.mulf %318, %327 : vector<8x128xf32>
    %329 = vector.broadcast %306 : vector<1x128xf32> to vector<8x128xf32>
    %330 = arith.mulf %328, %329 : vector<8x128xf32>
    %331 = vector.broadcast %308 : vector<1x128xf32> to vector<8x128xf32>
    %332 = arith.addf %330, %331 : vector<8x128xf32>
    %333 = arith.truncf %332 : vector<8x128xf32> to vector<8x128xbf16>
    %c1_129 = arith.constant 1 : index
    %c0_130 = arith.constant 0 : index
    %c0_131 = arith.constant 0 : index
    %334 = vector.load %arg11[%c1_129, %c0_130, %c0_131] : memref<2x128x128xbf16, #tpu.memory_space<vmem>>, vector<1x128x128xbf16>
    %335 = vector.shape_cast %334 : vector<1x128x128xbf16> to vector<128x128xbf16>
    %cst_132 = arith.constant dense<0.000000e+00> : vector<8x128xf32>
    %336 = tpu.matmul %333, %335, %cst_132 {dimension_numbers = #tpu.dot_dimension_numbers<[1], [0], [0], [1], [0, 0, 1, 1], [], []>} : vector<8x128xbf16>, vector<128x128xbf16>, vector<8x128xf32> -> vector<8x128xf32>
    %c1_133 = arith.constant 1 : index
    %c0_134 = arith.constant 0 : index
    %c0_135 = arith.constant 0 : index
    %337 = vector.load %arg12[%c1_133, %c0_134, %c0_135] : memref<2x1x128xf32, #tpu.memory_space<vmem>>, vector<1x1x128xf32>
    %338 = vector.shape_cast %337 : vector<1x1x128xf32> to vector<1x128xf32>
    %339 = vector.broadcast %338 : vector<1x128xf32> to vector<8x128xf32>
    %340 = arith.addf %336, %339 : vector<8x128xf32>
    %cst_136 = arith.constant 5.000000e-01 : f32
    %341 = vector.broadcast %cst_136 : f32 to vector<8x128xf32>
    %342 = arith.mulf %341, %340 : vector<8x128xf32>
    %cst_137 = arith.constant 4.471500e-02 : f32
    %343 = vector.broadcast %cst_137 : f32 to vector<8x128xf32>
    %344 = arith.mulf %343, %340 : vector<8x128xf32>
    %345 = arith.mulf %344, %340 : vector<8x128xf32>
    %346 = arith.mulf %345, %340 : vector<8x128xf32>
    %347 = arith.addf %340, %346 : vector<8x128xf32>
    %cst_138 = arith.constant 0.797884583 : f32
    %348 = vector.broadcast %cst_138 : f32 to vector<8x128xf32>
    %349 = arith.mulf %348, %347 : vector<8x128xf32>
    %350 = math.tanh %349 : vector<8x128xf32>
    %cst_139 = arith.constant 1.000000e+00 : f32
    %351 = vector.broadcast %cst_139 : f32 to vector<8x128xf32>
    %352 = arith.addf %351, %350 : vector<8x128xf32>
    %353 = arith.mulf %342, %352 : vector<8x128xf32>
    %354 = arith.truncf %353 : vector<8x128xf32> to vector<8x128xbf16>
    %c1_140 = arith.constant 1 : index
    %c0_141 = arith.constant 0 : index
    %c0_142 = arith.constant 0 : index
    %355 = vector.load %arg13[%c1_140, %c0_141, %c0_142] : memref<2x128x128xbf16, #tpu.memory_space<vmem>>, vector<1x128x128xbf16>
    %356 = vector.shape_cast %355 : vector<1x128x128xbf16> to vector<128x128xbf16>
    %cst_143 = arith.constant dense<0.000000e+00> : vector<8x128xf32>
    %357 = tpu.matmul %354, %356, %cst_143 {dimension_numbers = #tpu.dot_dimension_numbers<[1], [0], [0], [1], [0, 0, 1, 1], [], []>} : vector<8x128xbf16>, vector<128x128xbf16>, vector<8x128xf32> -> vector<8x128xf32>
    %c1_144 = arith.constant 1 : index
    %c0_145 = arith.constant 0 : index
    %c0_146 = arith.constant 0 : index
    %358 = vector.load %arg14[%c1_144, %c0_145, %c0_146] : memref<2x1x128xf32, #tpu.memory_space<vmem>>, vector<1x1x128xf32>
    %359 = vector.shape_cast %358 : vector<1x1x128xf32> to vector<1x128xf32>
    %360 = vector.broadcast %359 : vector<1x128xf32> to vector<8x128xf32>
    %361 = arith.addf %357, %360 : vector<8x128xf32>
    %362 = arith.addf %332, %361 : vector<8x128xf32>
    %c1_147 = arith.constant 1 : index
    %c0_148 = arith.constant 0 : index
    %c0_149 = arith.constant 0 : index
    %363 = vector.load %arg15[%c1_147, %c0_148, %c0_149] : memref<2x1x128xf32, #tpu.memory_space<vmem>>, vector<1x1x128xf32>
    %364 = vector.shape_cast %363 : vector<1x1x128xf32> to vector<1x128xf32>
    %c1_150 = arith.constant 1 : index
    %c0_151 = arith.constant 0 : index
    %c0_152 = arith.constant 0 : index
    %365 = vector.load %arg16[%c1_150, %c0_151, %c0_152] : memref<2x1x128xf32, #tpu.memory_space<vmem>>, vector<1x1x128xf32>
    %366 = vector.shape_cast %365 : vector<1x1x128xf32> to vector<1x128xf32>
    %cst_153 = arith.constant dense<0.000000e+00> : vector<8xf32>
    %367 = vector.multi_reduction <add>, %362, %cst_153 [1] : vector<8x128xf32> to vector<8xf32>
    %368 = vector.shape_cast %367 : vector<8xf32> to vector<8x1xf32>
    %cst_154 = arith.constant 3.125000e-02 : f32
    %369 = vector.broadcast %cst_154 : f32 to vector<8x1xf32>
    %370 = arith.mulf %368, %369 : vector<8x1xf32>
    %371 = vector.broadcast %370 : vector<8x1xf32> to vector<8x128xf32>
    %372 = arith.subf %362, %371 : vector<8x128xf32>
    %cst_155 = arith.constant 0.000000e+00 : f32
    %373 = vector.shape_cast %2 : vector<1x128xi1> to vector<1x128xi1>
    %374 = vector.broadcast %373 : vector<1x128xi1> to vector<8x128xi1>
    %375 = vector.broadcast %cst_155 : f32 to vector<8x128xf32>
    %376 = arith.select %374, %372, %375 : vector<8x128xi1>, vector<8x128xf32>
    %377 = arith.mulf %376, %376 : vector<8x128xf32>
    %cst_156 = arith.constant dense<0.000000e+00> : vector<8xf32>
    %378 = vector.multi_reduction <add>, %377, %cst_156 [1] : vector<8x128xf32> to vector<8xf32>
    %379 = vector.shape_cast %378 : vector<8xf32> to vector<8x1xf32>
    %cst_157 = arith.constant 3.125000e-02 : f32
    %380 = vector.broadcast %cst_157 : f32 to vector<8x1xf32>
    %381 = arith.mulf %379, %380 : vector<8x1xf32>
    %cst_158 = arith.constant 9.99999996E-13 : f32
    %382 = vector.broadcast %cst_158 : f32 to vector<8x1xf32>
    %383 = arith.addf %381, %382 : vector<8x1xf32>
    %384 = math.rsqrt %383 : vector<8x1xf32>
    %385 = vector.broadcast %384 : vector<8x1xf32> to vector<8x128xf32>
    %386 = arith.mulf %376, %385 : vector<8x128xf32>
    %387 = vector.broadcast %364 : vector<1x128xf32> to vector<8x128xf32>
    %388 = arith.mulf %386, %387 : vector<8x128xf32>
    %389 = vector.broadcast %366 : vector<1x128xf32> to vector<8x128xf32>
    %390 = arith.addf %388, %389 : vector<8x128xf32>
    %391 = vector.extract_strided_slice %390 {offsets = [0, 0], sizes = [1, 128], strides = [1, 1]} : vector<8x128xf32> to vector<1x128xf32>
    %c0_159 = arith.constant 0 : index
    %c0_160 = arith.constant 0 : index
    %c0_161 = arith.constant 0 : index
    %392 = vector.load %arg17[%c0_159, %c0_160, %c0_161] : memref<1x1x128xf32, #tpu.memory_space<vmem>>, vector<1x1x128xf32>
    %393 = vector.shape_cast %392 : vector<1x1x128xf32> to vector<1x128xf32>
    %394 = vector.shape_cast %391 : vector<1x128xf32> to vector<1x1x128xf32>
    tpu.vector_store %arg17[%c0_159, %c0_160, %c0_161], %394 {strides = array<i32>} : memref<1x1x128xf32, #tpu.memory_space<vmem>>, vector<1x1x128xf32>,
    return
  }
  func.func @transform_0(%arg0: i32) -> (i32, i32, i32) {
    %c0_i32 = arith.constant 0 : i32
    %c0_i32_0 = arith.constant 0 : i32
    %c0_i32_1 = arith.constant 0 : i32
    return %arg0, %c0_i32, %c0_i32_0 : i32, i32, i32
  }
  func.func @transform_1(%arg0: i32) -> (i32, i32, i32) {
    %c0_i32 = arith.constant 0 : i32
    %c0_i32_0 = arith.constant 0 : i32
    %c0_i32_1 = arith.constant 0 : i32
    return %arg0, %c0_i32, %c0_i32_0 : i32, i32, i32
  }
  func.func @transform_2(%arg0: i32) -> (i32, i32) {
    %c0_i32 = arith.constant 0 : i32
    %c0_i32_0 = arith.constant 0 : i32
    %c0_i32_1 = arith.constant 0 : i32
    return %c0_i32, %c0_i32_0 : i32, i32
  }
  func.func @transform_3(%arg0: i32) -> (i32, i32) {
    %c0_i32 = arith.constant 0 : i32
    %c0_i32_0 = arith.constant 0 : i32
    %c0_i32_1 = arith.constant 0 : i32
    return %c0_i32, %c0_i32_0 : i32, i32
  }
  func.func @transform_4(%arg0: i32) -> (i32, i32, i32) {
    %c0_i32 = arith.constant 0 : i32
    %c0_i32_0 = arith.constant 0 : i32
    %c0_i32_1 = arith.constant 0 : i32
    %c0_i32_2 = arith.constant 0 : i32
    return %c0_i32, %c0_i32_0, %c0_i32_1 : i32, i32, i32
  }
  func.func @transform_5(%arg0: i32) -> (i32, i32, i32) {
    %c0_i32 = arith.constant 0 : i32
    %c0_i32_0 = arith.constant 0 : i32
    %c0_i32_1 = arith.constant 0 : i32
    %c0_i32_2 = arith.constant 0 : i32
    return %c0_i32, %c0_i32_0, %c0_i32_1 : i32, i32, i32
  }
  func.func @transform_6(%arg0: i32) -> (i32, i32, i32) {
    %c0_i32 = arith.constant 0 : i32
    %c0_i32_0 = arith.constant 0 : i32
    %c0_i32_1 = arith.constant 0 : i32
    %c0_i32_2 = arith.constant 0 : i32
    return %c0_i32, %c0_i32_0, %c0_i32_1 : i32, i32, i32
  }
  func.func @transform_7(%arg0: i32) -> (i32, i32, i32) {
    %c0_i32 = arith.constant 0 : i32
    %c0_i32_0 = arith.constant 0 : i32
    %c0_i32_1 = arith.constant 0 : i32
    %c0_i32_2 = arith.constant 0 : i32
    return %c0_i32, %c0_i32_0, %c0_i32_1 : i32, i32, i32
  }
  func.func @transform_8(%arg0: i32) -> (i32, i32, i32) {
    %c0_i32 = arith.constant 0 : i32
    %c0_i32_0 = arith.constant 0 : i32
    %c0_i32_1 = arith.constant 0 : i32
    %c0_i32_2 = arith.constant 0 : i32
    return %c0_i32, %c0_i32_0, %c0_i32_1 : i32, i32, i32
  }
  func.func @transform_9(%arg0: i32) -> (i32, i32, i32) {
    %c0_i32 = arith.constant 0 : i32
    %c0_i32_0 = arith.constant 0 : i32
    %c0_i32_1 = arith.constant 0 : i32
    %c0_i32_2 = arith.constant 0 : i32
    return %c0_i32, %c0_i32_0, %c0_i32_1 : i32, i32, i32
  }
  func.func @transform_10(%arg0: i32) -> (i32, i32, i32) {
    %c0_i32 = arith.constant 0 : i32
    %c0_i32_0 = arith.constant 0 : i32
    %c0_i32_1 = arith.constant 0 : i32
    %c0_i32_2 = arith.constant 0 : i32
    return %c0_i32, %c0_i32_0, %c0_i32_1 : i32, i32, i32
  }
  func.func @transform_11(%arg0: i32) -> (i32, i32, i32) {
    %c0_i32 = arith.constant 0 : i32
    %c0_i32_0 = arith.constant 0 : i32
    %c0_i32_1 = arith.constant 0 : i32
    %c0_i32_2 = arith.constant 0 : i32
    return %c0_i32, %c0_i32_0, %c0_i32_1 : i32, i32, i32
  }
  func.func @transform_12(%arg0: i32) -> (i32, i32, i32) {
    %c0_i32 = arith.constant 0 : i32
    %c0_i32_0 = arith.constant 0 : i32
    %c0_i32_1 = arith.constant 0 : i32
    %c0_i32_2 = arith.constant 0 : i32
    return %c0_i32, %c0_i32_0, %c0_i32_1 : i32, i32, i32
  }
  func.func @transform_13(%arg0: i32) -> (i32, i32, i32) {
    %c0_i32 = arith.constant 0 : i32
    %c0_i32_0 = arith.constant 0 : i32
    %c0_i32_1 = arith.constant 0 : i32
    %c0_i32_2 = arith.constant 0 : i32
    return %c0_i32, %c0_i32_0, %c0_i32_1 : i32, i32, i32
  }
  func.func @transform_14(%arg0: i32) -> (i32, i32, i32) {
    %c0_i32 = arith.constant 0 : i32
    %c0_i32_0 = arith.constant 0 : i32
    %c0_i32_1 = arith.constant 0 : i32
    %c0_i32_2 = arith.constant 0 : i32
    return %c0_i32, %c0_i32_0, %c0_i32_1 : i32, i32, i32
  }
  func.func @transform_15(%arg0: i32) -> (i32, i32, i32) {
    %c0_i32 = arith.constant 0 : i32
    %c0_i32_0 = arith.constant 0 : i32
    %c0_i32_1 = arith.constant 0 : i32
    %c0_i32_2 = arith.constant 0 : i32
    return %c0_i32, %c0_i32_0, %c0_i32_1 : i32, i32, i32
  }
  func.func @transform_16(%arg0: i32) -> (i32, i32, i32) {
    %c0_i32 = arith.constant 0 : i32
    %c0_i32_0 = arith.constant 0 : i32
    %c0_i32_1 = arith.constant 0 : i32
    return %arg0, %c0_i32, %c0_i32_0 : i32, i32, i32
  }
}

</mosaic_0001>

<llo_original>
// kernel: tpu_custom_call.1
$region0: #{tpu_custom_call.1}
  #allocation0 [shape = 'u32[]', space=smem, size = 0x4, offset = 0x4, fixed_abs, tag = 'smem constant byte address 0x4 - core index']
  #allocation1 [shape = 'u32[144,128]{1,0:T(1,128)}', space=vmem, size = 0x12000, scoped, tag = 'internal scratch']
  %s0 = inlined_call_operand.hbm [shape: f32[2,1,8], index: 0, kind: input, shape index: {}]
  %s1 = inlined_call_operand.hbm [shape: f32[2,8,128], index: 1, kind: input, shape index: {}]
  %s2 = inlined_call_operand.vmem [shape: f32[1,128], index: 2, kind: input, shape index: {}]
  %s3 = inlined_call_operand.hbm [shape: f32[1,128], index: 3, kind: input, shape index: {}]
  %s4 = inlined_call_operand.hbm [shape: bf16[2,128,1536], index: 4, kind: input, shape index: {}]
  %s5 = inlined_call_operand.hbm [shape: f32[2,1,1536], index: 5, kind: input, shape index: {}]
  %s6 = inlined_call_operand.hbm [shape: bf16[2,512,128], index: 6, kind: input, shape index: {}]
  %s7 = inlined_call_operand.vmem [shape: f32[2,1,128], index: 7, kind: input, shape index: {}]
  %s8 = inlined_call_operand.vmem [shape: f32[2,1,128], index: 8, kind: input, shape index: {}]
  %s9 = inlined_call_operand.vmem [shape: f32[2,1,128], index: 9, kind: input, shape index: {}]
  %s10 = inlined_call_operand.hbm [shape: bf16[2,128,128], index: 10, kind: input, shape index: {}]
  %s11 = inlined_call_operand.vmem [shape: f32[2,1,128], index: 11, kind: input, shape index: {}]
  %s12 = inlined_call_operand.hbm [shape: bf16[2,128,128], index: 12, kind: input, shape index: {}]
  %s13 = inlined_call_operand.vmem [shape: f32[2,1,128], index: 13, kind: input, shape index: {}]
  %s14 = inlined_call_operand.vmem [shape: f32[2,1,128], index: 14, kind: input, shape index: {}]
  %s15 = inlined_call_operand.vmem [shape: f32[2,1,128], index: 15, kind: input, shape index: {}]
  %s16 = inlined_call_operand.hbm [shape: f32[2,1,128], index: 16, kind: output, shape index: {}]
  %s17 = sld [smem:[#allocation0]]
  $region129: #{tpu_custom_call.1} parent=0
    _
  %s19 = ssub.s32 1, %s17
  %s20 = scalar_select 0, %s19, %s17
  $region1: #{tpu_custom_call.1} parent=0
    #allocation2 [shape = 'u8[1024]{0}', space=vmem, size = 0x400, scoped, tag = 'input window, operand 0']
    #allocation3 [shape = 's32[2]{0}', space=sflag, size = 0x8, scoped, tag = 'scoped memory for tpu_custom_call.1']
    #allocation4 [shape = 's32[2]{0}', space=sflag, size = 0x8, scoped, tag = 'scoped memory for tpu_custom_call.1']
    #allocation5 [shape = 'u8[8192]{0}', space=vmem, size = 0x2000, scoped, tag = 'input window, operand 1']
    #allocation6 [shape = 's32[2]{0}', space=sflag, size = 0x8, scoped, tag = 'scoped memory for tpu_custom_call.1']
    #allocation7 [shape = 'u8[512]{0}', space=vmem, size = 0x400, scoped, tag = 'input window, operand 3, single buffered']
    #allocation8 [shape = 'u8[786432]{0}', space=vmem, size = 0xc0000, scoped, tag = 'input window, operand 4, single buffered']
    #allocation9 [shape = 's32[1]{0}', space=sflag, size = 0x4, scoped, tag = 'scoped memory for tpu_custom_call.1']
    #allocation10 [shape = 'u8[12288]{0}', space=vmem, size = 0x3000, scoped, tag = 'input window, operand 5, single buffered']
    #allocation11 [shape = 'u8[262144]{0}', space=vmem, size = 0x40000, scoped, tag = 'input window, operand 6, single buffered']
    #allocation12 [shape = 's32[1]{0}', space=sflag, size = 0x4, scoped, tag = 'scoped memory for tpu_custom_call.1']
    #allocation13 [shape = 'u8[65536]{0}', space=vmem, size = 0x10000, scoped, tag = 'input window, operand 10, single buffered']
    #allocation14 [shape = 'u8[65536]{0}', space=vmem, size = 0x10000, scoped, tag = 'input window, operand 12, single buffered']
    #allocation15 [shape = 's32[1]{0}', space=sflag, size = 0x4, scoped, tag = 'scoped memory for tpu_custom_call.1']
    #allocation16 [shape = 'u8[1024]{0}', space=vmem, size = 0x400, scoped, tag = 'output window, operand 0']
    %21 = vsyncpa [#allocation3], 0
    %s22 = scalar_lea.sflag [#allocation3], 1
    %23 = vsyncpa %s22, 0
    %24 = vsyncpa [#allocation6], 0
    %s25 = scalar_lea.sflag [#allocation6], 1
    %26 = vsyncpa %s25, 0
    %27 = vsyncpa [#allocation9], 0
    %28 = vsyncpa [#allocation12], 0
    %29 = vsyncpa [#allocation15], 0
    %30 = vsyncpa [#allocation4], 0
    %s31 = scalar_lea.sflag [#allocation4], 1
    %32 = vsyncpa %s31, 0
    loop: start=0, step=1, limit=4
    $region2: #{tpu_custom_call.1} parent=1 // loop_pre_header
      _
    $region3: #{tpu_custom_call.1} parent=1 // loop_header
      %s34 = sphi 0, %s38
      %p35 = scmp.ge.s32.totalorder %s34, 4
      %s44 = sphi 0, %s46
      %s47 = sphi 0, %s44
      %s48 = sphi 0, %s47
      %s64 = sphi 0, %s48
      %s70 = sphi 0, %s72
      %s73 = sphi 0, %s70
      %s74 = sphi 0, %s73
      %s90 = sphi 0, %s74
      %s94 = sphi 0, %s94
      %s96 = sphi 0, %s94
      %s97 = sphi 0, %s96
      %s111 = sphi 0, %s97
      %s115 = sphi 0, %s115
      %s117 = sphi 0, %s115
      %s118 = sphi 0, %s117
      %s132 = sphi 0, %s118
      %s136 = sphi 0, %s136
      %s138 = sphi 0, %s136
      %s139 = sphi 0, %s138
      %s153 = sphi 0, %s139
      %s157 = sphi 0, %s157
      %s159 = sphi 0, %s157
      %s160 = sphi 0, %s159
      %s174 = sphi 0, %s160
      %s178 = sphi 0, %s178
      %s180 = sphi 0, %s178
      %s181 = sphi 0, %s180
      %s195 = sphi 0, %s181
      %s199 = sphi 0, %s199
      %s201 = sphi 0, %s199
      %s202 = sphi 0, %s201
      %s216 = sphi 0, %s202
      %s220 = sphi 0, %s220
      %s222 = sphi 0, %s220
      %s223 = sphi 0, %s222
      %s237 = sphi 0, %s223
      %s241 = sphi 0, %s241
      %s243 = sphi 0, %s241
      %s244 = sphi 0, %s243
      %s258 = sphi 0, %s244
      %s262 = sphi 0, %s262
      %s264 = sphi 0, %s262
      %s265 = sphi 0, %s264
      %s279 = sphi 0, %s265
      %s283 = sphi 0, %s283
      %s285 = sphi 0, %s283
      %s286 = sphi 0, %s285
      %s300 = sphi 0, %s286
      %s304 = sphi 0, %s304
      %s306 = sphi 0, %s304
      %s307 = sphi 0, %s306
      %s321 = sphi 0, %s307
      %s325 = sphi 0, %s325
      %s327 = sphi 0, %s325
      %s328 = sphi 0, %s327
      %s342 = sphi 0, %s328
      %s346 = sphi 0, %s346
      %s348 = sphi 0, %s346
      %s349 = sphi 0, %s348
      %s363 = sphi 0, %s349
      %s367 = sphi 0, %s367
      %s369 = sphi 0, %s367
      %s370 = sphi 0, %s369
      %s384 = sphi 0, %s370
      %s390 = sphi 0, %s392
      %s393 = sphi 0, %s390
      %s394 = sphi 0, %s393
      %s410 = sphi 0, %s394
    $region4: #{tpu_custom_call.1} parent=1 // loop_header_branch
      %37 = sbr.rel (%p35) target = $region8
    $region5: #{tpu_custom_call.1} parent=1 // loop_body
      %s39 = ssub.s32 %s34, 1
      %s40 = ssub.s32 %s34, 2
      %s41 = sadd.s32 %s34, 1
      %s42 = ssub.s32 %s34, %s41
      %p43 = scmp.eq.s32.totalorder %s42, 0
      %s45 = sadd.s32 %s44, 1
      %s46 = scalar_select %p43, %s44, %s45
      %p49 = pneg %p43
      %p50 = scmp.eq.s32.totalorder %s34, 1
      %p51 = por %p49, %p50
      %p52 = scmp.ne.s32.totalorder %s44, %s47
      %p53 = scmp.eq.s32.totalorder %s34, 0
      %p54 = por %p52, %p53
      %p55 = scmp.ne.s32.totalorder %s44, %s47
      %p56 = scmp.eq.s32.totalorder %s39, 1
      %p57 = por %p55, %p56
      %p58 = scmp.ne.s32.totalorder %s47, %s48
      %p59 = scmp.eq.s32.totalorder %s39, 0
      %p60 = por %p58, %p59
      %p61 = scmp.ne.s32.totalorder %s47, %s48
      %p62 = scmp.eq.s32.totalorder %s40, 1
      %p63 = por %p61, %p62
      %p65 = scmp.ne.s32.totalorder %s48, %s64
      %p66 = scmp.eq.s32.totalorder %s40, 0
      %p67 = por %p65, %p66
      %s68 = ssub.s32 %s34, %s41
      %p69 = scmp.eq.s32.totalorder %s68, 0
      %s71 = sadd.s32 %s70, 1
      %s72 = scalar_select %p69, %s70, %s71
      %p75 = pneg %p69
      %p76 = scmp.eq.s32.totalorder %s34, 1
      %p77 = por %p75, %p76
      %p78 = scmp.ne.s32.totalorder %s70, %s73
      %p79 = scmp.eq.s32.totalorder %s34, 0
      %p80 = por %p78, %p79
      %p81 = scmp.ne.s32.totalorder %s70, %s73
      %p82 = scmp.eq.s32.totalorder %s39, 1
      %p83 = por %p81, %p82
      %p84 = scmp.ne.s32.totalorder %s73, %s74
      %p85 = scmp.eq.s32.totalorder %s39, 0
      %p86 = por %p84, %p85
      %p87 = scmp.ne.s32.totalorder %s73, %s74
      %p88 = scmp.eq.s32.totalorder %s40, 1
      %p89 = por %p87, %p88
      %p91 = scmp.ne.s32.totalorder %s74, %s90
      %p92 = scmp.eq.s32.totalorder %s40, 0
      %p93 = por %p91, %p92
      %s95 = sadd.s32 %s94, 1
      %p98 = scmp.eq.s32.totalorder %s34, 1
      %p99 = scmp.ne.s32.totalorder %s94, %s96
      %p100 = scmp.eq.s32.totalorder %s34, 0
      %p101 = por %p99, %p100
      %p102 = scmp.ne.s32.totalorder %s94, %s96
      %p103 = scmp.eq.s32.totalorder %s39, 1
      %p104 = por %p102, %p103
      %p105 = scmp.ne.s32.totalorder %s96, %s97
      %p106 = scmp.eq.s32.totalorder %s39, 0
      %p107 = por %p105, %p106
      %p108 = scmp.ne.s32.totalorder %s96, %s97
      %p109 = scmp.eq.s32.totalorder %s40, 1
      %p110 = por %p108, %p109
      %p112 = scmp.ne.s32.totalorder %s97, %s111
      %p113 = scmp.eq.s32.totalorder %s40, 0
      %p114 = por %p112, %p113
      %s116 = sadd.s32 %s115, 1
      %p119 = scmp.eq.s32.totalorder %s34, 1
      %p120 = scmp.ne.s32.totalorder %s115, %s117
      %p121 = scmp.eq.s32.totalorder %s34, 0
      %p122 = por %p120, %p121
      %p123 = scmp.ne.s32.totalorder %s115, %s117
      %p124 = scmp.eq.s32.totalorder %s39, 1
      %p125 = por %p123, %p124
      %p126 = scmp.ne.s32.totalorder %s117, %s118
      %p127 = scmp.eq.s32.totalorder %s39, 0
      %p128 = por %p126, %p127
      %p129 = scmp.ne.s32.totalorder %s117, %s118
      %p130 = scmp.eq.s32.totalorder %s40, 1
      %p131 = por %p129, %p130
      %p133 = scmp.ne.s32.totalorder %s118, %s132
      %p134 = scmp.eq.s32.totalorder %s40, 0
      %p135 = por %p133, %p134
      %s137 = sadd.s32 %s136, 1
      %p140 = scmp.eq.s32.totalorder %s34, 1
      %p141 = scmp.ne.s32.totalorder %s136, %s138
      %p142 = scmp.eq.s32.totalorder %s34, 0
      %p143 = por %p141, %p142
      %p144 = scmp.ne.s32.totalorder %s136, %s138
      %p145 = scmp.eq.s32.totalorder %s39, 1
      %p146 = por %p144, %p145
      %p147 = scmp.ne.s32.totalorder %s138, %s139
      %p148 = scmp.eq.s32.totalorder %s39, 0
      %p149 = por %p147, %p148
      %p150 = scmp.ne.s32.totalorder %s138, %s139
      %p151 = scmp.eq.s32.totalorder %s40, 1
      %p152 = por %p150, %p151
      %p154 = scmp.ne.s32.totalorder %s139, %s153
      %p155 = scmp.eq.s32.totalorder %s40, 0
      %p156 = por %p154, %p155
      %s158 = sadd.s32 %s157, 1
      %p161 = scmp.eq.s32.totalorder %s34, 1
      %p162 = scmp.ne.s32.totalorder %s157, %s159
      %p163 = scmp.eq.s32.totalorder %s34, 0
      %p164 = por %p162, %p163
      %p165 = scmp.ne.s32.totalorder %s157, %s159
      %p166 = scmp.eq.s32.totalorder %s39, 1
      %p167 = por %p165, %p166
      %p168 = scmp.ne.s32.totalorder %s159, %s160
      %p169 = scmp.eq.s32.totalorder %s39, 0
      %p170 = por %p168, %p169
      %p171 = scmp.ne.s32.totalorder %s159, %s160
      %p172 = scmp.eq.s32.totalorder %s40, 1
      %p173 = por %p171, %p172
      %p175 = scmp.ne.s32.totalorder %s160, %s174
      %p176 = scmp.eq.s32.totalorder %s40, 0
      %p177 = por %p175, %p176
      %s179 = sadd.s32 %s178, 1
      %p182 = scmp.eq.s32.totalorder %s34, 1
      %p183 = scmp.ne.s32.totalorder %s178, %s180
      %p184 = scmp.eq.s32.totalorder %s34, 0
      %p185 = por %p183, %p184
      %p186 = scmp.ne.s32.totalorder %s178, %s180
      %p187 = scmp.eq.s32.totalorder %s39, 1
      %p188 = por %p186, %p187
      %p189 = scmp.ne.s32.totalorder %s180, %s181
      %p190 = scmp.eq.s32.totalorder %s39, 0
      %p191 = por %p189, %p190
      %p192 = scmp.ne.s32.totalorder %s180, %s181
      %p193 = scmp.eq.s32.totalorder %s40, 1
      %p194 = por %p192, %p193
      %p196 = scmp.ne.s32.totalorder %s181, %s195
      %p197 = scmp.eq.s32.totalorder %s40, 0
      %p198 = por %p196, %p197
      %s200 = sadd.s32 %s199, 1
      %p203 = scmp.eq.s32.totalorder %s34, 1
      %p204 = scmp.ne.s32.totalorder %s199, %s201
      %p205 = scmp.eq.s32.totalorder %s34, 0
      %p206 = por %p204, %p205
      %p207 = scmp.ne.s32.totalorder %s199, %s201
      %p208 = scmp.eq.s32.totalorder %s39, 1
      %p209 = por %p207, %p208
      %p210 = scmp.ne.s32.totalorder %s201, %s202
      %p211 = scmp.eq.s32.totalorder %s39, 0
      %p212 = por %p210, %p211
      %p213 = scmp.ne.s32.totalorder %s201, %s202
      %p214 = scmp.eq.s32.totalorder %s40, 1
      %p215 = por %p213, %p214
      %p217 = scmp.ne.s32.totalorder %s202, %s216
      %p218 = scmp.eq.s32.totalorder %s40, 0
      %p219 = por %p217, %p218
      %s221 = sadd.s32 %s220, 1
      %p224 = scmp.eq.s32.totalorder %s34, 1
      %p225 = scmp.ne.s32.totalorder %s220, %s222
      %p226 = scmp.eq.s32.totalorder %s34, 0
      %p227 = por %p225, %p226
      %p228 = scmp.ne.s32.totalorder %s220, %s222
      %p229 = scmp.eq.s32.totalorder %s39, 1
      %p230 = por %p228, %p229
      %p231 = scmp.ne.s32.totalorder %s222, %s223
      %p232 = scmp.eq.s32.totalorder %s39, 0
      %p233 = por %p231, %p232
      %p234 = scmp.ne.s32.totalorder %s222, %s223
      %p235 = scmp.eq.s32.totalorder %s40, 1
      %p236 = por %p234, %p235
      %p238 = scmp.ne.s32.totalorder %s223, %s237
      %p239 = scmp.eq.s32.totalorder %s40, 0
      %p240 = por %p238, %p239
      %s242 = sadd.s32 %s241, 1
      %p245 = scmp.eq.s32.totalorder %s34, 1
      %p246 = scmp.ne.s32.totalorder %s241, %s243
      %p247 = scmp.eq.s32.totalorder %s34, 0
      %p248 = por %p246, %p247
      %p249 = scmp.ne.s32.totalorder %s241, %s243
      %p250 = scmp.eq.s32.totalorder %s39, 1
      %p251 = por %p249, %p250
      %p252 = scmp.ne.s32.totalorder %s243, %s244
      %p253 = scmp.eq.s32.totalorder %s39, 0
      %p254 = por %p252, %p253
      %p255 = scmp.ne.s32.totalorder %s243, %s244
      %p256 = scmp.eq.s32.totalorder %s40, 1
      %p257 = por %p255, %p256
      %p259 = scmp.ne.s32.totalorder %s244, %s258
      %p260 = scmp.eq.s32.totalorder %s40, 0
      %p261 = por %p259, %p260
      %s263 = sadd.s32 %s262, 1
      %p266 = scmp.eq.s32.totalorder %s34, 1
      %p267 = scmp.ne.s32.totalorder %s262, %s264
      %p268 = scmp.eq.s32.totalorder %s34, 0
      %p269 = por %p267, %p268
      %p270 = scmp.ne.s32.totalorder %s262, %s264
      %p271 = scmp.eq.s32.totalorder %s39, 1
      %p272 = por %p270, %p271
      %p273 = scmp.ne.s32.totalorder %s264, %s265
      %p274 = scmp.eq.s32.totalorder %s39, 0
      %p275 = por %p273, %p274
      %p276 = scmp.ne.s32.totalorder %s264, %s265
      %p277 = scmp.eq.s32.totalorder %s40, 1
      %p278 = por %p276, %p277
      %p280 = scmp.ne.s32.totalorder %s265, %s279
      %p281 = scmp.eq.s32.totalorder %s40, 0
      %p282 = por %p280, %p281
      %s284 = sadd.s32 %s283, 1
      %p287 = scmp.eq.s32.totalorder %s34, 1
      %p288 = scmp.ne.s32.totalorder %s283, %s285
      %p289 = scmp.eq.s32.totalorder %s34, 0
      %p290 = por %p288, %p289
      %p291 = scmp.ne.s32.totalorder %s283, %s285
      %p292 = scmp.eq.s32.totalorder %s39, 1
      %p293 = por %p291, %p292
      %p294 = scmp.ne.s32.totalorder %s285, %s286
      %p295 = scmp.eq.s32.totalorder %s39, 0
      %p296 = por %p294, %p295
      %p297 = scmp.ne.s32.totalorder %s285, %s286
      %p298 = scmp.eq.s32.totalorder %s40, 1
      %p299 = por %p297, %p298
      %p301 = scmp.ne.s32.totalorder %s286, %s300
      %p302 = scmp.eq.s32.totalorder %s40, 0
      %p303 = por %p301, %p302
      %s305 = sadd.s32 %s304, 1
      %p308 = scmp.eq.s32.totalorder %s34, 1
      %p309 = scmp.ne.s32.totalorder %s304, %s306
      %p310 = scmp.eq.s32.totalorder %s34, 0
      %p311 = por %p309, %p310
      %p312 = scmp.ne.s32.totalorder %s304, %s306
      %p313 = scmp.eq.s32.totalorder %s39, 1
      %p314 = por %p312, %p313
      %p315 = scmp.ne.s32.totalorder %s306, %s307
      %p316 = scmp.eq.s32.totalorder %s39, 0
      %p317 = por %p315, %p316
      %p318 = scmp.ne.s32.totalorder %s306, %s307
      %p319 = scmp.eq.s32.totalorder %s40, 1
      %p320 = por %p318, %p319
      %p322 = scmp.ne.s32.totalorder %s307, %s321
      %p323 = scmp.eq.s32.totalorder %s40, 0
      %p324 = por %p322, %p323
      %s326 = sadd.s32 %s325, 1
      %p329 = scmp.eq.s32.totalorder %s34, 1
      %p330 = scmp.ne.s32.totalorder %s325, %s327
      %p331 = scmp.eq.s32.totalorder %s34, 0
      %p332 = por %p330, %p331
      %p333 = scmp.ne.s32.totalorder %s325, %s327
      %p334 = scmp.eq.s32.totalorder %s39, 1
      %p335 = por %p333, %p334
      %p336 = scmp.ne.s32.totalorder %s327, %s328
      %p337 = scmp.eq.s32.totalorder %s39, 0
      %p338 = por %p336, %p337
      %p339 = scmp.ne.s32.totalorder %s327, %s328
      %p340 = scmp.eq.s32.totalorder %s40, 1
      %p341 = por %p339, %p340
      %p343 = scmp.ne.s32.totalorder %s328, %s342
      %p344 = scmp.eq.s32.totalorder %s40, 0
      %p345 = por %p343, %p344
      %s347 = sadd.s32 %s346, 1
      %p350 = scmp.eq.s32.totalorder %s34, 1
      %p351 = scmp.ne.s32.totalorder %s346, %s348
      %p352 = scmp.eq.s32.totalorder %s34, 0
      %p353 = por %p351, %p352
      %p354 = scmp.ne.s32.totalorder %s346, %s348
      %p355 = scmp.eq.s32.totalorder %s39, 1
      %p356 = por %p354, %p355
      %p357 = scmp.ne.s32.totalorder %s348, %s349
      %p358 = scmp.eq.s32.totalorder %s39, 0
      %p359 = por %p357, %p358
      %p360 = scmp.ne.s32.totalorder %s348, %s349
      %p361 = scmp.eq.s32.totalorder %s40, 1
      %p362 = por %p360, %p361
      %p364 = scmp.ne.s32.totalorder %s349, %s363
      %p365 = scmp.eq.s32.totalorder %s40, 0
      %p366 = por %p364, %p365
      %s368 = sadd.s32 %s367, 1
      %p371 = scmp.eq.s32.totalorder %s34, 1
      %p372 = scmp.ne.s32.totalorder %s367, %s369
      %p373 = scmp.eq.s32.totalorder %s34, 0
      %p374 = por %p372, %p373
      %p375 = scmp.ne.s32.totalorder %s367, %s369
      %p376 = scmp.eq.s32.totalorder %s39, 1
      %p377 = por %p375, %p376
      %p378 = scmp.ne.s32.totalorder %s369, %s370
      %p379 = scmp.eq.s32.totalorder %s39, 0
      %p380 = por %p378, %p379
      %p381 = scmp.ne.s32.totalorder %s369, %s370
      %p382 = scmp.eq.s32.totalorder %s40, 1
      %p383 = por %p381, %p382
      %p385 = scmp.ne.s32.totalorder %s370, %s384
      %p386 = scmp.eq.s32.totalorder %s40, 0
      %p387 = por %p385, %p386
      %s388 = ssub.s32 %s34, %s41
      %p389 = scmp.eq.s32.totalorder %s388, 0
      %s391 = sadd.s32 %s390, 1
      %s392 = scalar_select %p389, %s390, %s391
      %p395 = pneg %p389
      %p396 = scmp.eq.s32.totalorder %s34, 1
      %p397 = por %p395, %p396
      %p398 = scmp.ne.s32.totalorder %s390, %s393
      %p399 = scmp.eq.s32.totalorder %s34, 0
      %p400 = por %p398, %p399
      %p401 = scmp.ne.s32.totalorder %s390, %s393
      %p402 = scmp.eq.s32.totalorder %s39, 1
      %p403 = por %p401, %p402
      %p404 = scmp.ne.s32.totalorder %s393, %s394
      %p405 = scmp.eq.s32.totalorder %s39, 0
      %p406 = por %p404, %p405
      %p407 = scmp.ne.s32.totalorder %s393, %s394
      %p408 = scmp.eq.s32.totalorder %s40, 1
      %p409 = por %p407, %p408
      %p411 = scmp.ne.s32.totalorder %s394, %s410
      %p412 = scmp.eq.s32.totalorder %s40, 0
      %p413 = por %p411, %p412
      %p414 = scmp.le.s32.totalorder 1, %s34
      %p415 = scmp.lt.s32.totalorder %s34, 3
      %p416 = pnand %p414, %p415
      %p417 = pneg %p416
      // Predicated region
      $region9: #{tpu_custom_call.1} parent=5 // pred_check
        _
      $region10: #{tpu_custom_call.1} parent=5 // pred_check_branch
        %419 = sbr.rel (%p416) target = $region12
      $region11: #{tpu_custom_call.1} parent=5 // pred_region
        %s420 = ssub.s32 %s34, 1
        // Predicated region
        $region13: #{tpu_custom_call.1} parent=11 // pred_check
          %p421 = pneg %p107
        $region14: #{tpu_custom_call.1} parent=11 // pred_check_branch
          %423 = sbr.rel (%p421) target = $region16
        $region15: #{tpu_custom_call.1} parent=11 // pred_region
          _
        $region16: #{tpu_custom_call.1} parent=11 // pred_fallthru
          _
        // Predicated region
        $region17: #{tpu_custom_call.1} parent=11 // pred_check
          %p424 = pneg %p128
        $region18: #{tpu_custom_call.1} parent=11 // pred_check_branch
          %426 = sbr.rel (%p424) target = $region20
        $region19: #{tpu_custom_call.1} parent=11 // pred_region
          %s428 = ssub.s32 16, 16
          %429 = vsyncadd [#allocation6], %s428
          %s431 = sshll.u32 [#allocation7], 4
          %s432 = int_to_ptr.vmem [resolvable:$true] %s431
          %434 = dma.hbm_to_vmem [thread:$0]  %s3, 16, %s432, [#allocation6]
        $region20: #{tpu_custom_call.1} parent=11 // pred_fallthru
          _
        // Predicated region
        $region21: #{tpu_custom_call.1} parent=11 // pred_check
          %p435 = pneg %p149
        $region22: #{tpu_custom_call.1} parent=11 // pred_check_branch
          %437 = sbr.rel (%p435) target = $region24
        $region23: #{tpu_custom_call.1} parent=11 // pred_region
          %s439 = ssub.s32 24576, 24576
          %440 = vsyncadd [#allocation9], %s439
          %s441 = sshll.u32 [#allocation8], 4
          %s442 = int_to_ptr.vmem [resolvable:$true] %s441
          %447 = dma.hbm_to_vmem [thread:$0]  %s4, 24576, %s442, [#allocation9], 768, 768, 48
        $region24: #{tpu_custom_call.1} parent=11 // pred_fallthru
          _
        // Predicated region
        $region25: #{tpu_custom_call.1} parent=11 // pred_check
          %p448 = pneg %p170
        $region26: #{tpu_custom_call.1} parent=11 // pred_check_branch
          %450 = sbr.rel (%p448) target = $region28
        $region27: #{tpu_custom_call.1} parent=11 // pred_region
          %s452 = ssub.s32 384, 384
          %453 = vsyncadd [#allocation9], %s452
          %s454 = sshll.u32 [#allocation10], 4
          %s455 = int_to_ptr.vmem [resolvable:$true] %s454
          %460 = dma.hbm_to_vmem [thread:$0]  %s5, 384, %s455, [#allocation9], 192, 192, 12
        $region28: #{tpu_custom_call.1} parent=11 // pred_fallthru
          _
        // Predicated region
        $region29: #{tpu_custom_call.1} parent=11 // pred_check
          %p461 = pneg %p191
        $region30: #{tpu_custom_call.1} parent=11 // pred_check_branch
          %463 = sbr.rel (%p461) target = $region32
        $region31: #{tpu_custom_call.1} parent=11 // pred_region
          %s465 = ssub.s32 8192, 8192
          %466 = vsyncadd [#allocation12], %s465
          %s467 = sshll.u32 [#allocation11], 4
          %s468 = int_to_ptr.vmem [resolvable:$true] %s467
          %473 = dma.hbm_to_vmem [thread:$0]  %s6, 8192, %s468, [#allocation12], 64, 64, 4
        $region32: #{tpu_custom_call.1} parent=11 // pred_fallthru
          _
        // Predicated region
        $region33: #{tpu_custom_call.1} parent=11 // pred_check
          %p474 = pneg %p212
        $region34: #{tpu_custom_call.1} parent=11 // pred_check_branch
          %476 = sbr.rel (%p474) target = $region36
        $region35: #{tpu_custom_call.1} parent=11 // pred_region
          _
        $region36: #{tpu_custom_call.1} parent=11 // pred_fallthru
          _
        // Predicated region
        $region37: #{tpu_custom_call.1} parent=11 // pred_check
          %p477 = pneg %p233
        $region38: #{tpu_custom_call.1} parent=11 // pred_check_branch
          %479 = sbr.rel (%p477) target = $region40
        $region39: #{tpu_custom_call.1} parent=11 // pred_region
          _
        $region40: #{tpu_custom_call.1} parent=11 // pred_fallthru
          _
        // Predicated region
        $region41: #{tpu_custom_call.1} parent=11 // pred_check
          %p480 = pneg %p254
        $region42: #{tpu_custom_call.1} parent=11 // pred_check_branch
          %482 = sbr.rel (%p480) target = $region44
        $region43: #{tpu_custom_call.1} parent=11 // pred_region
          _
        $region44: #{tpu_custom_call.1} parent=11 // pred_fallthru
          _
        // Predicated region
        $region45: #{tpu_custom_call.1} parent=11 // pred_check
          %p483 = pneg %p275
        $region46: #{tpu_custom_call.1} parent=11 // pred_check_branch
          %485 = sbr.rel (%p483) target = $region48
        $region47: #{tpu_custom_call.1} parent=11 // pred_region
          %s487 = ssub.s32 2048, 2048
          %488 = vsyncadd [#allocation12], %s487
          %s489 = sshll.u32 [#allocation13], 4
          %s490 = int_to_ptr.vmem [resolvable:$true] %s489
          %495 = dma.hbm_to_vmem [thread:$0]  %s10, 2048, %s490, [#allocation12], 64, 64, 4
        $region48: #{tpu_custom_call.1} parent=11 // pred_fallthru
          _
        // Predicated region
        $region49: #{tpu_custom_call.1} parent=11 // pred_check
          %p496 = pneg %p296
        $region50: #{tpu_custom_call.1} parent=11 // pred_check_branch
          %498 = sbr.rel (%p496) target = $region52
        $region51: #{tpu_custom_call.1} parent=11 // pred_region
          _
        $region52: #{tpu_custom_call.1} parent=11 // pred_fallthru
          _
        // Predicated region
        $region53: #{tpu_custom_call.1} parent=11 // pred_check
          %p499 = pneg %p317
        $region54: #{tpu_custom_call.1} parent=11 // pred_check_branch
          %501 = sbr.rel (%p499) target = $region56
        $region55: #{tpu_custom_call.1} parent=11 // pred_region
          %s503 = ssub.s32 2048, 2048
          %504 = vsyncadd [#allocation15], %s503
          %s505 = sshll.u32 [#allocation14], 4
          %s506 = int_to_ptr.vmem [resolvable:$true] %s505
          %511 = dma.hbm_to_vmem [thread:$0]  %s12, 2048, %s506, [#allocation15], 64, 64, 4
        $region56: #{tpu_custom_call.1} parent=11 // pred_fallthru
          _
        // Predicated region
        $region57: #{tpu_custom_call.1} parent=11 // pred_check
          %p512 = pneg %p338
        $region58: #{tpu_custom_call.1} parent=11 // pred_check_branch
          %514 = sbr.rel (%p512) target = $region60
        $region59: #{tpu_custom_call.1} parent=11 // pred_region
          _
        $region60: #{tpu_custom_call.1} parent=11 // pred_fallthru
          _
        // Predicated region
        $region61: #{tpu_custom_call.1} parent=11 // pred_check
          %p515 = pneg %p359
        $region62: #{tpu_custom_call.1} parent=11 // pred_check_branch
          %517 = sbr.rel (%p515) target = $region64
        $region63: #{tpu_custom_call.1} parent=11 // pred_region
          _
        $region64: #{tpu_custom_call.1} parent=11 // pred_fallthru
          _
        // Predicated region
        $region65: #{tpu_custom_call.1} parent=11 // pred_check
          %p518 = pneg %p380
        $region66: #{tpu_custom_call.1} parent=11 // pred_check_branch
          %520 = sbr.rel (%p518) target = $region68
        $region67: #{tpu_custom_call.1} parent=11 // pred_region
          _
        $region68: #{tpu_custom_call.1} parent=11 // pred_fallthru
          _
      $region12: #{tpu_custom_call.1} parent=5 // pred_fallthru
        _
      %p521 = scmp.lt.s32.totalorder %s34, 2
      // Predicated region
      $region69: #{tpu_custom_call.1} parent=5 // pred_check
        %p522 = pneg %p521
      $region70: #{tpu_custom_call.1} parent=5 // pred_check_branch
        %524 = sbr.rel (%p522) target = $region72
      $region71: #{tpu_custom_call.1} parent=5 // pred_region
        // Predicated region
        $region73: #{tpu_custom_call.1} parent=71 // pred_check
          %p525 = pneg %p54
        $region74: #{tpu_custom_call.1} parent=71 // pred_check_branch
          %527 = sbr.rel (%p525) target = $region76
        $region75: #{tpu_custom_call.1} parent=71 // pred_region
          %s528 = sand.u32 %s44, 1
          %s529 = scalar_lea.sflag [#allocation3], %s528
          %s530 = sand.u32 %s44, 1
          %s531 = scalar_lea.vmem [#allocation2], %s530
          %s533 = ssub.s32 16, 16
          %534 = vsyncadd %s529, %s533
          %s535 = smul.addr %s34, 16
          %s536 = scalar_lea.hbm %s0, %s535
          %s538 = sshll.u32 %s531, 4
          %s539 = int_to_ptr.vmem [resolvable:$true] %s538
          %541 = dma.hbm_to_vmem [thread:$0]  %s536, 16, %s539, %s529
        $region76: #{tpu_custom_call.1} parent=71 // pred_fallthru
          _
        // Predicated region
        $region77: #{tpu_custom_call.1} parent=71 // pred_check
          %p542 = pneg %p80
        $region78: #{tpu_custom_call.1} parent=71 // pred_check_branch
          %544 = sbr.rel (%p542) target = $region80
        $region79: #{tpu_custom_call.1} parent=71 // pred_region
          %s545 = sand.u32 %s34, 1
          %s546 = scalar_lea.sflag [#allocation6], %s545
          %s547 = sand.u32 %s70, 1
          %s548 = smul.addr %s547, 8
          %s549 = scalar_lea.vmem [#allocation5], %s548
          %s551 = ssub.s32 128, 128
          %552 = vsyncadd %s546, %s551
          %s553 = smul.addr %s34, 128
          %s554 = scalar_lea.hbm %s1, %s553
          %s556 = sshll.u32 %s549, 4
          %s557 = int_to_ptr.vmem [resolvable:$true] %s556
          %559 = dma.hbm_to_vmem [thread:$0]  %s554, 128, %s557, %s546
        $region80: #{tpu_custom_call.1} parent=71 // pred_fallthru
          _
      $region72: #{tpu_custom_call.1} parent=5 // pred_fallthru
        _
      %p560 = scmp.le.s32.totalorder 1, %s34
      %p561 = scmp.lt.s32.totalorder %s34, 3
      %p562 = pnand %p560, %p561
      %p563 = pneg %p562
      // Predicated region
      $region81: #{tpu_custom_call.1} parent=5 // pred_check
        _
      $region82: #{tpu_custom_call.1} parent=5 // pred_check_branch
        %565 = sbr.rel (%p562) target = $region84
      $region83: #{tpu_custom_call.1} parent=5 // pred_region
        %s566 = ssub.s32 %s34, 1
        %s567 = sand.u32 %s47, 1
        %s568 = scalar_lea.sflag [#allocation3], %s567
        %s569 = sand.u32 %s47, 1
        %s570 = scalar_lea.vmem [#allocation2], %s569
        // Predicated region
        $region85: #{tpu_custom_call.1} parent=83 // pred_check
          %p571 = pneg %p60
        $region86: #{tpu_custom_call.1} parent=83 // pred_check_branch
          %573 = sbr.rel (%p571) target = $region88
        $region87: #{tpu_custom_call.1} parent=83 // pred_region
          %574 = dma.done %s568, 16
        $region88: #{tpu_custom_call.1} parent=83 // pred_fallthru
          _
        %s575 = sand.u32 %s39, 1
        %s576 = scalar_lea.sflag [#allocation6], %s575
        %s577 = sand.u32 %s73, 1
        %s578 = smul.addr %s577, 8
        %s579 = scalar_lea.vmem [#allocation5], %s578
        // Predicated region
        $region89: #{tpu_custom_call.1} parent=83 // pred_check
          %p580 = pneg %p86
        $region90: #{tpu_custom_call.1} parent=83 // pred_check_branch
          %582 = sbr.rel (%p580) target = $region92
        $region91: #{tpu_custom_call.1} parent=83 // pred_region
          %583 = dma.done %s576, 128
        $region92: #{tpu_custom_call.1} parent=83 // pred_fallthru
          _
        // Predicated region
        $region93: #{tpu_custom_call.1} parent=83 // pred_check
          %p584 = pneg %p128
        $region94: #{tpu_custom_call.1} parent=83 // pred_check_branch
          %586 = sbr.rel (%p584) target = $region96
        $region95: #{tpu_custom_call.1} parent=83 // pred_region
          %587 = dma.done [#allocation6], 16
        $region96: #{tpu_custom_call.1} parent=83 // pred_fallthru
          _
        // Predicated region
        $region97: #{tpu_custom_call.1} parent=83 // pred_check
          %p588 = pneg %p149
        $region98: #{tpu_custom_call.1} parent=83 // pred_check_branch
          %590 = sbr.rel (%p588) target = $region100
        $region99: #{tpu_custom_call.1} parent=83 // pred_region
          %591 = dma.done [#allocation9], 24576
        $region100: #{tpu_custom_call.1} parent=83 // pred_fallthru
          _
        // Predicated region
        $region101: #{tpu_custom_call.1} parent=83 // pred_check
          %p592 = pneg %p170
        $region102: #{tpu_custom_call.1} parent=83 // pred_check_branch
          %594 = sbr.rel (%p592) target = $region104
        $region103: #{tpu_custom_call.1} parent=83 // pred_region
          %595 = dma.done [#allocation9], 384
        $region104: #{tpu_custom_call.1} parent=83 // pred_fallthru
          _
        // Predicated region
        $region105: #{tpu_custom_call.1} parent=83 // pred_check
          %p596 = pneg %p191
        $region106: #{tpu_custom_call.1} parent=83 // pred_check_branch
          %598 = sbr.rel (%p596) target = $region108
        $region107: #{tpu_custom_call.1} parent=83 // pred_region
          %599 = dma.done [#allocation12], 8192
        $region108: #{tpu_custom_call.1} parent=83 // pred_fallthru
          _
        // Predicated region
        $region109: #{tpu_custom_call.1} parent=83 // pred_check
          %p600 = pneg %p275
        $region110: #{tpu_custom_call.1} parent=83 // pred_check_branch
          %602 = sbr.rel (%p600) target = $region112
        $region111: #{tpu_custom_call.1} parent=83 // pred_region
          %603 = dma.done [#allocation12], 2048
        $region112: #{tpu_custom_call.1} parent=83 // pred_fallthru
          _
        // Predicated region
        $region113: #{tpu_custom_call.1} parent=83 // pred_check
          %p604 = pneg %p317
        $region114: #{tpu_custom_call.1} parent=83 // pred_check_branch
          %606 = sbr.rel (%p604) target = $region116
        $region115: #{tpu_custom_call.1} parent=83 // pred_region
          %607 = dma.done [#allocation15], 2048
        $region116: #{tpu_custom_call.1} parent=83 // pred_fallthru
          _
        %s608 = sand.u32 %s47, 1
        %s609 = scalar_lea.sflag [#allocation3], %s608
        %s610 = sand.u32 %s47, 1
        %s611 = scalar_lea.vmem [#allocation2], %s610
        %p612 = pneg %p60
        %p613 = pneg %p57
        %s614 = sand.u32 %s39, 1
        %s615 = scalar_lea.sflag [#allocation6], %s614
        %s616 = sand.u32 %s73, 1
        %s617 = smul.addr %s616, 8
        %s618 = scalar_lea.vmem [#allocation5], %s617
        %p619 = pneg %p86
        %p620 = pneg %p83
        %p621 = pneg %p107
        %p622 = pneg %p104
        %p623 = pneg %p128
        %p624 = pneg %p125
        %p625 = pneg %p149
        %p626 = pneg %p146
        %p627 = pneg %p170
        %p628 = pneg %p167
        %p629 = pneg %p191
        %p630 = pneg %p188
        %p631 = pneg %p212
        %p632 = pneg %p209
        %p633 = pneg %p233
        %p634 = pneg %p230
        %p635 = pneg %p254
        %p636 = pneg %p251
        %p637 = pneg %p275
        %p638 = pneg %p272
        %p639 = pneg %p296
        %p640 = pneg %p293
        %p641 = pneg %p317
        %p642 = pneg %p314
        %p643 = pneg %p338
        %p644 = pneg %p335
        %p645 = pneg %p359
        %p646 = pneg %p356
        %p647 = pneg %p380
        %p648 = pneg %p377
        %p649 = pneg %p406
        %p650 = pneg %p403
        %s651 = sand.u32 %s393, 1
        %s652 = scalar_lea.sflag [#allocation4], %s651
        %s653 = sand.u32 %s393, 1
        %s654 = scalar_lea.vmem [#allocation16], %s653
        %v656 = vlaneseq
        %v657 = vand.u32 %v656, 127
        %vm658 = vcmp.lt.s32.totalorder %v657, 32
        %v659 = vld [vmem:[%s579] sm:$0xff]
        %v660 = vld [vmem:[%s2] sm:$0x1]
        %v661 = vld [vmem:[#allocation7] sm:$0x1]
        %662 = vadd.xlane.f32.xlu0 %v659
        %v663 = vpop.xlane.xlu0 %662
        %v664 = vmul.f32 %v663, 0.03125
        %v665 = vsub.f32 %v659, %v664
        %v666 = vsel %vm658, 1, 0
        %vm667 = vcmp.eq.s32.totalorder %v666, 1
        %v668 = vsel %vm667, %v665, 0.0
        %v669 = vmul.f32 %v668, %v668
        %670 = vadd.xlane.f32.xlu0 %v669
        %v671 = vpop.xlane.xlu0 %670
        %v672 = vmul.f32 %v671, 0.03125
        %v673 = vadd.f32 %v672, 1e-12
        %v674 = vrsqrt.pop %v673
        %v675 = vmul.f32 %v668, %v674
        %v677 = vlaneseq
        %v678 = vshrl.u32 %v677, 7
        %v679 = vsub.s32 0, %v678
        %v680 = vrot.slane %v660, %v679
        %v682 = vmul.f32 %v675, %v680
        %v684 = vlaneseq
        %v685 = vshrl.u32 %v684, 7
        %v686 = vsub.s32 0, %v685
        %v687 = vrot.slane %v661, %v686
        %v689 = vadd.f32 %v682, %v687
        %v690 = vld [vmem:[%s570] sm:$0x1]
        %v691 = vsub.f32 1.0, %v690
        %v692 = vmul.f32 %v691, -1e+09
        %v693 = vpack.c.bf16 %v689, %v689
        %v694 = vld [vmem:[#allocation8] sm:$0xff]
        %v695 = vld [vmem:[#allocation8 + $0x8] sm:$0xff]
        %v696 = vld [vmem:[#allocation8 + $0x10] sm:$0xff]
        %v697 = vld [vmem:[#allocation8 + $0x18] sm:$0xff]
        %v698 = vld [vmem:[#allocation8 + $0x20] sm:$0xff]
        %v699 = vld [vmem:[#allocation8 + $0x28] sm:$0xff]
        %v700 = vld [vmem:[#allocation8 + $0x30] sm:$0xff]
        %v701 = vld [vmem:[#allocation8 + $0x38] sm:$0xff]
        %v702 = vld [vmem:[#allocation8 + $0x40] sm:$0xff]
        %v703 = vld [vmem:[#allocation8 + $0x48] sm:$0xff]
        %v704 = vld [vmem:[#allocation8 + $0x50] sm:$0xff]
        %v705 = vld [vmem:[#allocation8 + $0x58] sm:$0xff]
        %v706 = vld [vmem:[#allocation8 + $0x60] sm:$0xff]
        %v707 = vld [vmem:[#allocation8 + $0x68] sm:$0xff]
        %v708 = vld [vmem:[#allocation8 + $0x70] sm:$0xff]
        %v709 = vld [vmem:[#allocation8 + $0x78] sm:$0xff]
        %v710 = vld [vmem:[#allocation8 + $0x80] sm:$0xff]
        %v711 = vld [vmem:[#allocation8 + $0x88] sm:$0xff]
        %v712 = vld [vmem:[#allocation8 + $0x90] sm:$0xff]
        %v713 = vld [vmem:[#allocation8 + $0x98] sm:$0xff]
        %v714 = vld [vmem:[#allocation8 + $0xa0] sm:$0xff]
        %v715 = vld [vmem:[#allocation8 + $0xa8] sm:$0xff]
        %v716 = vld [vmem:[#allocation8 + $0xb0] sm:$0xff]
        %v717 = vld [vmem:[#allocation8 + $0xb8] sm:$0xff]
        %v718 = vld [vmem:[#allocation8 + $0xc0] sm:$0xff]
        %v719 = vld [vmem:[#allocation8 + $0xc8] sm:$0xff]
        %v720 = vld [vmem:[#allocation8 + $0xd0] sm:$0xff]
        %v721 = vld [vmem:[#allocation8 + $0xd8] sm:$0xff]
        %v722 = vld [vmem:[#allocation8 + $0xe0] sm:$0xff]
        %v723 = vld [vmem:[#allocation8 + $0xe8] sm:$0xff]
        %v724 = vld [vmem:[#allocation8 + $0xf0] sm:$0xff]
        %v725 = vld [vmem:[#allocation8 + $0xf8] sm:$0xff]
        %v726 = vld [vmem:[#allocation8 + $0x100] sm:$0xff]
        %v727 = vld [vmem:[#allocation8 + $0x108] sm:$0xff]
        %v728 = vld [vmem:[#allocation8 + $0x110] sm:$0xff]
        %v729 = vld [vmem:[#allocation8 + $0x118] sm:$0xff]
        %v730 = vld [vmem:[#allocation8 + $0x120] sm:$0xff]
        %v731 = vld [vmem:[#allocation8 + $0x128] sm:$0xff]
        %v732 = vld [vmem:[#allocation8 + $0x130] sm:$0xff]
        %v733 = vld [vmem:[#allocation8 + $0x138] sm:$0xff]
        %v734 = vld [vmem:[#allocation8 + $0x140] sm:$0xff]
        %v735 = vld [vmem:[#allocation8 + $0x148] sm:$0xff]
        %v736 = vld [vmem:[#allocation8 + $0x150] sm:$0xff]
        %v737 = vld [vmem:[#allocation8 + $0x158] sm:$0xff]
        %v738 = vld [vmem:[#allocation8 + $0x160] sm:$0xff]
        %v739 = vld [vmem:[#allocation8 + $0x168] sm:$0xff]
        %v740 = vld [vmem:[#allocation8 + $0x170] sm:$0xff]
        %v741 = vld [vmem:[#allocation8 + $0x178] sm:$0xff]
        %v742 = vld [vmem:[#allocation8 + $0x180] sm:$0xff]
        %v743 = vld [vmem:[#allocation8 + $0x188] sm:$0xff]
        %v744 = vld [vmem:[#allocation8 + $0x190] sm:$0xff]
        %v745 = vld [vmem:[#allocation8 + $0x198] sm:$0xff]
        %v746 = vld [vmem:[#allocation8 + $0x1a0] sm:$0xff]
        %v747 = vld [vmem:[#allocation8 + $0x1a8] sm:$0xff]
        %v748 = vld [vmem:[#allocation8 + $0x1b0] sm:$0xff]
        %v749 = vld [vmem:[#allocation8 + $0x1b8] sm:$0xff]
        %v750 = vld [vmem:[#allocation8 + $0x1c0] sm:$0xff]
        %v751 = vld [vmem:[#allocation8 + $0x1c8] sm:$0xff]
        %v752 = vld [vmem:[#allocation8 + $0x1d0] sm:$0xff]
        %v753 = vld [vmem:[#allocation8 + $0x1d8] sm:$0xff]
        %v754 = vld [vmem:[#allocation8 + $0x1e0] sm:$0xff]
        %v755 = vld [vmem:[#allocation8 + $0x1e8] sm:$0xff]
        %v756 = vld [vmem:[#allocation8 + $0x1f0] sm:$0xff]
        %v757 = vld [vmem:[#allocation8 + $0x1f8] sm:$0xff]
        %v758 = vld [vmem:[#allocation8 + $0x200] sm:$0xff]
        %v759 = vld [vmem:[#allocation8 + $0x208] sm:$0xff]
        %v760 = vld [vmem:[#allocation8 + $0x210] sm:$0xff]
        %v761 = vld [vmem:[#allocation8 + $0x218] sm:$0xff]
        %v762 = vld [vmem:[#allocation8 + $0x220] sm:$0xff]
        %v763 = vld [vmem:[#allocation8 + $0x228] sm:$0xff]
        %v764 = vld [vmem:[#allocation8 + $0x230] sm:$0xff]
        %v765 = vld [vmem:[#allocation8 + $0x238] sm:$0xff]
        %v766 = vld [vmem:[#allocation8 + $0x240] sm:$0xff]
        %v767 = vld [vmem:[#allocation8 + $0x248] sm:$0xff]
        %v768 = vld [vmem:[#allocation8 + $0x250] sm:$0xff]
        %v769 = vld [vmem:[#allocation8 + $0x258] sm:$0xff]
        %v770 = vld [vmem:[#allocation8 + $0x260] sm:$0xff]
        %v771 = vld [vmem:[#allocation8 + $0x268] sm:$0xff]
        %v772 = vld [vmem:[#allocation8 + $0x270] sm:$0xff]
        %v773 = vld [vmem:[#allocation8 + $0x278] sm:$0xff]
        %v774 = vld [vmem:[#allocation8 + $0x280] sm:$0xff]
        %v775 = vld [vmem:[#allocation8 + $0x288] sm:$0xff]
        %v776 = vld [vmem:[#allocation8 + $0x290] sm:$0xff]
        %v777 = vld [vmem:[#allocation8 + $0x298] sm:$0xff]
        %v778 = vld [vmem:[#allocation8 + $0x2a0] sm:$0xff]
        %v779 = vld [vmem:[#allocation8 + $0x2a8] sm:$0xff]
        %v780 = vld [vmem:[#allocation8 + $0x2b0] sm:$0xff]
        %v781 = vld [vmem:[#allocation8 + $0x2b8] sm:$0xff]
        %v782 = vld [vmem:[#allocation8 + $0x2c0] sm:$0xff]
        %v783 = vld [vmem:[#allocation8 + $0x2c8] sm:$0xff]
        %v784 = vld [vmem:[#allocation8 + $0x2d0] sm:$0xff]
        %v785 = vld [vmem:[#allocation8 + $0x2d8] sm:$0xff]
        %v786 = vld [vmem:[#allocation8 + $0x2e0] sm:$0xff]
        %v787 = vld [vmem:[#allocation8 + $0x2e8] sm:$0xff]
        %v788 = vld [vmem:[#allocation8 + $0x2f0] sm:$0xff]
        %v789 = vld [vmem:[#allocation8 + $0x2f8] sm:$0xff]
        %v790 = vld [vmem:[#allocation10] sm:$0xff]
        %v791 = vld [vmem:[#allocation10 + $0x8] sm:$0xf]
        %v794 = vlaneseq
        %v795 = vshrl.u32 %v794, 7
        %v796 = vsub.s32 0, %v795
        %v797 = vrot.slane %v790, %v796
        %v798 = vlaneseq
        %v799 = vshrl.u32 %v798, 7
        %v800 = vsub.s32 1, %v799
        %v801 = vrot.slane %v790, %v800
        %v802 = vlaneseq
        %v803 = vshrl.u32 %v802, 7
        %v804 = vsub.s32 2, %v803
        %v805 = vrot.slane %v790, %v804
        %v806 = vlaneseq
        %v807 = vshrl.u32 %v806, 7
        %v808 = vsub.s32 3, %v807
        %v809 = vrot.slane %v790, %v808
        %v810 = vlaneseq
        %v811 = vshrl.u32 %v810, 7
        %v812 = vsub.s32 4, %v811
        %v813 = vrot.slane %v790, %v812
        %v814 = vlaneseq
        %v815 = vshrl.u32 %v814, 7
        %v816 = vsub.s32 5, %v815
        %v817 = vrot.slane %v790, %v816
        %v818 = vlaneseq
        %v819 = vshrl.u32 %v818, 7
        %v820 = vsub.s32 6, %v819
        %v821 = vrot.slane %v790, %v820
        %v822 = vlaneseq
        %v823 = vshrl.u32 %v822, 7
        %v824 = vsub.s32 7, %v823
        %v825 = vrot.slane %v790, %v824
        %v826 = vlaneseq
        %v827 = vshrl.u32 %v826, 7
        %v828 = vsub.s32 0, %v827
        %v829 = vrot.slane %v791, %v828
        %v830 = vlaneseq
        %v831 = vshrl.u32 %v830, 7
        %v832 = vsub.s32 1, %v831
        %v833 = vrot.slane %v791, %v832
        %v834 = vlaneseq
        %v835 = vshrl.u32 %v834, 7
        %v836 = vsub.s32 2, %v835
        %v837 = vrot.slane %v791, %v836
        %v838 = vlaneseq
        %v839 = vshrl.u32 %v838, 7
        %v840 = vsub.s32 3, %v839
        %v841 = vrot.slane %v791, %v840
        %v950 = vunpack.c.l.b16 %v694
        %v951 = vunpack.c.h.b16 %v694
        %v952 = vunpack.c.l.b16 %v695
        %v953 = vunpack.c.h.b16 %v695
        %v954 = vunpack.c.l.b16 %v696
        %v955 = vunpack.c.h.b16 %v696
        %v956 = vunpack.c.l.b16 %v697
        %v957 = vunpack.c.h.b16 %v697
        %v958 = vunpack.c.l.b16 %v698
        %v959 = vunpack.c.h.b16 %v698
        %v960 = vunpack.c.l.b16 %v699
        %v961 = vunpack.c.h.b16 %v699
        %v962 = vunpack.c.l.b16 %v700
        %v963 = vunpack.c.h.b16 %v700
        %v964 = vunpack.c.l.b16 %v701
        %v965 = vunpack.c.h.b16 %v701
        %v966 = vunpack.c.l.b16 %v702
        %v967 = vunpack.c.h.b16 %v702
        %v968 = vunpack.c.l.b16 %v703
        %v969 = vunpack.c.h.b16 %v703
        %v970 = vunpack.c.l.b16 %v704
        %v971 = vunpack.c.h.b16 %v704
        %v972 = vunpack.c.l.b16 %v705
        %v973 = vunpack.c.h.b16 %v705
        %v974 = vunpack.c.l.b16 %v706
        %v975 = vunpack.c.h.b16 %v706
        %v976 = vunpack.c.l.b16 %v707
        %v977 = vunpack.c.h.b16 %v707
        %v978 = vunpack.c.l.b16 %v708
        %v979 = vunpack.c.h.b16 %v708
        %v980 = vunpack.c.l.b16 %v709
        %v981 = vunpack.c.h.b16 %v709
        %v982 = vunpack.c.l.b16 %v710
        %v983 = vunpack.c.h.b16 %v710
        %v984 = vunpack.c.l.b16 %v711
        %v985 = vunpack.c.h.b16 %v711
        %v986 = vunpack.c.l.b16 %v712
        %v987 = vunpack.c.h.b16 %v712
        %v988 = vunpack.c.l.b16 %v713
        %v989 = vunpack.c.h.b16 %v713
        %v990 = vunpack.c.l.b16 %v714
        %v991 = vunpack.c.h.b16 %v714
        %v992 = vunpack.c.l.b16 %v715
        %v993 = vunpack.c.h.b16 %v715
        %v994 = vunpack.c.l.b16 %v716
        %v995 = vunpack.c.h.b16 %v716
        %v996 = vunpack.c.l.b16 %v717
        %v997 = vunpack.c.h.b16 %v717
        %v998 = vunpack.c.l.b16 %v718
        %v999 = vunpack.c.h.b16 %v718
        %v1000 = vunpack.c.l.b16 %v719
        %v1001 = vunpack.c.h.b16 %v719
        %v1002 = vunpack.c.l.b16 %v720
        %v1003 = vunpack.c.h.b16 %v720
        %v1004 = vunpack.c.l.b16 %v721
        %v1005 = vunpack.c.h.b16 %v721
        %v1006 = vunpack.c.l.b16 %v722
        %v1007 = vunpack.c.h.b16 %v722
        %v1008 = vunpack.c.l.b16 %v723
        %v1009 = vunpack.c.h.b16 %v723
        %v1010 = vunpack.c.l.b16 %v724
        %v1011 = vunpack.c.h.b16 %v724
        %v1012 = vunpack.c.l.b16 %v725
        %v1013 = vunpack.c.h.b16 %v725
        %v1014 = vunpack.c.l.b16 %v726
        %v1015 = vunpack.c.h.b16 %v726
        %v1016 = vunpack.c.l.b16 %v727
        %v1017 = vunpack.c.h.b16 %v727
        %v1018 = vunpack.c.l.b16 %v728
        %v1019 = vunpack.c.h.b16 %v728
        %v1020 = vunpack.c.l.b16 %v729
        %v1021 = vunpack.c.h.b16 %v729
        %v1022 = vunpack.c.l.b16 %v730
        %v1023 = vunpack.c.h.b16 %v730
        %v1024 = vunpack.c.l.b16 %v731
        %v1025 = vunpack.c.h.b16 %v731
        %v1026 = vunpack.c.l.b16 %v732
        %v1027 = vunpack.c.h.b16 %v732
        %v1028 = vunpack.c.l.b16 %v733
        %v1029 = vunpack.c.h.b16 %v733
        %v1030 = vunpack.c.l.b16 %v734
        %v1031 = vunpack.c.h.b16 %v734
        %v1032 = vunpack.c.l.b16 %v735
        %v1033 = vunpack.c.h.b16 %v735
        %v1034 = vunpack.c.l.b16 %v736
        %v1035 = vunpack.c.h.b16 %v736
        %v1036 = vunpack.c.l.b16 %v737
        %v1037 = vunpack.c.h.b16 %v737
        %v1038 = vunpack.c.l.b16 %v738
        %v1039 = vunpack.c.h.b16 %v738
        %v1040 = vunpack.c.l.b16 %v739
        %v1041 = vunpack.c.h.b16 %v739
        %v1042 = vunpack.c.l.b16 %v740
        %v1043 = vunpack.c.h.b16 %v740
        %v1044 = vunpack.c.l.b16 %v741
        %v1045 = vunpack.c.h.b16 %v741
        %v1046 = vunpack.c.l.b16 %v742
        %v1047 = vunpack.c.h.b16 %v742
        %v1048 = vunpack.c.l.b16 %v743
        %v1049 = vunpack.c.h.b16 %v743
        %v1050 = vunpack.c.l.b16 %v744
        %v1051 = vunpack.c.h.b16 %v744
        %v1052 = vunpack.c.l.b16 %v745
        %v1053 = vunpack.c.h.b16 %v745
        %v1054 = vunpack.c.l.b16 %v746
        %v1055 = vunpack.c.h.b16 %v746
        %v1056 = vunpack.c.l.b16 %v747
        %v1057 = vunpack.c.h.b16 %v747
        %v1058 = vunpack.c.l.b16 %v748
        %v1059 = vunpack.c.h.b16 %v748
        %v1060 = vunpack.c.l.b16 %v749
        %v1061 = vunpack.c.h.b16 %v749
        %v1062 = vunpack.c.l.b16 %v750
        %v1063 = vunpack.c.h.b16 %v750
        %v1064 = vunpack.c.l.b16 %v751
        %v1065 = vunpack.c.h.b16 %v751
        %v1066 = vunpack.c.l.b16 %v752
        %v1067 = vunpack.c.h.b16 %v752
        %v1068 = vunpack.c.l.b16 %v753
        %v1069 = vunpack.c.h.b16 %v753
        %v1070 = vunpack.c.l.b16 %v754
        %v1071 = vunpack.c.h.b16 %v754
        %v1072 = vunpack.c.l.b16 %v755
        %v1073 = vunpack.c.h.b16 %v755
        %v1074 = vunpack.c.l.b16 %v756
        %v1075 = vunpack.c.h.b16 %v756
        %v1076 = vunpack.c.l.b16 %v757
        %v1077 = vunpack.c.h.b16 %v757
        %v1078 = vunpack.c.l.b16 %v758
        %v1079 = vunpack.c.h.b16 %v758
        %v1080 = vunpack.c.l.b16 %v759
        %v1081 = vunpack.c.h.b16 %v759
        %v1082 = vunpack.c.l.b16 %v760
        %v1083 = vunpack.c.h.b16 %v760
        %v1084 = vunpack.c.l.b16 %v761
        %v1085 = vunpack.c.h.b16 %v761
        %v1086 = vunpack.c.l.b16 %v762
        %v1087 = vunpack.c.h.b16 %v762
        %v1088 = vunpack.c.l.b16 %v763
        %v1089 = vunpack.c.h.b16 %v763
        %v1090 = vunpack.c.l.b16 %v764
        %v1091 = vunpack.c.h.b16 %v764
        %v1092 = vunpack.c.l.b16 %v765
        %v1093 = vunpack.c.h.b16 %v765
        %v1094 = vunpack.c.l.b16 %v766
        %v1095 = vunpack.c.h.b16 %v766
        %v1096 = vunpack.c.l.b16 %v767
        %v1097 = vunpack.c.h.b16 %v767
        %v1098 = vunpack.c.l.b16 %v768
        %v1099 = vunpack.c.h.b16 %v768
        %v1100 = vunpack.c.l.b16 %v769
        %v1101 = vunpack.c.h.b16 %v769
        %v1102 = vunpack.c.l.b16 %v770
        %v1103 = vunpack.c.h.b16 %v770
        %v1104 = vunpack.c.l.b16 %v771
        %v1105 = vunpack.c.h.b16 %v771
        %v1106 = vunpack.c.l.b16 %v772
        %v1107 = vunpack.c.h.b16 %v772
        %v1108 = vunpack.c.l.b16 %v773
        %v1109 = vunpack.c.h.b16 %v773
        %v1110 = vunpack.c.l.b16 %v774
        %v1111 = vunpack.c.h.b16 %v774
        %v1112 = vunpack.c.l.b16 %v775
        %v1113 = vunpack.c.h.b16 %v775
        %v1114 = vunpack.c.l.b16 %v776
        %v1115 = vunpack.c.h.b16 %v776
        %v1116 = vunpack.c.l.b16 %v777
        %v1117 = vunpack.c.h.b16 %v777
        %v1118 = vunpack.c.l.b16 %v778
        %v1119 = vunpack.c.h.b16 %v778
        %v1120 = vunpack.c.l.b16 %v779
        %v1121 = vunpack.c.h.b16 %v779
        %v1122 = vunpack.c.l.b16 %v780
        %v1123 = vunpack.c.h.b16 %v780
        %v1124 = vunpack.c.l.b16 %v781
        %v1125 = vunpack.c.h.b16 %v781
        %v1126 = vunpack.c.l.b16 %v782
        %v1127 = vunpack.c.h.b16 %v782
        %v1128 = vunpack.c.l.b16 %v783
        %v1129 = vunpack.c.h.b16 %v783
        %v1130 = vunpack.c.l.b16 %v784
        %v1131 = vunpack.c.h.b16 %v784
        %v1132 = vunpack.c.l.b16 %v785
        %v1133 = vunpack.c.h.b16 %v785
        %v1134 = vunpack.c.l.b16 %v786
        %v1135 = vunpack.c.h.b16 %v786
        %v1136 = vunpack.c.l.b16 %v787
        %v1137 = vunpack.c.h.b16 %v787
        %v1138 = vunpack.c.l.b16 %v788
        %v1139 = vunpack.c.h.b16 %v788
        %v1140 = vunpack.c.l.b16 %v789
        %v1141 = vunpack.c.h.b16 %v789
        %v1142 = vpack.c.b16 %v962, %v950
        %v1143 = vpack.c.b16 %v963, %v951
        %v1144 = vpack.c.b16 %v964, %v952
        %v1145 = vpack.c.b16 %v965, %v953
        %v1146 = vpack.c.b16 %v966, %v954
        %v1147 = vpack.c.b16 %v967, %v955
        %v1148 = vpack.c.b16 %v968, %v956
        %v1149 = vpack.c.b16 %v969, %v957
        %v1150 = vpack.c.b16 %v970, %v958
        %v1151 = vpack.c.b16 %v971, %v959
        %v1152 = vpack.c.b16 %v972, %v960
        %v1153 = vpack.c.b16 %v973, %v961
        %v1154 = vpack.c.b16 %v986, %v974
        %v1155 = vpack.c.b16 %v987, %v975
        %v1156 = vpack.c.b16 %v988, %v976
        %v1157 = vpack.c.b16 %v989, %v977
        %v1158 = vpack.c.b16 %v990, %v978
        %v1159 = vpack.c.b16 %v991, %v979
        %v1160 = vpack.c.b16 %v992, %v980
        %v1161 = vpack.c.b16 %v993, %v981
        %v1162 = vpack.c.b16 %v994, %v982
        %v1163 = vpack.c.b16 %v995, %v983
        %v1164 = vpack.c.b16 %v996, %v984
        %v1165 = vpack.c.b16 %v997, %v985
        %v1166 = vpack.c.b16 %v1010, %v998
        %v1167 = vpack.c.b16 %v1011, %v999
        %v1168 = vpack.c.b16 %v1012, %v1000
        %v1169 = vpack.c.b16 %v1013, %v1001
        %v1170 = vpack.c.b16 %v1014, %v1002
        %v1171 = vpack.c.b16 %v1015, %v1003
        %v1172 = vpack.c.b16 %v1016, %v1004
        %v1173 = vpack.c.b16 %v1017, %v1005
        %v1174 = vpack.c.b16 %v1018, %v1006
        %v1175 = vpack.c.b16 %v1019, %v1007
        %v1176 = vpack.c.b16 %v1020, %v1008
        %v1177 = vpack.c.b16 %v1021, %v1009
        %v1178 = vpack.c.b16 %v1034, %v1022
        %v1179 = vpack.c.b16 %v1035, %v1023
        %v1180 = vpack.c.b16 %v1036, %v1024
        %v1181 = vpack.c.b16 %v1037, %v1025
        %v1182 = vpack.c.b16 %v1038, %v1026
        %v1183 = vpack.c.b16 %v1039, %v1027
        %v1184 = vpack.c.b16 %v1040, %v1028
        %v1185 = vpack.c.b16 %v1041, %v1029
        %v1186 = vpack.c.b16 %v1042, %v1030
        %v1187 = vpack.c.b16 %v1043, %v1031
        %v1188 = vpack.c.b16 %v1044, %v1032
        %v1189 = vpack.c.b16 %v1045, %v1033
        %v1190 = vpack.c.b16 %v1058, %v1046
        %v1191 = vpack.c.b16 %v1059, %v1047
        %v1192 = vpack.c.b16 %v1060, %v1048
        %v1193 = vpack.c.b16 %v1061, %v1049
        %v1194 = vpack.c.b16 %v1062, %v1050
        %v1195 = vpack.c.b16 %v1063, %v1051
        %v1196 = vpack.c.b16 %v1064, %v1052
        %v1197 = vpack.c.b16 %v1065, %v1053
        %v1198 = vpack.c.b16 %v1066, %v1054
        %v1199 = vpack.c.b16 %v1067, %v1055
        %v1200 = vpack.c.b16 %v1068, %v1056
        %v1201 = vpack.c.b16 %v1069, %v1057
        %v1202 = vpack.c.b16 %v1082, %v1070
        %v1203 = vpack.c.b16 %v1083, %v1071
        %v1204 = vpack.c.b16 %v1084, %v1072
        %v1205 = vpack.c.b16 %v1085, %v1073
        %v1206 = vpack.c.b16 %v1086, %v1074
        %v1207 = vpack.c.b16 %v1087, %v1075
        %v1208 = vpack.c.b16 %v1088, %v1076
        %v1209 = vpack.c.b16 %v1089, %v1077
        %v1210 = vpack.c.b16 %v1090, %v1078
        %v1211 = vpack.c.b16 %v1091, %v1079
        %v1212 = vpack.c.b16 %v1092, %v1080
        %v1213 = vpack.c.b16 %v1093, %v1081
        %v1214 = vpack.c.b16 %v1106, %v1094
        %v1215 = vpack.c.b16 %v1107, %v1095
        %v1216 = vpack.c.b16 %v1108, %v1096
        %v1217 = vpack.c.b16 %v1109, %v1097
        %v1218 = vpack.c.b16 %v1110, %v1098
        %v1219 = vpack.c.b16 %v1111, %v1099
        %v1220 = vpack.c.b16 %v1112, %v1100
        %v1221 = vpack.c.b16 %v1113, %v1101
        %v1222 = vpack.c.b16 %v1114, %v1102
        %v1223 = vpack.c.b16 %v1115, %v1103
        %v1224 = vpack.c.b16 %v1116, %v1104
        %v1225 = vpack.c.b16 %v1117, %v1105
        %v1226 = vpack.c.b16 %v1130, %v1118
        %v1227 = vpack.c.b16 %v1131, %v1119
        %v1228 = vpack.c.b16 %v1132, %v1120
        %v1229 = vpack.c.b16 %v1133, %v1121
        %v1230 = vpack.c.b16 %v1134, %v1122
        %v1231 = vpack.c.b16 %v1135, %v1123
        %v1232 = vpack.c.b16 %v1136, %v1124
        %v1233 = vpack.c.b16 %v1137, %v1125
        %v1234 = vpack.c.b16 %v1138, %v1126
        %v1235 = vpack.c.b16 %v1139, %v1127
        %v1236 = vpack.c.b16 %v1140, %v1128
        %v1237 = vpack.c.b16 %v1141, %v1129
        %1334 = vmatprep.subr.bf16.mxu0 %v1143
        %1335 = vmatpush1.bf16.msra.mxu0 %v1142
        %1336 = vmatprep.subr.bf16.mxu0 %v1155
        %1337 = vmatpush1.bf16.msra.mxu0 %v1154
        %1338 = vmatprep.subr.bf16.mxu0 %v1167
        %1339 = vmatpush1.bf16.msra.mxu0 %v1166
        %1340 = vmatprep.subr.bf16.mxu0 %v1179
        %1341 = vmatpush1.bf16.msra.mxu0 %v1178
        %1342 = vmatprep.subr.bf16.mxu0 %v1191
        %1343 = vmatpush1.bf16.msra.mxu0 %v1190
        %1344 = vmatprep.subr.bf16.mxu0 %v1203
        %1345 = vmatpush1.bf16.msra.mxu0 %v1202
        %1346 = vmatprep.subr.bf16.mxu0 %v1215
        %1347 = vmatpush1.bf16.msra.mxu0 %v1214
        %1348 = vmatprep.subr.bf16.mxu0 %v1227
        %1349 = vmatpush1.bf16.msra.mxu0 %v1226
        %1350 = vmatprep.subr.bf16.mxu0 0
        %1351 = vmatpush1.bf16.msra.mxu0 0
        %1352 = vmatprep.subr.bf16.mxu0 0
        %1353 = vmatpush1.bf16.msra.mxu0 0
        %1354 = vmatprep.subr.bf16.mxu0 0
        %1355 = vmatpush1.bf16.msra.mxu0 0
        %1356 = vmatprep.subr.bf16.mxu0 0
        %1357 = vmatpush1.bf16.msra.mxu0 0
        %1358 = vmatprep.subr.bf16.mxu0 0
        %1359 = vmatpush1.bf16.msra.mxu0 0
        %1360 = vmatprep.subr.bf16.mxu0 0
        %1361 = vmatpush1.bf16.msra.mxu0 0
        %1362 = vmatprep.subr.bf16.mxu0 0
        %1363 = vmatpush1.bf16.msra.mxu0 0
        %1364 = vmatprep.subr.bf16.mxu0 0
        %1365 = vmatpush1.bf16.msra.mxu0 0
        %1366 = vmatprep.mubr.bf16.mxu0 0
        %1367 = vmatmul.mubr.bf16.gmra.mrb[0].mxu0 %v693
        %v1368 = vpop.f32.mrb[0].mxu0
        %v1369 = vadd.f32 %v797, %v1368
        %v1370 = vpop.f32.mrb[0].mxu0
        %v1371 = vadd.f32 %v801, %v1370
        %v1372 = vpop.f32.mrb[0].mxu0
        %v1373 = vpop.f32.mrb[0].mxu0
        %1374 = vdwg.mxu0
        %1375 = vmatprep.subr.bf16.mxu0 %v1145
        %1376 = vmatpush1.bf16.msra.mxu0 %v1144
        %1377 = vmatprep.subr.bf16.mxu0 %v1157
        %1378 = vmatpush1.bf16.msra.mxu0 %v1156
        %1379 = vmatprep.subr.bf16.mxu0 %v1169
        %1380 = vmatpush1.bf16.msra.mxu0 %v1168
        %1381 = vmatprep.subr.bf16.mxu0 %v1181
        %1382 = vmatpush1.bf16.msra.mxu0 %v1180
        %1383 = vmatprep.subr.bf16.mxu0 %v1193
        %1384 = vmatpush1.bf16.msra.mxu0 %v1192
        %1385 = vmatprep.subr.bf16.mxu0 %v1205
        %1386 = vmatpush1.bf16.msra.mxu0 %v1204
        %1387 = vmatprep.subr.bf16.mxu0 %v1217
        %1388 = vmatpush1.bf16.msra.mxu0 %v1216
        %1389 = vmatprep.subr.bf16.mxu0 %v1229
        %1390 = vmatpush1.bf16.msra.mxu0 %v1228
        %1391 = vmatprep.subr.bf16.mxu0 0
        %1392 = vmatpush1.bf16.msra.mxu0 0
        %1393 = vmatprep.subr.bf16.mxu0 0
        %1394 = vmatpush1.bf16.msra.mxu0 0
        %1395 = vmatprep.subr.bf16.mxu0 0
        %1396 = vmatpush1.bf16.msra.mxu0 0
        %1397 = vmatprep.subr.bf16.mxu0 0
        %1398 = vmatpush1.bf16.msra.mxu0 0
        %1399 = vmatprep.subr.bf16.mxu0 0
        %1400 = vmatpush1.bf16.msra.mxu0 0
        %1401 = vmatprep.subr.bf16.mxu0 0
        %1402 = vmatpush1.bf16.msra.mxu0 0
        %1403 = vmatprep.subr.bf16.mxu0 0
        %1404 = vmatpush1.bf16.msra.mxu0 0
        %1405 = vmatprep.subr.bf16.mxu0 0
        %1406 = vmatpush1.bf16.msra.mxu0 0
        %1407 = vmatprep.mubr.bf16.mxu0 0
        %1408 = vmatmul.mubr.bf16.gmra.mrb[0].mxu0 %v693
        %v1409 = vpop.f32.mrb[0].mxu0
        %v1410 = vadd.f32 %v805, %v1409
        %v1411 = vpop.f32.mrb[0].mxu0
        %v1412 = vadd.f32 %v809, %v1411
        %v1413 = vpop.f32.mrb[0].mxu0
        %v1414 = vpop.f32.mrb[0].mxu0
        %1415 = vdwg.mxu0
        %1416 = vmatprep.subr.bf16.mxu0 %v1147
        %1417 = vmatpush1.bf16.msra.mxu0 %v1146
        %1418 = vmatprep.subr.bf16.mxu0 %v1159
        %1419 = vmatpush1.bf16.msra.mxu0 %v1158
        %1420 = vmatprep.subr.bf16.mxu0 %v1171
        %1421 = vmatpush1.bf16.msra.mxu0 %v1170
        %1422 = vmatprep.subr.bf16.mxu0 %v1183
        %1423 = vmatpush1.bf16.msra.mxu0 %v1182
        %1424 = vmatprep.subr.bf16.mxu0 %v1195
        %1425 = vmatpush1.bf16.msra.mxu0 %v1194
        %1426 = vmatprep.subr.bf16.mxu0 %v1207
        %1427 = vmatpush1.bf16.msra.mxu0 %v1206
        %1428 = vmatprep.subr.bf16.mxu0 %v1219
        %1429 = vmatpush1.bf16.msra.mxu0 %v1218
        %1430 = vmatprep.subr.bf16.mxu0 %v1231
        %1431 = vmatpush1.bf16.msra.mxu0 %v1230
        %1432 = vmatprep.subr.bf16.mxu0 0
        %1433 = vmatpush1.bf16.msra.mxu0 0
        %1434 = vmatprep.subr.bf16.mxu0 0
        %1435 = vmatpush1.bf16.msra.mxu0 0
        %1436 = vmatprep.subr.bf16.mxu0 0
        %1437 = vmatpush1.bf16.msra.mxu0 0
        %1438 = vmatprep.subr.bf16.mxu0 0
        %1439 = vmatpush1.bf16.msra.mxu0 0
        %1440 = vmatprep.subr.bf16.mxu0 0
        %1441 = vmatpush1.bf16.msra.mxu0 0
        %1442 = vmatprep.subr.bf16.mxu0 0
        %1443 = vmatpush1.bf16.msra.mxu0 0
        %1444 = vmatprep.subr.bf16.mxu0 0
        %1445 = vmatpush1.bf16.msra.mxu0 0
        %1446 = vmatprep.subr.bf16.mxu0 0
        %1447 = vmatpush1.bf16.msra.mxu0 0
        %1448 = vmatprep.mubr.bf16.mxu0 0
        %1449 = vmatmul.mubr.bf16.gmra.mrb[0].mxu0 %v693
        %v1450 = vpop.f32.mrb[0].mxu0
        %v1451 = vadd.f32 %v813, %v1450
        %v1452 = vpop.f32.mrb[0].mxu0
        %v1453 = vadd.f32 %v817, %v1452
        %v1454 = vpop.f32.mrb[0].mxu0
        %v1455 = vpop.f32.mrb[0].mxu0
        %1456 = vdwg.mxu0
        %1457 = vmatprep.subr.bf16.mxu0 %v1149
        %1458 = vmatpush1.bf16.msra.mxu0 %v1148
        %1459 = vmatprep.subr.bf16.mxu0 %v1161
        %1460 = vmatpush1.bf16.msra.mxu0 %v1160
        %1461 = vmatprep.subr.bf16.mxu0 %v1173
        %1462 = vmatpush1.bf16.msra.mxu0 %v1172
        %1463 = vmatprep.subr.bf16.mxu0 %v1185
        %1464 = vmatpush1.bf16.msra.mxu0 %v1184
        %1465 = vmatprep.subr.bf16.mxu0 %v1197
        %1466 = vmatpush1.bf16.msra.mxu0 %v1196
        %1467 = vmatprep.subr.bf16.mxu0 %v1209
        %1468 = vmatpush1.bf16.msra.mxu0 %v1208
        %1469 = vmatprep.subr.bf16.mxu0 %v1221
        %1470 = vmatpush1.bf16.msra.mxu0 %v1220
        %1471 = vmatprep.subr.bf16.mxu0 %v1233
        %1472 = vmatpush1.bf16.msra.mxu0 %v1232
        %1473 = vmatprep.subr.bf16.mxu0 0
        %1474 = vmatpush1.bf16.msra.mxu0 0
        %1475 = vmatprep.subr.bf16.mxu0 0
        %1476 = vmatpush1.bf16.msra.mxu0 0
        %1477 = vmatprep.subr.bf16.mxu0 0
        %1478 = vmatpush1.bf16.msra.mxu0 0
        %1479 = vmatprep.subr.bf16.mxu0 0
        %1480 = vmatpush1.bf16.msra.mxu0 0
        %1481 = vmatprep.subr.bf16.mxu0 0
        %1482 = vmatpush1.bf16.msra.mxu0 0
        %1483 = vmatprep.subr.bf16.mxu0 0
        %1484 = vmatpush1.bf16.msra.mxu0 0
        %1485 = vmatprep.subr.bf16.mxu0 0
        %1486 = vmatpush1.bf16.msra.mxu0 0
        %1487 = vmatprep.subr.bf16.mxu0 0
        %1488 = vmatpush1.bf16.msra.mxu0 0
        %1489 = vmatprep.mubr.bf16.mxu0 0
        %1490 = vmatmul.mubr.bf16.gmra.mrb[0].mxu0 %v693
        %v1491 = vpop.f32.mrb[0].mxu0
        %v1492 = vadd.f32 %v821, %v1491
        %v1493 = vpop.f32.mrb[0].mxu0
        %v1494 = vadd.f32 %v825, %v1493
        %v1495 = vpop.f32.mrb[0].mxu0
        %v1496 = vpop.f32.mrb[0].mxu0
        %1497 = vdwg.mxu0
        %1498 = vmatprep.subr.bf16.mxu0 %v1151
        %1499 = vmatpush1.bf16.msra.mxu0 %v1150
        %1500 = vmatprep.subr.bf16.mxu0 %v1163
        %1501 = vmatpush1.bf16.msra.mxu0 %v1162
        %1502 = vmatprep.subr.bf16.mxu0 %v1175
        %1503 = vmatpush1.bf16.msra.mxu0 %v1174
        %1504 = vmatprep.subr.bf16.mxu0 %v1187
        %1505 = vmatpush1.bf16.msra.mxu0 %v1186
        %1506 = vmatprep.subr.bf16.mxu0 %v1199
        %1507 = vmatpush1.bf16.msra.mxu0 %v1198
        %1508 = vmatprep.subr.bf16.mxu0 %v1211
        %1509 = vmatpush1.bf16.msra.mxu0 %v1210
        %1510 = vmatprep.subr.bf16.mxu0 %v1223
        %1511 = vmatpush1.bf16.msra.mxu0 %v1222
        %1512 = vmatprep.subr.bf16.mxu0 %v1235
        %1513 = vmatpush1.bf16.msra.mxu0 %v1234
        %1514 = vmatprep.subr.bf16.mxu0 0
        %1515 = vmatpush1.bf16.msra.mxu0 0
        %1516 = vmatprep.subr.bf16.mxu0 0
        %1517 = vmatpush1.bf16.msra.mxu0 0
        %1518 = vmatprep.subr.bf16.mxu0 0
        %1519 = vmatpush1.bf16.msra.mxu0 0
        %1520 = vmatprep.subr.bf16.mxu0 0
        %1521 = vmatpush1.bf16.msra.mxu0 0
        %1522 = vmatprep.subr.bf16.mxu0 0
        %1523 = vmatpush1.bf16.msra.mxu0 0
        %1524 = vmatprep.subr.bf16.mxu0 0
        %1525 = vmatpush1.bf16.msra.mxu0 0
        %1526 = vmatprep.subr.bf16.mxu0 0
        %1527 = vmatpush1.bf16.msra.mxu0 0
        %1528 = vmatprep.subr.bf16.mxu0 0
        %1529 = vmatpush1.bf16.msra.mxu0 0
        %1530 = vmatprep.mubr.bf16.mxu0 0
        %1531 = vmatmul.mubr.bf16.gmra.mrb[0].mxu0 %v693
        %v1532 = vpop.f32.mrb[0].mxu0
        %v1533 = vadd.f32 %v829, %v1532
        %v1534 = vpop.f32.mrb[0].mxu0
        %v1535 = vadd.f32 %v833, %v1534
        %v1536 = vpop.f32.mrb[0].mxu0
        %v1537 = vpop.f32.mrb[0].mxu0
        %1538 = vdwg.mxu0
        %1539 = vmatprep.subr.bf16.mxu0 %v1153
        %1540 = vmatpush1.bf16.msra.mxu0 %v1152
        %1541 = vmatprep.subr.bf16.mxu0 %v1165
        %1542 = vmatpush1.bf16.msra.mxu0 %v1164
        %1543 = vmatprep.subr.bf16.mxu0 %v1177
        %1544 = vmatpush1.bf16.msra.mxu0 %v1176
        %1545 = vmatprep.subr.bf16.mxu0 %v1189
        %1546 = vmatpush1.bf16.msra.mxu0 %v1188
        %1547 = vmatprep.subr.bf16.mxu0 %v1201
        %1548 = vmatpush1.bf16.msra.mxu0 %v1200
        %1549 = vmatprep.subr.bf16.mxu0 %v1213
        %1550 = vmatpush1.bf16.msra.mxu0 %v1212
        %1551 = vmatprep.subr.bf16.mxu0 %v1225
        %1552 = vmatpush1.bf16.msra.mxu0 %v1224
        %1553 = vmatprep.subr.bf16.mxu0 %v1237
        %1554 = vmatpush1.bf16.msra.mxu0 %v1236
        %1555 = vmatprep.subr.bf16.mxu0 0
        %1556 = vmatpush1.bf16.msra.mxu0 0
        %1557 = vmatprep.subr.bf16.mxu0 0
        %1558 = vmatpush1.bf16.msra.mxu0 0
        %1559 = vmatprep.subr.bf16.mxu0 0
        %1560 = vmatpush1.bf16.msra.mxu0 0
        %1561 = vmatprep.subr.bf16.mxu0 0
        %1562 = vmatpush1.bf16.msra.mxu0 0
        %1563 = vmatprep.subr.bf16.mxu0 0
        %1564 = vmatpush1.bf16.msra.mxu0 0
        %1565 = vmatprep.subr.bf16.mxu0 0
        %1566 = vmatpush1.bf16.msra.mxu0 0
        %1567 = vmatprep.subr.bf16.mxu0 0
        %1568 = vmatpush1.bf16.msra.mxu0 0
        %1569 = vmatprep.subr.bf16.mxu0 0
        %1570 = vmatpush1.bf16.msra.mxu0 0
        %1571 = vmatprep.mubr.bf16.mxu0 0
        %1572 = vmatmul.mubr.bf16.gmra.mrb[0].mxu0 %v693
        %v1573 = vpop.f32.mrb[0].mxu0
        %v1574 = vadd.f32 %v837, %v1573
        %v1575 = vpop.f32.mrb[0].mxu0
        %v1576 = vadd.f32 %v841, %v1575
        %v1577 = vpop.f32.mrb[0].mxu0
        %v1578 = vpop.f32.mrb[0].mxu0
        %1579 = vdwg.mxu0
        %v1580 = vpack.c.bf16 %v1369, %v1369
        %v1581 = vpack.c.bf16 %v1371, %v1371
        %v1582 = vpack.c.bf16 %v1410, %v1410
        %v1583 = vpack.c.bf16 %v1412, %v1412
        %v1584 = vpack.c.bf16 %v1451, %v1451
        %v1585 = vpack.c.bf16 %v1453, %v1453
        %v1586 = vpack.c.bf16 %v1492, %v1492
        %v1587 = vpack.c.bf16 %v1494, %v1494
        %v1588 = vpack.c.bf16 %v1533, %v1533
        %v1589 = vpack.c.bf16 %v1535, %v1535
        %v1590 = vpack.c.bf16 %v1574, %v1574
        %v1591 = vpack.c.bf16 %v1576, %v1576
        %v1593 = vlaneseq
        %v1594 = vshrl.u32 %v1593, 7
        %v1595 = vsub.s32 0, %v1594
        %v1596 = vrot.slane %v692, %v1595
        %1598 = vmatprep.subr.bf16.mxu0 0
        %1599 = vmatpush1.bf16.xpose.msra.mxu0 %v1584
        %1600 = vmatprep.subr.bf16.mxu0 0
        %1601 = vmatpush1.bf16.xpose.msra.mxu0 0
        %1602 = vmatprep.subr.bf16.mxu0 0
        %1603 = vmatpush1.bf16.xpose.msra.mxu0 0
        %1604 = vmatprep.subr.bf16.mxu0 0
        %1605 = vmatpush1.bf16.xpose.msra.mxu0 0
        %1606 = vmatprep.subr.bf16.mxu0 0
        %1607 = vmatpush1.bf16.xpose.msra.mxu0 0
        %1608 = vmatprep.subr.bf16.mxu0 0
        %1609 = vmatpush1.bf16.xpose.msra.mxu0 0
        %1610 = vmatprep.subr.bf16.mxu0 0
        %1611 = vmatpush1.bf16.xpose.msra.mxu0 0
        %1612 = vmatprep.subr.bf16.mxu0 0
        %1613 = vmatpush1.bf16.xpose.msra.mxu0 0
        %1614 = vmatprep.subr.bf16.mxu0 0
        %1615 = vmatpush1.bf16.xpose.msra.mxu0 0
        %1616 = vmatprep.subr.bf16.mxu0 0
        %1617 = vmatpush1.bf16.xpose.msra.mxu0 0
        %1618 = vmatprep.subr.bf16.mxu0 0
        %1619 = vmatpush1.bf16.xpose.msra.mxu0 0
        %1620 = vmatprep.subr.bf16.mxu0 0
        %1621 = vmatpush1.bf16.xpose.msra.mxu0 0
        %1622 = vmatprep.subr.bf16.mxu0 0
        %1623 = vmatpush1.bf16.xpose.msra.mxu0 0
        %1624 = vmatprep.subr.bf16.mxu0 0
        %1625 = vmatpush1.bf16.xpose.msra.mxu0 0
        %1626 = vmatprep.subr.bf16.mxu0 0
        %1627 = vmatpush1.bf16.xpose.msra.mxu0 0
        %1628 = vmatprep.subr.bf16.mxu0 0
        %1629 = vmatpush1.bf16.xpose.msra.mxu0 0
        %1630 = vmatprep.mubr.bf16.mxu0 0
        %1631 = vmatmul.mubr.bf16.gmra.mrb[0].mxu0 %v1580
        %v1632 = vpop.f32.mrb[0].mxu0
        %v1633 = vadd.f32 %v1596, %v1632
        %v1634 = vpop.f32.mrb[0].mxu0
        %v1635 = vpop.f32.mrb[0].mxu0
        %v1636 = vpop.f32.mrb[0].mxu0
        %1637 = vdwg.mxu0
        %vm1638 = vcmask 64512
        %v1639 = vsel %vm1638, %v1633, -inf
        %1640 = vmax.xlane.f32.xlu0 %v1639
        %v1641 = vpop.xlane.xlu0 %1640
        %v1642 = vsub.f32 %v1633, %v1641
        %v1643 = vmul.f32 %v1642, 1.442695
        %v1644 = vpow.pop %v1643
        %v1645 = vsel %vm1638, %v1644, 0.0
        %1646 = vadd.xlane.f32.xlu0 %v1645
        %v1647 = vpop.xlane.xlu0 %1646
        %v1648 = vrcp.pop %v1647
        %v1649 = vmul.f32 %v1644, %v1648
        %v1650 = vpack.c.bf16 %v1649, %v1649
        %v1652 = vsel %vm1638, %v1650, 0
        %vm1654 = vcmask 1043456
        %v1656 = vsel %vm1654, %v1588, 0
        %1658 = vmatprep.subr.bf16.mxu0 0
        %1659 = vmatpush1.bf16.msra.mxu0 %v1656
        %1660 = vmatprep.subr.bf16.mxu0 0
        %1661 = vmatpush1.bf16.msra.mxu0 0
        %1662 = vmatprep.subr.bf16.mxu0 0
        %1663 = vmatpush1.bf16.msra.mxu0 0
        %1664 = vmatprep.subr.bf16.mxu0 0
        %1665 = vmatpush1.bf16.msra.mxu0 0
        %1666 = vmatprep.subr.bf16.mxu0 0
        %1667 = vmatpush1.bf16.msra.mxu0 0
        %1668 = vmatprep.subr.bf16.mxu0 0
        %1669 = vmatpush1.bf16.msra.mxu0 0
        %1670 = vmatprep.subr.bf16.mxu0 0
        %1671 = vmatpush1.bf16.msra.mxu0 0
        %1672 = vmatprep.subr.bf16.mxu0 0
        %1673 = vmatpush1.bf16.msra.mxu0 0
        %1674 = vmatprep.subr.bf16.mxu0 0
        %1675 = vmatpush1.bf16.msra.mxu0 0
        %1676 = vmatprep.subr.bf16.mxu0 0
        %1677 = vmatpush1.bf16.msra.mxu0 0
        %1678 = vmatprep.subr.bf16.mxu0 0
        %1679 = vmatpush1.bf16.msra.mxu0 0
        %1680 = vmatprep.subr.bf16.mxu0 0
        %1681 = vmatpush1.bf16.msra.mxu0 0
        %1682 = vmatprep.subr.bf16.mxu0 0
        %1683 = vmatpush1.bf16.msra.mxu0 0
        %1684 = vmatprep.subr.bf16.mxu0 0
        %1685 = vmatpush1.bf16.msra.mxu0 0
        %1686 = vmatprep.subr.bf16.mxu0 0
        %1687 = vmatpush1.bf16.msra.mxu0 0
        %1688 = vmatprep.subr.bf16.mxu0 0
        %1689 = vmatpush1.bf16.msra.mxu0 0
        %1690 = vmatprep.mubr.bf16.mxu0 0
        %1691 = vmatmul.mubr.bf16.gmra.mrb[0].mxu0 %v1652
        %v1692 = vpop.f32.mrb[0].mxu0
        %v1693 = vadd.f32 0.0, %v1692
        %v1694 = vpop.f32.mrb[0].mxu0
        %v1695 = vpop.f32.mrb[0].mxu0
        %v1696 = vpop.f32.mrb[0].mxu0
        %1697 = vdwg.mxu0
        %1698 = vmatprep.subr.bf16.mxu0 0
        %1699 = vmatpush1.bf16.xpose.msra.mxu0 %v1585
        %1700 = vmatprep.subr.bf16.mxu0 0
        %1701 = vmatpush1.bf16.xpose.msra.mxu0 0
        %1702 = vmatprep.subr.bf16.mxu0 0
        %1703 = vmatpush1.bf16.xpose.msra.mxu0 0
        %1704 = vmatprep.subr.bf16.mxu0 0
        %1705 = vmatpush1.bf16.xpose.msra.mxu0 0
        %1706 = vmatprep.subr.bf16.mxu0 0
        %1707 = vmatpush1.bf16.xpose.msra.mxu0 0
        %1708 = vmatprep.subr.bf16.mxu0 0
        %1709 = vmatpush1.bf16.xpose.msra.mxu0 0
        %1710 = vmatprep.subr.bf16.mxu0 0
        %1711 = vmatpush1.bf16.xpose.msra.mxu0 0
        %1712 = vmatprep.subr.bf16.mxu0 0
        %1713 = vmatpush1.bf16.xpose.msra.mxu0 0
        %1714 = vmatprep.subr.bf16.mxu0 0
        %1715 = vmatpush1.bf16.xpose.msra.mxu0 0
        %1716 = vmatprep.subr.bf16.mxu0 0
        %1717 = vmatpush1.bf16.xpose.msra.mxu0 0
        %1718 = vmatprep.subr.bf16.mxu0 0
        %1719 = vmatpush1.bf16.xpose.msra.mxu0 0
        %1720 = vmatprep.subr.bf16.mxu0 0
        %1721 = vmatpush1.bf16.xpose.msra.mxu0 0
        %1722 = vmatprep.subr.bf16.mxu0 0
        %1723 = vmatpush1.bf16.xpose.msra.mxu0 0
        %1724 = vmatprep.subr.bf16.mxu0 0
        %1725 = vmatpush1.bf16.xpose.msra.mxu0 0
        %1726 = vmatprep.subr.bf16.mxu0 0
        %1727 = vmatpush1.bf16.xpose.msra.mxu0 0
        %1728 = vmatprep.subr.bf16.mxu0 0
        %1729 = vmatpush1.bf16.xpose.msra.mxu0 0
        %1730 = vmatprep.mubr.bf16.mxu0 0
        %1731 = vmatmul.mubr.bf16.gmra.mrb[0].mxu0 %v1581
        %v1732 = vpop.f32.mrb[0].mxu0
        %v1733 = vadd.f32 %v1596, %v1732
        %v1734 = vpop.f32.mrb[0].mxu0
        %v1735 = vpop.f32.mrb[0].mxu0
        %v1736 = vpop.f32.mrb[0].mxu0
        %1737 = vdwg.mxu0
        %v1738 = vsel %vm1638, %v1733, -inf
        %1739 = vmax.xlane.f32.xlu0 %v1738
        %v1740 = vpop.xlane.xlu0 %1739
        %v1741 = vsub.f32 %v1733, %v1740
        %v1742 = vmul.f32 %v1741, 1.442695
        %v1743 = vpow.pop %v1742
        %v1744 = vsel %vm1638, %v1743, 0.0
        %1745 = vadd.xlane.f32.xlu0 %v1744
        %v1746 = vpop.xlane.xlu0 %1745
        %v1747 = vrcp.pop %v1746
        %v1748 = vmul.f32 %v1743, %v1747
        %v1749 = vpack.c.bf16 %v1748, %v1748
        %v1751 = vsel %vm1638, %v1749, 0
        %v1754 = vsel %vm1654, %v1589, 0
        %1756 = vmatprep.subr.bf16.mxu0 0
        %1757 = vmatpush1.bf16.msra.mxu0 %v1754
        %1758 = vmatprep.subr.bf16.mxu0 0
        %1759 = vmatpush1.bf16.msra.mxu0 0
        %1760 = vmatprep.subr.bf16.mxu0 0
        %1761 = vmatpush1.bf16.msra.mxu0 0
        %1762 = vmatprep.subr.bf16.mxu0 0
        %1763 = vmatpush1.bf16.msra.mxu0 0
        %1764 = vmatprep.subr.bf16.mxu0 0
        %1765 = vmatpush1.bf16.msra.mxu0 0
        %1766 = vmatprep.subr.bf16.mxu0 0
        %1767 = vmatpush1.bf16.msra.mxu0 0
        %1768 = vmatprep.subr.bf16.mxu0 0
        %1769 = vmatpush1.bf16.msra.mxu0 0
        %1770 = vmatprep.subr.bf16.mxu0 0
        %1771 = vmatpush1.bf16.msra.mxu0 0
        %1772 = vmatprep.subr.bf16.mxu0 0
        %1773 = vmatpush1.bf16.msra.mxu0 0
        %1774 = vmatprep.subr.bf16.mxu0 0
        %1775 = vmatpush1.bf16.msra.mxu0 0
        %1776 = vmatprep.subr.bf16.mxu0 0
        %1777 = vmatpush1.bf16.msra.mxu0 0
        %1778 = vmatprep.subr.bf16.mxu0 0
        %1779 = vmatpush1.bf16.msra.mxu0 0
        %1780 = vmatprep.subr.bf16.mxu0 0
        %1781 = vmatpush1.bf16.msra.mxu0 0
        %1782 = vmatprep.subr.bf16.mxu0 0
        %1783 = vmatpush1.bf16.msra.mxu0 0
        %1784 = vmatprep.subr.bf16.mxu0 0
        %1785 = vmatpush1.bf16.msra.mxu0 0
        %1786 = vmatprep.subr.bf16.mxu0 0
        %1787 = vmatpush1.bf16.msra.mxu0 0
        %1788 = vmatprep.mubr.bf16.mxu0 0
        %1789 = vmatmul.mubr.bf16.gmra.mrb[0].mxu0 %v1751
        %v1790 = vpop.f32.mrb[0].mxu0
        %v1791 = vadd.f32 0.0, %v1790
        %v1792 = vpop.f32.mrb[0].mxu0
        %v1793 = vpop.f32.mrb[0].mxu0
        %v1794 = vpop.f32.mrb[0].mxu0
        %1795 = vdwg.mxu0
        %1796 = vmatprep.subr.bf16.mxu0 0
        %1797 = vmatpush1.bf16.xpose.msra.mxu0 %v1586
        %1798 = vmatprep.subr.bf16.mxu0 0
        %1799 = vmatpush1.bf16.xpose.msra.mxu0 0
        %1800 = vmatprep.subr.bf16.mxu0 0
        %1801 = vmatpush1.bf16.xpose.msra.mxu0 0
        %1802 = vmatprep.subr.bf16.mxu0 0
        %1803 = vmatpush1.bf16.xpose.msra.mxu0 0
        %1804 = vmatprep.subr.bf16.mxu0 0
        %1805 = vmatpush1.bf16.xpose.msra.mxu0 0
        %1806 = vmatprep.subr.bf16.mxu0 0
        %1807 = vmatpush1.bf16.xpose.msra.mxu0 0
        %1808 = vmatprep.subr.bf16.mxu0 0
        %1809 = vmatpush1.bf16.xpose.msra.mxu0 0
        %1810 = vmatprep.subr.bf16.mxu0 0
        %1811 = vmatpush1.bf16.xpose.msra.mxu0 0
        %1812 = vmatprep.subr.bf16.mxu0 0
        %1813 = vmatpush1.bf16.xpose.msra.mxu0 0
        %1814 = vmatprep.subr.bf16.mxu0 0
        %1815 = vmatpush1.bf16.xpose.msra.mxu0 0
        %1816 = vmatprep.subr.bf16.mxu0 0
        %1817 = vmatpush1.bf16.xpose.msra.mxu0 0
        %1818 = vmatprep.subr.bf16.mxu0 0
        %1819 = vmatpush1.bf16.xpose.msra.mxu0 0
        %1820 = vmatprep.subr.bf16.mxu0 0
        %1821 = vmatpush1.bf16.xpose.msra.mxu0 0
        %1822 = vmatprep.subr.bf16.mxu0 0
        %1823 = vmatpush1.bf16.xpose.msra.mxu0 0
        %1824 = vmatprep.subr.bf16.mxu0 0
        %1825 = vmatpush1.bf16.xpose.msra.mxu0 0
        %1826 = vmatprep.subr.bf16.mxu0 0
        %1827 = vmatpush1.bf16.xpose.msra.mxu0 0
        %1828 = vmatprep.mubr.bf16.mxu0 0
        %1829 = vmatmul.mubr.bf16.gmra.mrb[0].mxu0 %v1582
        %v1830 = vpop.f32.mrb[0].mxu0
        %v1831 = vadd.f32 %v1596, %v1830
        %v1832 = vpop.f32.mrb[0].mxu0
        %v1833 = vpop.f32.mrb[0].mxu0
        %v1834 = vpop.f32.mrb[0].mxu0
        %1835 = vdwg.mxu0
        %v1836 = vsel %vm1638, %v1831, -inf
        %1837 = vmax.xlane.f32.xlu0 %v1836
        %v1838 = vpop.xlane.xlu0 %1837
        %v1839 = vsub.f32 %v1831, %v1838
        %v1840 = vmul.f32 %v1839, 1.442695
        %v1841 = vpow.pop %v1840
        %v1842 = vsel %vm1638, %v1841, 0.0
        %1843 = vadd.xlane.f32.xlu0 %v1842
        %v1844 = vpop.xlane.xlu0 %1843
        %v1845 = vrcp.pop %v1844
        %v1846 = vmul.f32 %v1841, %v1845
        %v1847 = vpack.c.bf16 %v1846, %v1846
        %v1849 = vsel %vm1638, %v1847, 0
        %v1852 = vsel %vm1654, %v1590, 0
        %1854 = vmatprep.subr.bf16.mxu0 0
        %1855 = vmatpush1.bf16.msra.mxu0 %v1852
        %1856 = vmatprep.subr.bf16.mxu0 0
        %1857 = vmatpush1.bf16.msra.mxu0 0
        %1858 = vmatprep.subr.bf16.mxu0 0
        %1859 = vmatpush1.bf16.msra.mxu0 0
        %1860 = vmatprep.subr.bf16.mxu0 0
        %1861 = vmatpush1.bf16.msra.mxu0 0
        %1862 = vmatprep.subr.bf16.mxu0 0
        %1863 = vmatpush1.bf16.msra.mxu0 0
        %1864 = vmatprep.subr.bf16.mxu0 0
        %1865 = vmatpush1.bf16.msra.mxu0 0
        %1866 = vmatprep.subr.bf16.mxu0 0
        %1867 = vmatpush1.bf16.msra.mxu0 0
        %1868 = vmatprep.subr.bf16.mxu0 0
        %1869 = vmatpush1.bf16.msra.mxu0 0
        %1870 = vmatprep.subr.bf16.mxu0 0
        %1871 = vmatpush1.bf16.msra.mxu0 0
        %1872 = vmatprep.subr.bf16.mxu0 0
        %1873 = vmatpush1.bf16.msra.mxu0 0
        %1874 = vmatprep.subr.bf16.mxu0 0
        %1875 = vmatpush1.bf16.msra.mxu0 0
        %1876 = vmatprep.subr.bf16.mxu0 0
        %1877 = vmatpush1.bf16.msra.mxu0 0
        %1878 = vmatprep.subr.bf16.mxu0 0
        %1879 = vmatpush1.bf16.msra.mxu0 0
        %1880 = vmatprep.subr.bf16.mxu0 0
        %1881 = vmatpush1.bf16.msra.mxu0 0
        %1882 = vmatprep.subr.bf16.mxu0 0
        %1883 = vmatpush1.bf16.msra.mxu0 0
        %1884 = vmatprep.subr.bf16.mxu0 0
        %1885 = vmatpush1.bf16.msra.mxu0 0
        %1886 = vmatprep.mubr.bf16.mxu0 0
        %1887 = vmatmul.mubr.bf16.gmra.mrb[0].mxu0 %v1849
        %v1888 = vpop.f32.mrb[0].mxu0
        %v1889 = vadd.f32 0.0, %v1888
        %v1890 = vpop.f32.mrb[0].mxu0
        %v1891 = vpop.f32.mrb[0].mxu0
        %v1892 = vpop.f32.mrb[0].mxu0
        %1893 = vdwg.mxu0
        %1894 = vmatprep.subr.bf16.mxu0 0
        %1895 = vmatpush1.bf16.xpose.msra.mxu0 %v1587
        %1896 = vmatprep.subr.bf16.mxu0 0
        %1897 = vmatpush1.bf16.xpose.msra.mxu0 0
        %1898 = vmatprep.subr.bf16.mxu0 0
        %1899 = vmatpush1.bf16.xpose.msra.mxu0 0
        %1900 = vmatprep.subr.bf16.mxu0 0
        %1901 = vmatpush1.bf16.xpose.msra.mxu0 0
        %1902 = vmatprep.subr.bf16.mxu0 0
        %1903 = vmatpush1.bf16.xpose.msra.mxu0 0
        %1904 = vmatprep.subr.bf16.mxu0 0
        %1905 = vmatpush1.bf16.xpose.msra.mxu0 0
        %1906 = vmatprep.subr.bf16.mxu0 0
        %1907 = vmatpush1.bf16.xpose.msra.mxu0 0
        %1908 = vmatprep.subr.bf16.mxu0 0
        %1909 = vmatpush1.bf16.xpose.msra.mxu0 0
        %1910 = vmatprep.subr.bf16.mxu0 0
        %1911 = vmatpush1.bf16.xpose.msra.mxu0 0
        %1912 = vmatprep.subr.bf16.mxu0 0
        %1913 = vmatpush1.bf16.xpose.msra.mxu0 0
        %1914 = vmatprep.subr.bf16.mxu0 0
        %1915 = vmatpush1.bf16.xpose.msra.mxu0 0
        %1916 = vmatprep.subr.bf16.mxu0 0
        %1917 = vmatpush1.bf16.xpose.msra.mxu0 0
        %1918 = vmatprep.subr.bf16.mxu0 0
        %1919 = vmatpush1.bf16.xpose.msra.mxu0 0
        %1920 = vmatprep.subr.bf16.mxu0 0
        %1921 = vmatpush1.bf16.xpose.msra.mxu0 0
        %1922 = vmatprep.subr.bf16.mxu0 0
        %1923 = vmatpush1.bf16.xpose.msra.mxu0 0
        %1924 = vmatprep.subr.bf16.mxu0 0
        %1925 = vmatpush1.bf16.xpose.msra.mxu0 0
        %1926 = vmatprep.mubr.bf16.mxu0 0
        %1927 = vmatmul.mubr.bf16.gmra.mrb[0].mxu0 %v1583
        %v1928 = vpop.f32.mrb[0].mxu0
        %v1929 = vadd.f32 %v1596, %v1928
        %v1930 = vpop.f32.mrb[0].mxu0
        %v1931 = vpop.f32.mrb[0].mxu0
        %v1932 = vpop.f32.mrb[0].mxu0
        %1933 = vdwg.mxu0
        %v1934 = vsel %vm1638, %v1929, -inf
        %1935 = vmax.xlane.f32.xlu0 %v1934
        %v1936 = vpop.xlane.xlu0 %1935
        %v1937 = vsub.f32 %v1929, %v1936
        %v1938 = vmul.f32 %v1937, 1.442695
        %v1939 = vpow.pop %v1938
        %v1940 = vsel %vm1638, %v1939, 0.0
        %1941 = vadd.xlane.f32.xlu0 %v1940
        %v1942 = vpop.xlane.xlu0 %1941
        %v1943 = vrcp.pop %v1942
        %v1944 = vmul.f32 %v1939, %v1943
        %v1945 = vpack.c.bf16 %v1944, %v1944
        %v1947 = vsel %vm1638, %v1945, 0
        %v1950 = vsel %vm1654, %v1591, 0
        %1952 = vmatprep.subr.bf16.mxu0 0
        %1953 = vmatpush1.bf16.msra.mxu0 %v1950
        %1954 = vmatprep.subr.bf16.mxu0 0
        %1955 = vmatpush1.bf16.msra.mxu0 0
        %1956 = vmatprep.subr.bf16.mxu0 0
        %1957 = vmatpush1.bf16.msra.mxu0 0
        %1958 = vmatprep.subr.bf16.mxu0 0
        %1959 = vmatpush1.bf16.msra.mxu0 0
        %1960 = vmatprep.subr.bf16.mxu0 0
        %1961 = vmatpush1.bf16.msra.mxu0 0
        %1962 = vmatprep.subr.bf16.mxu0 0
        %1963 = vmatpush1.bf16.msra.mxu0 0
        %1964 = vmatprep.subr.bf16.mxu0 0
        %1965 = vmatpush1.bf16.msra.mxu0 0
        %1966 = vmatprep.subr.bf16.mxu0 0
        %1967 = vmatpush1.bf16.msra.mxu0 0
        %1968 = vmatprep.subr.bf16.mxu0 0
        %1969 = vmatpush1.bf16.msra.mxu0 0
        %1970 = vmatprep.subr.bf16.mxu0 0
        %1971 = vmatpush1.bf16.msra.mxu0 0
        %1972 = vmatprep.subr.bf16.mxu0 0
        %1973 = vmatpush1.bf16.msra.mxu0 0
        %1974 = vmatprep.subr.bf16.mxu0 0
        %1975 = vmatpush1.bf16.msra.mxu0 0
        %1976 = vmatprep.subr.bf16.mxu0 0
        %1977 = vmatpush1.bf16.msra.mxu0 0
        %1978 = vmatprep.subr.bf16.mxu0 0
        %1979 = vmatpush1.bf16.msra.mxu0 0
        %1980 = vmatprep.subr.bf16.mxu0 0
        %1981 = vmatpush1.bf16.msra.mxu0 0
        %1982 = vmatprep.subr.bf16.mxu0 0
        %1983 = vmatpush1.bf16.msra.mxu0 0
        %1984 = vmatprep.mubr.bf16.mxu0 0
        %1985 = vmatmul.mubr.bf16.gmra.mrb[0].mxu0 %v1947
        %v1986 = vpop.f32.mrb[0].mxu0
        %v1987 = vadd.f32 0.0, %v1986
        %v1988 = vpop.f32.mrb[0].mxu0
        %v1989 = vpop.f32.mrb[0].mxu0
        %v1990 = vpop.f32.mrb[0].mxu0
        %1991 = vdwg.mxu0
        %v1992 = vpack.c.bf16 %v1693, %v1693
        %v1993 = vpack.c.bf16 %v1791, %v1791
        %v1994 = vpack.c.bf16 %v1889, %v1889
        %v1995 = vpack.c.bf16 %v1987, %v1987
        %v1996 = vld [vmem:[#allocation11] sm:$0xf]
        %v1997 = vld [vmem:[#allocation11 + $0x4] sm:$0xf]
        %v1998 = vld [vmem:[#allocation11 + $0x8] sm:$0xf]
        %v1999 = vld [vmem:[#allocation11 + $0xc] sm:$0xf]
        %v2000 = vld [vmem:[#allocation11 + $0x10] sm:$0xf]
        %v2001 = vld [vmem:[#allocation11 + $0x14] sm:$0xf]
        %v2002 = vld [vmem:[#allocation11 + $0x18] sm:$0xf]
        %v2003 = vld [vmem:[#allocation11 + $0x1c] sm:$0xf]
        %v2004 = vld [vmem:[#allocation11 + $0x20] sm:$0xf]
        %v2005 = vld [vmem:[#allocation11 + $0x24] sm:$0xf]
        %v2006 = vld [vmem:[#allocation11 + $0x28] sm:$0xf]
        %v2007 = vld [vmem:[#allocation11 + $0x2c] sm:$0xf]
        %v2008 = vld [vmem:[#allocation11 + $0x30] sm:$0xf]
        %v2009 = vld [vmem:[#allocation11 + $0x34] sm:$0xf]
        %v2010 = vld [vmem:[#allocation11 + $0x38] sm:$0xf]
        %v2011 = vld [vmem:[#allocation11 + $0x3c] sm:$0xf]
        %v2012 = vld [vmem:[#allocation11 + $0x40] sm:$0xf]
        %v2013 = vld [vmem:[#allocation11 + $0x44] sm:$0xf]
        %v2014 = vld [vmem:[#allocation11 + $0x48] sm:$0xf]
        %v2015 = vld [vmem:[#allocation11 + $0x4c] sm:$0xf]
        %v2016 = vld [vmem:[#allocation11 + $0x50] sm:$0xf]
        %v2017 = vld [vmem:[#allocation11 + $0x54] sm:$0xf]
        %v2018 = vld [vmem:[#allocation11 + $0x58] sm:$0xf]
        %v2019 = vld [vmem:[#allocation11 + $0x5c] sm:$0xf]
        %v2020 = vld [vmem:[#allocation11 + $0x60] sm:$0xf]
        %v2021 = vld [vmem:[#allocation11 + $0x64] sm:$0xf]
        %v2022 = vld [vmem:[#allocation11 + $0x68] sm:$0xf]
        %v2023 = vld [vmem:[#allocation11 + $0x6c] sm:$0xf]
        %v2024 = vld [vmem:[#allocation11 + $0x70] sm:$0xf]
        %v2025 = vld [vmem:[#allocation11 + $0x74] sm:$0xf]
        %v2026 = vld [vmem:[#allocation11 + $0x78] sm:$0xf]
        %v2027 = vld [vmem:[#allocation11 + $0x7c] sm:$0xf]
        %v2028 = vld [vmem:[#allocation11 + $0x80] sm:$0xf]
        %v2029 = vld [vmem:[#allocation11 + $0x84] sm:$0xf]
        %v2030 = vld [vmem:[#allocation11 + $0x88] sm:$0xf]
        %v2031 = vld [vmem:[#allocation11 + $0x8c] sm:$0xf]
        %v2032 = vld [vmem:[#allocation11 + $0x90] sm:$0xf]
        %v2033 = vld [vmem:[#allocation11 + $0x94] sm:$0xf]
        %v2034 = vld [vmem:[#allocation11 + $0x98] sm:$0xf]
        %v2035 = vld [vmem:[#allocation11 + $0x9c] sm:$0xf]
        %v2036 = vld [vmem:[#allocation11 + $0xa0] sm:$0xf]
        %v2037 = vld [vmem:[#allocation11 + $0xa4] sm:$0xf]
        %v2038 = vld [vmem:[#allocation11 + $0xa8] sm:$0xf]
        %v2039 = vld [vmem:[#allocation11 + $0xac] sm:$0xf]
        %v2040 = vld [vmem:[#allocation11 + $0xb0] sm:$0xf]
        %v2041 = vld [vmem:[#allocation11 + $0xb4] sm:$0xf]
        %v2042 = vld [vmem:[#allocation11 + $0xb8] sm:$0xf]
        %v2043 = vld [vmem:[#allocation11 + $0xbc] sm:$0xf]
        %v2044 = vld [vmem:[#allocation11 + $0xc0] sm:$0xf]
        %v2045 = vld [vmem:[#allocation11 + $0xc4] sm:$0xf]
        %v2046 = vld [vmem:[#allocation11 + $0xc8] sm:$0xf]
        %v2047 = vld [vmem:[#allocation11 + $0xcc] sm:$0xf]
        %v2048 = vld [vmem:[#allocation11 + $0xd0] sm:$0xf]
        %v2049 = vld [vmem:[#allocation11 + $0xd4] sm:$0xf]
        %v2050 = vld [vmem:[#allocation11 + $0xd8] sm:$0xf]
        %v2051 = vld [vmem:[#allocation11 + $0xdc] sm:$0xf]
        %v2052 = vld [vmem:[#allocation11 + $0xe0] sm:$0xf]
        %v2053 = vld [vmem:[#allocation11 + $0xe4] sm:$0xf]
        %v2054 = vld [vmem:[#allocation11 + $0xe8] sm:$0xf]
        %v2055 = vld [vmem:[#allocation11 + $0xec] sm:$0xf]
        %v2056 = vld [vmem:[#allocation11 + $0xf0] sm:$0xf]
        %v2057 = vld [vmem:[#allocation11 + $0xf4] sm:$0xf]
        %v2058 = vld [vmem:[#allocation11 + $0xf8] sm:$0xf]
        %v2059 = vld [vmem:[#allocation11 + $0xfc] sm:$0xf]
        %v2060 = vld [vmem:[%s7] sm:$0x1]
        %v2062 = vlaneseq
        %v2063 = vshrl.u32 %v2062, 7
        %v2064 = vsub.s32 0, %v2063
        %v2065 = vrot.slane %v2060, %v2064
        %v2131 = vunpack.c.l.b16 %v1996
        %v2132 = vunpack.c.l.b16 %v1997
        %v2133 = vunpack.c.l.b16 %v1998
        %v2134 = vunpack.c.l.b16 %v1999
        %v2135 = vunpack.c.l.b16 %v2000
        %v2136 = vunpack.c.l.b16 %v2001
        %v2137 = vunpack.c.l.b16 %v2002
        %v2138 = vunpack.c.l.b16 %v2003
        %v2139 = vunpack.c.l.b16 %v2004
        %v2140 = vunpack.c.l.b16 %v2005
        %v2141 = vunpack.c.l.b16 %v2006
        %v2142 = vunpack.c.l.b16 %v2007
        %v2143 = vunpack.c.l.b16 %v2008
        %v2144 = vunpack.c.l.b16 %v2009
        %v2145 = vunpack.c.l.b16 %v2010
        %v2146 = vunpack.c.l.b16 %v2011
        %v2147 = vunpack.c.l.b16 %v2012
        %v2148 = vunpack.c.l.b16 %v2013
        %v2149 = vunpack.c.l.b16 %v2014
        %v2150 = vunpack.c.l.b16 %v2015
        %v2151 = vunpack.c.l.b16 %v2016
        %v2152 = vunpack.c.l.b16 %v2017
        %v2153 = vunpack.c.l.b16 %v2018
        %v2154 = vunpack.c.l.b16 %v2019
        %v2155 = vunpack.c.l.b16 %v2020
        %v2156 = vunpack.c.l.b16 %v2021
        %v2157 = vunpack.c.l.b16 %v2022
        %v2158 = vunpack.c.l.b16 %v2023
        %v2159 = vunpack.c.l.b16 %v2024
        %v2160 = vunpack.c.l.b16 %v2025
        %v2161 = vunpack.c.l.b16 %v2026
        %v2162 = vunpack.c.l.b16 %v2027
        %v2163 = vunpack.c.l.b16 %v2028
        %v2164 = vunpack.c.l.b16 %v2029
        %v2165 = vunpack.c.l.b16 %v2030
        %v2166 = vunpack.c.l.b16 %v2031
        %v2167 = vunpack.c.l.b16 %v2032
        %v2168 = vunpack.c.l.b16 %v2033
        %v2169 = vunpack.c.l.b16 %v2034
        %v2170 = vunpack.c.l.b16 %v2035
        %v2171 = vunpack.c.l.b16 %v2036
        %v2172 = vunpack.c.l.b16 %v2037
        %v2173 = vunpack.c.l.b16 %v2038
        %v2174 = vunpack.c.l.b16 %v2039
        %v2175 = vunpack.c.l.b16 %v2040
        %v2176 = vunpack.c.l.b16 %v2041
        %v2177 = vunpack.c.l.b16 %v2042
        %v2178 = vunpack.c.l.b16 %v2043
        %v2179 = vunpack.c.l.b16 %v2044
        %v2180 = vunpack.c.l.b16 %v2045
        %v2181 = vunpack.c.l.b16 %v2046
        %v2182 = vunpack.c.l.b16 %v2047
        %v2183 = vunpack.c.l.b16 %v2048
        %v2184 = vunpack.c.l.b16 %v2049
        %v2185 = vunpack.c.l.b16 %v2050
        %v2186 = vunpack.c.l.b16 %v2051
        %v2187 = vunpack.c.l.b16 %v2052
        %v2188 = vunpack.c.l.b16 %v2053
        %v2189 = vunpack.c.l.b16 %v2054
        %v2190 = vunpack.c.l.b16 %v2055
        %v2191 = vunpack.c.l.b16 %v2056
        %v2192 = vunpack.c.l.b16 %v2057
        %v2193 = vunpack.c.l.b16 %v2058
        %v2194 = vunpack.c.l.b16 %v2059
        %v2195 = vpack.c.b16 %v2132, %v2131
        %v2196 = vpack.c.b16 %v2134, %v2133
        %v2197 = vpack.c.b16 %v2136, %v2135
        %v2198 = vpack.c.b16 %v2138, %v2137
        %v2199 = vpack.c.b16 %v2140, %v2139
        %v2200 = vpack.c.b16 %v2142, %v2141
        %v2201 = vpack.c.b16 %v2144, %v2143
        %v2202 = vpack.c.b16 %v2146, %v2145
        %v2203 = vpack.c.b16 %v2148, %v2147
        %v2204 = vpack.c.b16 %v2150, %v2149
        %v2205 = vpack.c.b16 %v2152, %v2151
        %v2206 = vpack.c.b16 %v2154, %v2153
        %v2207 = vpack.c.b16 %v2156, %v2155
        %v2208 = vpack.c.b16 %v2158, %v2157
        %v2209 = vpack.c.b16 %v2160, %v2159
        %v2210 = vpack.c.b16 %v2162, %v2161
        %v2211 = vpack.c.b16 %v2164, %v2163
        %v2212 = vpack.c.b16 %v2166, %v2165
        %v2213 = vpack.c.b16 %v2168, %v2167
        %v2214 = vpack.c.b16 %v2170, %v2169
        %v2215 = vpack.c.b16 %v2172, %v2171
        %v2216 = vpack.c.b16 %v2174, %v2173
        %v2217 = vpack.c.b16 %v2176, %v2175
        %v2218 = vpack.c.b16 %v2178, %v2177
        %v2219 = vpack.c.b16 %v2180, %v2179
        %v2220 = vpack.c.b16 %v2182, %v2181
        %v2221 = vpack.c.b16 %v2184, %v2183
        %v2222 = vpack.c.b16 %v2186, %v2185
        %v2223 = vpack.c.b16 %v2188, %v2187
        %v2224 = vpack.c.b16 %v2190, %v2189
        %v2225 = vpack.c.b16 %v2192, %v2191
        %v2226 = vpack.c.b16 %v2194, %v2193
        %2259 = vmatprep.subr.bf16.mxu0 0
        %2260 = vmatpush1.bf16.msra.mxu0 %v2195
        %2261 = vmatprep.subr.bf16.mxu0 0
        %2262 = vmatpush1.bf16.msra.mxu0 %v2196
        %2263 = vmatprep.subr.bf16.mxu0 0
        %2264 = vmatpush1.bf16.msra.mxu0 %v2197
        %2265 = vmatprep.subr.bf16.mxu0 0
        %2266 = vmatpush1.bf16.msra.mxu0 %v2198
        %2267 = vmatprep.subr.bf16.mxu0 0
        %2268 = vmatpush1.bf16.msra.mxu0 %v2199
        %2269 = vmatprep.subr.bf16.mxu0 0
        %2270 = vmatpush1.bf16.msra.mxu0 %v2200
        %2271 = vmatprep.subr.bf16.mxu0 0
        %2272 = vmatpush1.bf16.msra.mxu0 %v2201
        %2273 = vmatprep.subr.bf16.mxu0 0
        %2274 = vmatpush1.bf16.msra.mxu0 %v2202
        %2275 = vmatprep.subr.bf16.mxu0 0
        %2276 = vmatpush1.bf16.msra.mxu0 %v2203
        %2277 = vmatprep.subr.bf16.mxu0 0
        %2278 = vmatpush1.bf16.msra.mxu0 %v2204
        %2279 = vmatprep.subr.bf16.mxu0 0
        %2280 = vmatpush1.bf16.msra.mxu0 %v2205
        %2281 = vmatprep.subr.bf16.mxu0 0
        %2282 = vmatpush1.bf16.msra.mxu0 %v2206
        %2283 = vmatprep.subr.bf16.mxu0 0
        %2284 = vmatpush1.bf16.msra.mxu0 %v2207
        %2285 = vmatprep.subr.bf16.mxu0 0
        %2286 = vmatpush1.bf16.msra.mxu0 %v2208
        %2287 = vmatprep.subr.bf16.mxu0 0
        %2288 = vmatpush1.bf16.msra.mxu0 %v2209
        %2289 = vmatprep.subr.bf16.mxu0 0
        %2290 = vmatpush1.bf16.msra.mxu0 %v2210
        %2291 = vmatprep.mubr.bf16.mxu0 %v1993
        %2292 = vmatmul.mubr.bf16.gmra.mrb[0].mxu0 %v1992
        %v2293 = vpop.f32.mrb[0].mxu0
        %v2294 = vadd.f32 %v2065, %v2293
        %v2295 = vpop.f32.mrb[0].mxu0
        %v2296 = vpop.f32.mrb[0].mxu0
        %v2297 = vpop.f32.mrb[0].mxu0
        %2298 = vdwg.mxu0
        %2299 = vmatprep.subr.bf16.mxu0 0
        %2300 = vmatpush1.bf16.msra.mxu0 %v2211
        %2301 = vmatprep.subr.bf16.mxu0 0
        %2302 = vmatpush1.bf16.msra.mxu0 %v2212
        %2303 = vmatprep.subr.bf16.mxu0 0
        %2304 = vmatpush1.bf16.msra.mxu0 %v2213
        %2305 = vmatprep.subr.bf16.mxu0 0
        %2306 = vmatpush1.bf16.msra.mxu0 %v2214
        %2307 = vmatprep.subr.bf16.mxu0 0
        %2308 = vmatpush1.bf16.msra.mxu0 %v2215
        %2309 = vmatprep.subr.bf16.mxu0 0
        %2310 = vmatpush1.bf16.msra.mxu0 %v2216
        %2311 = vmatprep.subr.bf16.mxu0 0
        %2312 = vmatpush1.bf16.msra.mxu0 %v2217
        %2313 = vmatprep.subr.bf16.mxu0 0
        %2314 = vmatpush1.bf16.msra.mxu0 %v2218
        %2315 = vmatprep.subr.bf16.mxu0 0
        %2316 = vmatpush1.bf16.msra.mxu0 %v2219
        %2317 = vmatprep.subr.bf16.mxu0 0
        %2318 = vmatpush1.bf16.msra.mxu0 %v2220
        %2319 = vmatprep.subr.bf16.mxu0 0
        %2320 = vmatpush1.bf16.msra.mxu0 %v2221
        %2321 = vmatprep.subr.bf16.mxu0 0
        %2322 = vmatpush1.bf16.msra.mxu0 %v2222
        %2323 = vmatprep.subr.bf16.mxu0 0
        %2324 = vmatpush1.bf16.msra.mxu0 %v2223
        %2325 = vmatprep.subr.bf16.mxu0 0
        %2326 = vmatpush1.bf16.msra.mxu0 %v2224
        %2327 = vmatprep.subr.bf16.mxu0 0
        %2328 = vmatpush1.bf16.msra.mxu0 %v2225
        %2329 = vmatprep.subr.bf16.mxu0 0
        %2330 = vmatpush1.bf16.msra.mxu0 %v2226
        %2331 = vmatprep.mubr.bf16.mxu0 %v1995
        %2332 = vmatmul.mubr.bf16.gmra.mrb[0].mxu0 %v1994
        %v2333 = vpop.f32.mrb[0].mxu0
        %v2334 = vadd.f32 %v2294, %v2333
        %v2335 = vpop.f32.mrb[0].mxu0
        %v2336 = vpop.f32.mrb[0].mxu0
        %v2337 = vpop.f32.mrb[0].mxu0
        %2338 = vdwg.mxu0
        %v2339 = vadd.f32 %v689, %v2334
        %v2340 = vld [vmem:[%s8] sm:$0x1]
        %v2341 = vld [vmem:[%s9] sm:$0x1]
        %2342 = vadd.xlane.f32.xlu0 %v2339
        %v2343 = vpop.xlane.xlu0 %2342
        %v2344 = vmul.f32 %v2343, 0.03125
        %v2345 = vsub.f32 %v2339, %v2344
        %v2346 = vsel %vm667, %v2345, 0.0
        %v2347 = vmul.f32 %v2346, %v2346
        %2348 = vadd.xlane.f32.xlu0 %v2347
        %v2349 = vpop.xlane.xlu0 %2348
        %v2350 = vmul.f32 %v2349, 0.03125
        %v2351 = vadd.f32 %v2350, 1e-12
        %v2352 = vrsqrt.pop %v2351
        %v2353 = vmul.f32 %v2346, %v2352
        %v2355 = vlaneseq
        %v2356 = vshrl.u32 %v2355, 7
        %v2357 = vsub.s32 0, %v2356
        %v2358 = vrot.slane %v2340, %v2357
        %v2360 = vmul.f32 %v2353, %v2358
        %v2362 = vlaneseq
        %v2363 = vshrl.u32 %v2362, 7
        %v2364 = vsub.s32 0, %v2363
        %v2365 = vrot.slane %v2341, %v2364
        %v2367 = vadd.f32 %v2360, %v2365
        %v2368 = vpack.c.bf16 %v2367, %v2367
        %v2369 = vld [vmem:[#allocation13] sm:$0xf]
        %v2370 = vld [vmem:[#allocation13 + $0x4] sm:$0xf]
        %v2371 = vld [vmem:[#allocation13 + $0x8] sm:$0xf]
        %v2372 = vld [vmem:[#allocation13 + $0xc] sm:$0xf]
        %v2373 = vld [vmem:[#allocation13 + $0x10] sm:$0xf]
        %v2374 = vld [vmem:[#allocation13 + $0x14] sm:$0xf]
        %v2375 = vld [vmem:[#allocation13 + $0x18] sm:$0xf]
        %v2376 = vld [vmem:[#allocation13 + $0x1c] sm:$0xf]
        %v2377 = vld [vmem:[#allocation13 + $0x20] sm:$0xf]
        %v2378 = vld [vmem:[#allocation13 + $0x24] sm:$0xf]
        %v2379 = vld [vmem:[#allocation13 + $0x28] sm:$0xf]
        %v2380 = vld [vmem:[#allocation13 + $0x2c] sm:$0xf]
        %v2381 = vld [vmem:[#allocation13 + $0x30] sm:$0xf]
        %v2382 = vld [vmem:[#allocation13 + $0x34] sm:$0xf]
        %v2383 = vld [vmem:[#allocation13 + $0x38] sm:$0xf]
        %v2384 = vld [vmem:[#allocation13 + $0x3c] sm:$0xf]
        %v2385 = vld [vmem:[%s11] sm:$0x1]
        %v2387 = vlaneseq
        %v2388 = vshrl.u32 %v2387, 7
        %v2389 = vsub.s32 0, %v2388
        %v2390 = vrot.slane %v2385, %v2389
        %v2408 = vunpack.c.l.b16 %v2369
        %v2409 = vunpack.c.l.b16 %v2370
        %v2410 = vunpack.c.l.b16 %v2371
        %v2411 = vunpack.c.l.b16 %v2372
        %v2412 = vunpack.c.l.b16 %v2373
        %v2413 = vunpack.c.l.b16 %v2374
        %v2414 = vunpack.c.l.b16 %v2375
        %v2415 = vunpack.c.l.b16 %v2376
        %v2416 = vunpack.c.l.b16 %v2377
        %v2417 = vunpack.c.l.b16 %v2378
        %v2418 = vunpack.c.l.b16 %v2379
        %v2419 = vunpack.c.l.b16 %v2380
        %v2420 = vunpack.c.l.b16 %v2381
        %v2421 = vunpack.c.l.b16 %v2382
        %v2422 = vunpack.c.l.b16 %v2383
        %v2423 = vunpack.c.l.b16 %v2384
        %v2424 = vpack.c.b16 %v2409, %v2408
        %v2425 = vpack.c.b16 %v2411, %v2410
        %v2426 = vpack.c.b16 %v2413, %v2412
        %v2427 = vpack.c.b16 %v2415, %v2414
        %v2428 = vpack.c.b16 %v2417, %v2416
        %v2429 = vpack.c.b16 %v2419, %v2418
        %v2430 = vpack.c.b16 %v2421, %v2420
        %v2431 = vpack.c.b16 %v2423, %v2422
        %2440 = vmatprep.subr.bf16.mxu0 0
        %2441 = vmatpush1.bf16.msra.mxu0 %v2424
        %2442 = vmatprep.subr.bf16.mxu0 0
        %2443 = vmatpush1.bf16.msra.mxu0 %v2425
        %2444 = vmatprep.subr.bf16.mxu0 0
        %2445 = vmatpush1.bf16.msra.mxu0 %v2426
        %2446 = vmatprep.subr.bf16.mxu0 0
        %2447 = vmatpush1.bf16.msra.mxu0 %v2427
        %2448 = vmatprep.subr.bf16.mxu0 0
        %2449 = vmatpush1.bf16.msra.mxu0 %v2428
        %2450 = vmatprep.subr.bf16.mxu0 0
        %2451 = vmatpush1.bf16.msra.mxu0 %v2429
        %2452 = vmatprep.subr.bf16.mxu0 0
        %2453 = vmatpush1.bf16.msra.mxu0 %v2430
        %2454 = vmatprep.subr.bf16.mxu0 0
        %2455 = vmatpush1.bf16.msra.mxu0 %v2431
        %2456 = vmatprep.subr.bf16.mxu0 0
        %2457 = vmatpush1.bf16.msra.mxu0 0
        %2458 = vmatprep.subr.bf16.mxu0 0
        %2459 = vmatpush1.bf16.msra.mxu0 0
        %2460 = vmatprep.subr.bf16.mxu0 0
        %2461 = vmatpush1.bf16.msra.mxu0 0
        %2462 = vmatprep.subr.bf16.mxu0 0
        %2463 = vmatpush1.bf16.msra.mxu0 0
        %2464 = vmatprep.subr.bf16.mxu0 0
        %2465 = vmatpush1.bf16.msra.mxu0 0
        %2466 = vmatprep.subr.bf16.mxu0 0
        %2467 = vmatpush1.bf16.msra.mxu0 0
        %2468 = vmatprep.subr.bf16.mxu0 0
        %2469 = vmatpush1.bf16.msra.mxu0 0
        %2470 = vmatprep.subr.bf16.mxu0 0
        %2471 = vmatpush1.bf16.msra.mxu0 0
        %2472 = vmatprep.mubr.bf16.mxu0 0
        %2473 = vmatmul.mubr.bf16.gmra.mrb[0].mxu0 %v2368
        %v2474 = vpop.f32.mrb[0].mxu0
        %v2475 = vadd.f32 %v2390, %v2474
        %v2476 = vpop.f32.mrb[0].mxu0
        %v2477 = vpop.f32.mrb[0].mxu0
        %v2478 = vpop.f32.mrb[0].mxu0
        %2479 = vdwg.mxu0
        %v2480 = vmul.f32 %v2475, 0.5
        %v2481 = vmul.f32 %v2475, 0.044715
        %v2482 = vmul.f32 %v2481, %v2475
        %v2483 = vmul.f32 %v2482, %v2475
        %v2484 = vadd.f32 %v2475, %v2483
        %v2485 = vmul.f32 %v2484, 0.7978846
        %v2486 = vtanh.pop %v2485
        %v2487 = vadd.f32 %v2486, 1.0
        %v2488 = vmul.f32 %v2480, %v2487
        %v2489 = vpack.c.bf16 %v2488, %v2488
        %v2490 = vld [vmem:[#allocation14] sm:$0xf]
        %v2491 = vld [vmem:[#allocation14 + $0x4] sm:$0xf]
        %v2492 = vld [vmem:[#allocation14 + $0x8] sm:$0xf]
        %v2493 = vld [vmem:[#allocation14 + $0xc] sm:$0xf]
        %v2494 = vld [vmem:[#allocation14 + $0x10] sm:$0xf]
        %v2495 = vld [vmem:[#allocation14 + $0x14] sm:$0xf]
        %v2496 = vld [vmem:[#allocation14 + $0x18] sm:$0xf]
        %v2497 = vld [vmem:[#allocation14 + $0x1c] sm:$0xf]
        %v2498 = vld [vmem:[#allocation14 + $0x20] sm:$0xf]
        %v2499 = vld [vmem:[#allocation14 + $0x24] sm:$0xf]
        %v2500 = vld [vmem:[#allocation14 + $0x28] sm:$0xf]
        %v2501 = vld [vmem:[#allocation14 + $0x2c] sm:$0xf]
        %v2502 = vld [vmem:[#allocation14 + $0x30] sm:$0xf]
        %v2503 = vld [vmem:[#allocation14 + $0x34] sm:$0xf]
        %v2504 = vld [vmem:[#allocation14 + $0x38] sm:$0xf]
        %v2505 = vld [vmem:[#allocation14 + $0x3c] sm:$0xf]
        %v2506 = vld [vmem:[%s13] sm:$0x1]
        %v2508 = vlaneseq
        %v2509 = vshrl.u32 %v2508, 7
        %v2510 = vsub.s32 0, %v2509
        %v2511 = vrot.slane %v2506, %v2510
        %v2529 = vunpack.c.l.b16 %v2490
        %v2530 = vunpack.c.l.b16 %v2491
        %v2531 = vunpack.c.l.b16 %v2492
        %v2532 = vunpack.c.l.b16 %v2493
        %v2533 = vunpack.c.l.b16 %v2494
        %v2534 = vunpack.c.l.b16 %v2495
        %v2535 = vunpack.c.l.b16 %v2496
        %v2536 = vunpack.c.l.b16 %v2497
        %v2537 = vunpack.c.l.b16 %v2498
        %v2538 = vunpack.c.l.b16 %v2499
        %v2539 = vunpack.c.l.b16 %v2500
        %v2540 = vunpack.c.l.b16 %v2501
        %v2541 = vunpack.c.l.b16 %v2502
        %v2542 = vunpack.c.l.b16 %v2503
        %v2543 = vunpack.c.l.b16 %v2504
        %v2544 = vunpack.c.l.b16 %v2505
        %v2545 = vpack.c.b16 %v2530, %v2529
        %v2546 = vpack.c.b16 %v2532, %v2531
        %v2547 = vpack.c.b16 %v2534, %v2533
        %v2548 = vpack.c.b16 %v2536, %v2535
        %v2549 = vpack.c.b16 %v2538, %v2537
        %v2550 = vpack.c.b16 %v2540, %v2539
        %v2551 = vpack.c.b16 %v2542, %v2541
        %v2552 = vpack.c.b16 %v2544, %v2543
        %2561 = vmatprep.subr.bf16.mxu0 0
        %2562 = vmatpush1.bf16.msra.mxu0 %v2545
        %2563 = vmatprep.subr.bf16.mxu0 0
        %2564 = vmatpush1.bf16.msra.mxu0 %v2546
        %2565 = vmatprep.subr.bf16.mxu0 0
        %2566 = vmatpush1.bf16.msra.mxu0 %v2547
        %2567 = vmatprep.subr.bf16.mxu0 0
        %2568 = vmatpush1.bf16.msra.mxu0 %v2548
        %2569 = vmatprep.subr.bf16.mxu0 0
        %2570 = vmatpush1.bf16.msra.mxu0 %v2549
        %2571 = vmatprep.subr.bf16.mxu0 0
        %2572 = vmatpush1.bf16.msra.mxu0 %v2550
        %2573 = vmatprep.subr.bf16.mxu0 0
        %2574 = vmatpush1.bf16.msra.mxu0 %v2551
        %2575 = vmatprep.subr.bf16.mxu0 0
        %2576 = vmatpush1.bf16.msra.mxu0 %v2552
        %2577 = vmatprep.subr.bf16.mxu0 0
        %2578 = vmatpush1.bf16.msra.mxu0 0
        %2579 = vmatprep.subr.bf16.mxu0 0
        %2580 = vmatpush1.bf16.msra.mxu0 0
        %2581 = vmatprep.subr.bf16.mxu0 0
        %2582 = vmatpush1.bf16.msra.mxu0 0
        %2583 = vmatprep.subr.bf16.mxu0 0
        %2584 = vmatpush1.bf16.msra.mxu0 0
        %2585 = vmatprep.subr.bf16.mxu0 0
        %2586 = vmatpush1.bf16.msra.mxu0 0
        %2587 = vmatprep.subr.bf16.mxu0 0
        %2588 = vmatpush1.bf16.msra.mxu0 0
        %2589 = vmatprep.subr.bf16.mxu0 0
        %2590 = vmatpush1.bf16.msra.mxu0 0
        %2591 = vmatprep.subr.bf16.mxu0 0
        %2592 = vmatpush1.bf16.msra.mxu0 0
        %2593 = vmatprep.mubr.bf16.mxu0 0
        %2594 = vmatmul.mubr.bf16.gmra.mrb[0].mxu0 %v2489
        %v2595 = vpop.f32.mrb[0].mxu0
        %v2596 = vadd.f32 %v2511, %v2595
        %v2597 = vpop.f32.mrb[0].mxu0
        %v2598 = vpop.f32.mrb[0].mxu0
        %v2599 = vpop.f32.mrb[0].mxu0
        %2600 = vdwg.mxu0
        %v2601 = vadd.f32 %v2367, %v2596
        %v2602 = vld [vmem:[%s14] sm:$0x1]
        %v2603 = vld [vmem:[%s15] sm:$0x1]
        %2604 = vadd.xlane.f32.xlu0 %v2601
        %v2605 = vpop.xlane.xlu0 %2604
        %v2606 = vmul.f32 %v2605, 0.03125
        %v2607 = vsub.f32 %v2601, %v2606
        %v2608 = vsel %vm667, %v2607, 0.0
        %v2609 = vmul.f32 %v2608, %v2608
        %2610 = vadd.xlane.f32.xlu0 %v2609
        %v2611 = vpop.xlane.xlu0 %2610
        %v2612 = vmul.f32 %v2611, 0.03125
        %v2613 = vadd.f32 %v2612, 1e-12
        %v2614 = vrsqrt.pop %v2613
        %v2615 = vmul.f32 %v2608, %v2614
        %v2617 = vlaneseq
        %v2618 = vshrl.u32 %v2617, 7
        %v2619 = vsub.s32 0, %v2618
        %v2620 = vrot.slane %v2602, %v2619
        %v2622 = vmul.f32 %v2615, %v2620
        %v2624 = vlaneseq
        %v2625 = vshrl.u32 %v2624, 7
        %v2626 = vsub.s32 0, %v2625
        %v2627 = vrot.slane %v2603, %v2626
        %v2629 = vadd.f32 %v2622, %v2627
        %v2630 = vpack.c.bf16 %v2629, %v2629
        %s2631 = scalar_lea.vmem [#allocation8], 768
        %v2632 = vld [vmem:[%s2631] sm:$0xff]
        %v2633 = vld [vmem:[%s2631 + $0x8] sm:$0xff]
        %v2634 = vld [vmem:[%s2631 + $0x10] sm:$0xff]
        %v2635 = vld [vmem:[%s2631 + $0x18] sm:$0xff]
        %v2636 = vld [vmem:[%s2631 + $0x20] sm:$0xff]
        %v2637 = vld [vmem:[%s2631 + $0x28] sm:$0xff]
        %v2638 = vld [vmem:[%s2631 + $0x30] sm:$0xff]
        %v2639 = vld [vmem:[%s2631 + $0x38] sm:$0xff]
        %v2640 = vld [vmem:[%s2631 + $0x40] sm:$0xff]
        %v2641 = vld [vmem:[%s2631 + $0x48] sm:$0xff]
        %v2642 = vld [vmem:[%s2631 + $0x50] sm:$0xff]
        %v2643 = vld [vmem:[%s2631 + $0x58] sm:$0xff]
        %v2644 = vld [vmem:[%s2631 + $0x60] sm:$0xff]
        %v2645 = vld [vmem:[%s2631 + $0x68] sm:$0xff]
        %v2646 = vld [vmem:[%s2631 + $0x70] sm:$0xff]
        %v2647 = vld [vmem:[%s2631 + $0x78] sm:$0xff]
        %v2648 = vld [vmem:[%s2631 + $0x80] sm:$0xff]
        %v2649 = vld [vmem:[%s2631 + $0x88] sm:$0xff]
        %v2650 = vld [vmem:[%s2631 + $0x90] sm:$0xff]
        %v2651 = vld [vmem:[%s2631 + $0x98] sm:$0xff]
        %v2652 = vld [vmem:[%s2631 + $0xa0] sm:$0xff]
        %v2653 = vld [vmem:[%s2631 + $0xa8] sm:$0xff]
        %v2654 = vld [vmem:[%s2631 + $0xb0] sm:$0xff]
        %v2655 = vld [vmem:[%s2631 + $0xb8] sm:$0xff]
        %v2656 = vld [vmem:[%s2631 + $0xc0] sm:$0xff]
        %v2657 = vld [vmem:[%s2631 + $0xc8] sm:$0xff]
        %v2658 = vld [vmem:[%s2631 + $0xd0] sm:$0xff]
        %v2659 = vld [vmem:[%s2631 + $0xd8] sm:$0xff]
        %v2660 = vld [vmem:[%s2631 + $0xe0] sm:$0xff]
        %v2661 = vld [vmem:[%s2631 + $0xe8] sm:$0xff]
        %v2662 = vld [vmem:[%s2631 + $0xf0] sm:$0xff]
        %v2663 = vld [vmem:[%s2631 + $0xf8] sm:$0xff]
        %v2664 = vld [vmem:[%s2631 + $0x100] sm:$0xff]
        %v2665 = vld [vmem:[%s2631 + $0x108] sm:$0xff]
        %v2666 = vld [vmem:[%s2631 + $0x110] sm:$0xff]
        %v2667 = vld [vmem:[%s2631 + $0x118] sm:$0xff]
        %v2668 = vld [vmem:[%s2631 + $0x120] sm:$0xff]
        %v2669 = vld [vmem:[%s2631 + $0x128] sm:$0xff]
        %v2670 = vld [vmem:[%s2631 + $0x130] sm:$0xff]
        %v2671 = vld [vmem:[%s2631 + $0x138] sm:$0xff]
        %v2672 = vld [vmem:[%s2631 + $0x140] sm:$0xff]
        %v2673 = vld [vmem:[%s2631 + $0x148] sm:$0xff]
        %v2674 = vld [vmem:[%s2631 + $0x150] sm:$0xff]
        %v2675 = vld [vmem:[%s2631 + $0x158] sm:$0xff]
        %v2676 = vld [vmem:[%s2631 + $0x160] sm:$0xff]
        %v2677 = vld [vmem:[%s2631 + $0x168] sm:$0xff]
        %v2678 = vld [vmem:[%s2631 + $0x170] sm:$0xff]
        %v2679 = vld [vmem:[%s2631 + $0x178] sm:$0xff]
        %v2680 = vld [vmem:[%s2631 + $0x180] sm:$0xff]
        %v2681 = vld [vmem:[%s2631 + $0x188] sm:$0xff]
        %v2682 = vld [vmem:[%s2631 + $0x190] sm:$0xff]
        %v2683 = vld [vmem:[%s2631 + $0x198] sm:$0xff]
        %v2684 = vld [vmem:[%s2631 + $0x1a0] sm:$0xff]
        %v2685 = vld [vmem:[%s2631 + $0x1a8] sm:$0xff]
        %v2686 = vld [vmem:[%s2631 + $0x1b0] sm:$0xff]
        %v2687 = vld [vmem:[%s2631 + $0x1b8] sm:$0xff]
        %v2688 = vld [vmem:[%s2631 + $0x1c0] sm:$0xff]
        %v2689 = vld [vmem:[%s2631 + $0x1c8] sm:$0xff]
        %v2690 = vld [vmem:[%s2631 + $0x1d0] sm:$0xff]
        %v2691 = vld [vmem:[%s2631 + $0x1d8] sm:$0xff]
        %v2692 = vld [vmem:[%s2631 + $0x1e0] sm:$0xff]
        %v2693 = vld [vmem:[%s2631 + $0x1e8] sm:$0xff]
        %v2694 = vld [vmem:[%s2631 + $0x1f0] sm:$0xff]
        %v2695 = vld [vmem:[%s2631 + $0x1f8] sm:$0xff]
        %v2696 = vld [vmem:[%s2631 + $0x200] sm:$0xff]
        %v2697 = vld [vmem:[%s2631 + $0x208] sm:$0xff]
        %v2698 = vld [vmem:[%s2631 + $0x210] sm:$0xff]
        %v2699 = vld [vmem:[%s2631 + $0x218] sm:$0xff]
        %v2700 = vld [vmem:[%s2631 + $0x220] sm:$0xff]
        %v2701 = vld [vmem:[%s2631 + $0x228] sm:$0xff]
        %v2702 = vld [vmem:[%s2631 + $0x230] sm:$0xff]
        %v2703 = vld [vmem:[%s2631 + $0x238] sm:$0xff]
        %v2704 = vld [vmem:[%s2631 + $0x240] sm:$0xff]
        %v2705 = vld [vmem:[%s2631 + $0x248] sm:$0xff]
        %v2706 = vld [vmem:[%s2631 + $0x250] sm:$0xff]
        %v2707 = vld [vmem:[%s2631 + $0x258] sm:$0xff]
        %v2708 = vld [vmem:[%s2631 + $0x260] sm:$0xff]
        %v2709 = vld [vmem:[%s2631 + $0x268] sm:$0xff]
        %v2710 = vld [vmem:[%s2631 + $0x270] sm:$0xff]
        %v2711 = vld [vmem:[%s2631 + $0x278] sm:$0xff]
        %v2712 = vld [vmem:[%s2631 + $0x280] sm:$0xff]
        %v2713 = vld [vmem:[%s2631 + $0x288] sm:$0xff]
        %v2714 = vld [vmem:[%s2631 + $0x290] sm:$0xff]
        %v2715 = vld [vmem:[%s2631 + $0x298] sm:$0xff]
        %v2716 = vld [vmem:[%s2631 + $0x2a0] sm:$0xff]
        %v2717 = vld [vmem:[%s2631 + $0x2a8] sm:$0xff]
        %v2718 = vld [vmem:[%s2631 + $0x2b0] sm:$0xff]
        %v2719 = vld [vmem:[%s2631 + $0x2b8] sm:$0xff]
        %v2720 = vld [vmem:[%s2631 + $0x2c0] sm:$0xff]
        %v2721 = vld [vmem:[%s2631 + $0x2c8] sm:$0xff]
        %v2722 = vld [vmem:[%s2631 + $0x2d0] sm:$0xff]
        %v2723 = vld [vmem:[%s2631 + $0x2d8] sm:$0xff]
        %v2724 = vld [vmem:[%s2631 + $0x2e0] sm:$0xff]
        %v2725 = vld [vmem:[%s2631 + $0x2e8] sm:$0xff]
        %v2726 = vld [vmem:[%s2631 + $0x2f0] sm:$0xff]
        %v2727 = vld [vmem:[%s2631 + $0x2f8] sm:$0xff]
        %s2728 = scalar_lea.vmem [#allocation10], 12
        %v2729 = vld [vmem:[%s2728] sm:$0xff]
        %v2730 = vld [vmem:[%s2728 + $0x8] sm:$0xf]
        %v2733 = vlaneseq
        %v2734 = vshrl.u32 %v2733, 7
        %v2735 = vsub.s32 0, %v2734
        %v2736 = vrot.slane %v2729, %v2735
        %v2737 = vlaneseq
        %v2738 = vshrl.u32 %v2737, 7
        %v2739 = vsub.s32 1, %v2738
        %v2740 = vrot.slane %v2729, %v2739
        %v2741 = vlaneseq
        %v2742 = vshrl.u32 %v2741, 7
        %v2743 = vsub.s32 2, %v2742
        %v2744 = vrot.slane %v2729, %v2743
        %v2745 = vlaneseq
        %v2746 = vshrl.u32 %v2745, 7
        %v2747 = vsub.s32 3, %v2746
        %v2748 = vrot.slane %v2729, %v2747
        %v2749 = vlaneseq
        %v2750 = vshrl.u32 %v2749, 7
        %v2751 = vsub.s32 4, %v2750
        %v2752 = vrot.slane %v2729, %v2751
        %v2753 = vlaneseq
        %v2754 = vshrl.u32 %v2753, 7
        %v2755 = vsub.s32 5, %v2754
        %v2756 = vrot.slane %v2729, %v2755
        %v2757 = vlaneseq
        %v2758 = vshrl.u32 %v2757, 7
        %v2759 = vsub.s32 6, %v2758
        %v2760 = vrot.slane %v2729, %v2759
        %v2761 = vlaneseq
        %v2762 = vshrl.u32 %v2761, 7
        %v2763 = vsub.s32 7, %v2762
        %v2764 = vrot.slane %v2729, %v2763
        %v2765 = vlaneseq
        %v2766 = vshrl.u32 %v2765, 7
        %v2767 = vsub.s32 0, %v2766
        %v2768 = vrot.slane %v2730, %v2767
        %v2769 = vlaneseq
        %v2770 = vshrl.u32 %v2769, 7
        %v2771 = vsub.s32 1, %v2770
        %v2772 = vrot.slane %v2730, %v2771
        %v2773 = vlaneseq
        %v2774 = vshrl.u32 %v2773, 7
        %v2775 = vsub.s32 2, %v2774
        %v2776 = vrot.slane %v2730, %v2775
        %v2777 = vlaneseq
        %v2778 = vshrl.u32 %v2777, 7
        %v2779 = vsub.s32 3, %v2778
        %v2780 = vrot.slane %v2730, %v2779
        %v2889 = vunpack.c.l.b16 %v2632
        %v2890 = vunpack.c.h.b16 %v2632
        %v2891 = vunpack.c.l.b16 %v2633
        %v2892 = vunpack.c.h.b16 %v2633
        %v2893 = vunpack.c.l.b16 %v2634
        %v2894 = vunpack.c.h.b16 %v2634
        %v2895 = vunpack.c.l.b16 %v2635
        %v2896 = vunpack.c.h.b16 %v2635
        %v2897 = vunpack.c.l.b16 %v2636
        %v2898 = vunpack.c.h.b16 %v2636
        %v2899 = vunpack.c.l.b16 %v2637
        %v2900 = vunpack.c.h.b16 %v2637
        %v2901 = vunpack.c.l.b16 %v2638
        %v2902 = vunpack.c.h.b16 %v2638
        %v2903 = vunpack.c.l.b16 %v2639
        %v2904 = vunpack.c.h.b16 %v2639
        %v2905 = vunpack.c.l.b16 %v2640
        %v2906 = vunpack.c.h.b16 %v2640
        %v2907 = vunpack.c.l.b16 %v2641
        %v2908 = vunpack.c.h.b16 %v2641
        %v2909 = vunpack.c.l.b16 %v2642
        %v2910 = vunpack.c.h.b16 %v2642
        %v2911 = vunpack.c.l.b16 %v2643
        %v2912 = vunpack.c.h.b16 %v2643
        %v2913 = vunpack.c.l.b16 %v2644
        %v2914 = vunpack.c.h.b16 %v2644
        %v2915 = vunpack.c.l.b16 %v2645
        %v2916 = vunpack.c.h.b16 %v2645
        %v2917 = vunpack.c.l.b16 %v2646
        %v2918 = vunpack.c.h.b16 %v2646
        %v2919 = vunpack.c.l.b16 %v2647
        %v2920 = vunpack.c.h.b16 %v2647
        %v2921 = vunpack.c.l.b16 %v2648
        %v2922 = vunpack.c.h.b16 %v2648
        %v2923 = vunpack.c.l.b16 %v2649
        %v2924 = vunpack.c.h.b16 %v2649
        %v2925 = vunpack.c.l.b16 %v2650
        %v2926 = vunpack.c.h.b16 %v2650
        %v2927 = vunpack.c.l.b16 %v2651
        %v2928 = vunpack.c.h.b16 %v2651
        %v2929 = vunpack.c.l.b16 %v2652
        %v2930 = vunpack.c.h.b16 %v2652
        %v2931 = vunpack.c.l.b16 %v2653
        %v2932 = vunpack.c.h.b16 %v2653
        %v2933 = vunpack.c.l.b16 %v2654
        %v2934 = vunpack.c.h.b16 %v2654
        %v2935 = vunpack.c.l.b16 %v2655
        %v2936 = vunpack.c.h.b16 %v2655
        %v2937 = vunpack.c.l.b16 %v2656
        %v2938 = vunpack.c.h.b16 %v2656
        %v2939 = vunpack.c.l.b16 %v2657
        %v2940 = vunpack.c.h.b16 %v2657
        %v2941 = vunpack.c.l.b16 %v2658
        %v2942 = vunpack.c.h.b16 %v2658
        %v2943 = vunpack.c.l.b16 %v2659
        %v2944 = vunpack.c.h.b16 %v2659
        %v2945 = vunpack.c.l.b16 %v2660
        %v2946 = vunpack.c.h.b16 %v2660
        %v2947 = vunpack.c.l.b16 %v2661
        %v2948 = vunpack.c.h.b16 %v2661
        %v2949 = vunpack.c.l.b16 %v2662
        %v2950 = vunpack.c.h.b16 %v2662
        %v2951 = vunpack.c.l.b16 %v2663
        %v2952 = vunpack.c.h.b16 %v2663
        %v2953 = vunpack.c.l.b16 %v2664
        %v2954 = vunpack.c.h.b16 %v2664
        %v2955 = vunpack.c.l.b16 %v2665
        %v2956 = vunpack.c.h.b16 %v2665
        %v2957 = vunpack.c.l.b16 %v2666
        %v2958 = vunpack.c.h.b16 %v2666
        %v2959 = vunpack.c.l.b16 %v2667
        %v2960 = vunpack.c.h.b16 %v2667
        %v2961 = vunpack.c.l.b16 %v2668
        %v2962 = vunpack.c.h.b16 %v2668
        %v2963 = vunpack.c.l.b16 %v2669
        %v2964 = vunpack.c.h.b16 %v2669
        %v2965 = vunpack.c.l.b16 %v2670
        %v2966 = vunpack.c.h.b16 %v2670
        %v2967 = vunpack.c.l.b16 %v2671
        %v2968 = vunpack.c.h.b16 %v2671
        %v2969 = vunpack.c.l.b16 %v2672
        %v2970 = vunpack.c.h.b16 %v2672
        %v2971 = vunpack.c.l.b16 %v2673
        %v2972 = vunpack.c.h.b16 %v2673
        %v2973 = vunpack.c.l.b16 %v2674
        %v2974 = vunpack.c.h.b16 %v2674
        %v2975 = vunpack.c.l.b16 %v2675
        %v2976 = vunpack.c.h.b16 %v2675
        %v2977 = vunpack.c.l.b16 %v2676
        %v2978 = vunpack.c.h.b16 %v2676
        %v2979 = vunpack.c.l.b16 %v2677
        %v2980 = vunpack.c.h.b16 %v2677
        %v2981 = vunpack.c.l.b16 %v2678
        %v2982 = vunpack.c.h.b16 %v2678
        %v2983 = vunpack.c.l.b16 %v2679
        %v2984 = vunpack.c.h.b16 %v2679
        %v2985 = vunpack.c.l.b16 %v2680
        %v2986 = vunpack.c.h.b16 %v2680
        %v2987 = vunpack.c.l.b16 %v2681
        %v2988 = vunpack.c.h.b16 %v2681
        %v2989 = vunpack.c.l.b16 %v2682
        %v2990 = vunpack.c.h.b16 %v2682
        %v2991 = vunpack.c.l.b16 %v2683
        %v2992 = vunpack.c.h.b16 %v2683
        %v2993 = vunpack.c.l.b16 %v2684
        %v2994 = vunpack.c.h.b16 %v2684
        %v2995 = vunpack.c.l.b16 %v2685
        %v2996 = vunpack.c.h.b16 %v2685
        %v2997 = vunpack.c.l.b16 %v2686
        %v2998 = vunpack.c.h.b16 %v2686
        %v2999 = vunpack.c.l.b16 %v2687
        %v3000 = vunpack.c.h.b16 %v2687
        %v3001 = vunpack.c.l.b16 %v2688
        %v3002 = vunpack.c.h.b16 %v2688
        %v3003 = vunpack.c.l.b16 %v2689
        %v3004 = vunpack.c.h.b16 %v2689
        %v3005 = vunpack.c.l.b16 %v2690
        %v3006 = vunpack.c.h.b16 %v2690
        %v3007 = vunpack.c.l.b16 %v2691
        %v3008 = vunpack.c.h.b16 %v2691
        %v3009 = vunpack.c.l.b16 %v2692
        %v3010 = vunpack.c.h.b16 %v2692
        %v3011 = vunpack.c.l.b16 %v2693
        %v3012 = vunpack.c.h.b16 %v2693
        %v3013 = vunpack.c.l.b16 %v2694
        %v3014 = vunpack.c.h.b16 %v2694
        %v3015 = vunpack.c.l.b16 %v2695
        %v3016 = vunpack.c.h.b16 %v2695
        %v3017 = vunpack.c.l.b16 %v2696
        %v3018 = vunpack.c.h.b16 %v2696
        %v3019 = vunpack.c.l.b16 %v2697
        %v3020 = vunpack.c.h.b16 %v2697
        %v3021 = vunpack.c.l.b16 %v2698
        %v3022 = vunpack.c.h.b16 %v2698
        %v3023 = vunpack.c.l.b16 %v2699
        %v3024 = vunpack.c.h.b16 %v2699
        %v3025 = vunpack.c.l.b16 %v2700
        %v3026 = vunpack.c.h.b16 %v2700
        %v3027 = vunpack.c.l.b16 %v2701
        %v3028 = vunpack.c.h.b16 %v2701
        %v3029 = vunpack.c.l.b16 %v2702
        %v3030 = vunpack.c.h.b16 %v2702
        %v3031 = vunpack.c.l.b16 %v2703
        %v3032 = vunpack.c.h.b16 %v2703
        %v3033 = vunpack.c.l.b16 %v2704
        %v3034 = vunpack.c.h.b16 %v2704
        %v3035 = vunpack.c.l.b16 %v2705
        %v3036 = vunpack.c.h.b16 %v2705
        %v3037 = vunpack.c.l.b16 %v2706
        %v3038 = vunpack.c.h.b16 %v2706
        %v3039 = vunpack.c.l.b16 %v2707
        %v3040 = vunpack.c.h.b16 %v2707
        %v3041 = vunpack.c.l.b16 %v2708
        %v3042 = vunpack.c.h.b16 %v2708
        %v3043 = vunpack.c.l.b16 %v2709
        %v3044 = vunpack.c.h.b16 %v2709
        %v3045 = vunpack.c.l.b16 %v2710
        %v3046 = vunpack.c.h.b16 %v2710
        %v3047 = vunpack.c.l.b16 %v2711
        %v3048 = vunpack.c.h.b16 %v2711
        %v3049 = vunpack.c.l.b16 %v2712
        %v3050 = vunpack.c.h.b16 %v2712
        %v3051 = vunpack.c.l.b16 %v2713
        %v3052 = vunpack.c.h.b16 %v2713
        %v3053 = vunpack.c.l.b16 %v2714
        %v3054 = vunpack.c.h.b16 %v2714
        %v3055 = vunpack.c.l.b16 %v2715
        %v3056 = vunpack.c.h.b16 %v2715
        %v3057 = vunpack.c.l.b16 %v2716
        %v3058 = vunpack.c.h.b16 %v2716
        %v3059 = vunpack.c.l.b16 %v2717
        %v3060 = vunpack.c.h.b16 %v2717
        %v3061 = vunpack.c.l.b16 %v2718
        %v3062 = vunpack.c.h.b16 %v2718
        %v3063 = vunpack.c.l.b16 %v2719
        %v3064 = vunpack.c.h.b16 %v2719
        %v3065 = vunpack.c.l.b16 %v2720
        %v3066 = vunpack.c.h.b16 %v2720
        %v3067 = vunpack.c.l.b16 %v2721
        %v3068 = vunpack.c.h.b16 %v2721
        %v3069 = vunpack.c.l.b16 %v2722
        %v3070 = vunpack.c.h.b16 %v2722
        %v3071 = vunpack.c.l.b16 %v2723
        %v3072 = vunpack.c.h.b16 %v2723
        %v3073 = vunpack.c.l.b16 %v2724
        %v3074 = vunpack.c.h.b16 %v2724
        %v3075 = vunpack.c.l.b16 %v2725
        %v3076 = vunpack.c.h.b16 %v2725
        %v3077 = vunpack.c.l.b16 %v2726
        %v3078 = vunpack.c.h.b16 %v2726
        %v3079 = vunpack.c.l.b16 %v2727
        %v3080 = vunpack.c.h.b16 %v2727
        %v3081 = vpack.c.b16 %v2901, %v2889
        %v3082 = vpack.c.b16 %v2902, %v2890
        %v3083 = vpack.c.b16 %v2903, %v2891
        %v3084 = vpack.c.b16 %v2904, %v2892
        %v3085 = vpack.c.b16 %v2905, %v2893
        %v3086 = vpack.c.b16 %v2906, %v2894
        %v3087 = vpack.c.b16 %v2907, %v2895
        %v3088 = vpack.c.b16 %v2908, %v2896
        %v3089 = vpack.c.b16 %v2909, %v2897
        %v3090 = vpack.c.b16 %v2910, %v2898
        %v3091 = vpack.c.b16 %v2911, %v2899
        %v3092 = vpack.c.b16 %v2912, %v2900
        %v3093 = vpack.c.b16 %v2925, %v2913
        %v3094 = vpack.c.b16 %v2926, %v2914
        %v3095 = vpack.c.b16 %v2927, %v2915
        %v3096 = vpack.c.b16 %v2928, %v2916
        %v3097 = vpack.c.b16 %v2929, %v2917
        %v3098 = vpack.c.b16 %v2930, %v2918
        %v3099 = vpack.c.b16 %v2931, %v2919
        %v3100 = vpack.c.b16 %v2932, %v2920
        %v3101 = vpack.c.b16 %v2933, %v2921
        %v3102 = vpack.c.b16 %v2934, %v2922
        %v3103 = vpack.c.b16 %v2935, %v2923
        %v3104 = vpack.c.b16 %v2936, %v2924
        %v3105 = vpack.c.b16 %v2949, %v2937
        %v3106 = vpack.c.b16 %v2950, %v2938
        %v3107 = vpack.c.b16 %v2951, %v2939
        %v3108 = vpack.c.b16 %v2952, %v2940
        %v3109 = vpack.c.b16 %v2953, %v2941
        %v3110 = vpack.c.b16 %v2954, %v2942
        %v3111 = vpack.c.b16 %v2955, %v2943
        %v3112 = vpack.c.b16 %v2956, %v2944
        %v3113 = vpack.c.b16 %v2957, %v2945
        %v3114 = vpack.c.b16 %v2958, %v2946
        %v3115 = vpack.c.b16 %v2959, %v2947
        %v3116 = vpack.c.b16 %v2960, %v2948
        %v3117 = vpack.c.b16 %v2973, %v2961
        %v3118 = vpack.c.b16 %v2974, %v2962
        %v3119 = vpack.c.b16 %v2975, %v2963
        %v3120 = vpack.c.b16 %v2976, %v2964
        %v3121 = vpack.c.b16 %v2977, %v2965
        %v3122 = vpack.c.b16 %v2978, %v2966
        %v3123 = vpack.c.b16 %v2979, %v2967
        %v3124 = vpack.c.b16 %v2980, %v2968
        %v3125 = vpack.c.b16 %v2981, %v2969
        %v3126 = vpack.c.b16 %v2982, %v2970
        %v3127 = vpack.c.b16 %v2983, %v2971
        %v3128 = vpack.c.b16 %v2984, %v2972
        %v3129 = vpack.c.b16 %v2997, %v2985
        %v3130 = vpack.c.b16 %v2998, %v2986
        %v3131 = vpack.c.b16 %v2999, %v2987
        %v3132 = vpack.c.b16 %v3000, %v2988
        %v3133 = vpack.c.b16 %v3001, %v2989
        %v3134 = vpack.c.b16 %v3002, %v2990
        %v3135 = vpack.c.b16 %v3003, %v2991
        %v3136 = vpack.c.b16 %v3004, %v2992
        %v3137 = vpack.c.b16 %v3005, %v2993
        %v3138 = vpack.c.b16 %v3006, %v2994
        %v3139 = vpack.c.b16 %v3007, %v2995
        %v3140 = vpack.c.b16 %v3008, %v2996
        %v3141 = vpack.c.b16 %v3021, %v3009
        %v3142 = vpack.c.b16 %v3022, %v3010
        %v3143 = vpack.c.b16 %v3023, %v3011
        %v3144 = vpack.c.b16 %v3024, %v3012
        %v3145 = vpack.c.b16 %v3025, %v3013
        %v3146 = vpack.c.b16 %v3026, %v3014
        %v3147 = vpack.c.b16 %v3027, %v3015
        %v3148 = vpack.c.b16 %v3028, %v3016
        %v3149 = vpack.c.b16 %v3029, %v3017
        %v3150 = vpack.c.b16 %v3030, %v3018
        %v3151 = vpack.c.b16 %v3031, %v3019
        %v3152 = vpack.c.b16 %v3032, %v3020
        %v3153 = vpack.c.b16 %v3045, %v3033
        %v3154 = vpack.c.b16 %v3046, %v3034
        %v3155 = vpack.c.b16 %v3047, %v3035
        %v3156 = vpack.c.b16 %v3048, %v3036
        %v3157 = vpack.c.b16 %v3049, %v3037
        %v3158 = vpack.c.b16 %v3050, %v3038
        %v3159 = vpack.c.b16 %v3051, %v3039
        %v3160 = vpack.c.b16 %v3052, %v3040
        %v3161 = vpack.c.b16 %v3053, %v3041
        %v3162 = vpack.c.b16 %v3054, %v3042
        %v3163 = vpack.c.b16 %v3055, %v3043
        %v3164 = vpack.c.b16 %v3056, %v3044
        %v3165 = vpack.c.b16 %v3069, %v3057
        %v3166 = vpack.c.b16 %v3070, %v3058
        %v3167 = vpack.c.b16 %v3071, %v3059
        %v3168 = vpack.c.b16 %v3072, %v3060
        %v3169 = vpack.c.b16 %v3073, %v3061
        %v3170 = vpack.c.b16 %v3074, %v3062
        %v3171 = vpack.c.b16 %v3075, %v3063
        %v3172 = vpack.c.b16 %v3076, %v3064
        %v3173 = vpack.c.b16 %v3077, %v3065
        %v3174 = vpack.c.b16 %v3078, %v3066
        %v3175 = vpack.c.b16 %v3079, %v3067
        %v3176 = vpack.c.b16 %v3080, %v3068
        %3273 = vmatprep.subr.bf16.mxu0 %v3082
        %3274 = vmatpush1.bf16.msra.mxu0 %v3081
        %3275 = vmatprep.subr.bf16.mxu0 %v3094
        %3276 = vmatpush1.bf16.msra.mxu0 %v3093
        %3277 = vmatprep.subr.bf16.mxu0 %v3106
        %3278 = vmatpush1.bf16.msra.mxu0 %v3105
        %3279 = vmatprep.subr.bf16.mxu0 %v3118
        %3280 = vmatpush1.bf16.msra.mxu0 %v3117
        %3281 = vmatprep.subr.bf16.mxu0 %v3130
        %3282 = vmatpush1.bf16.msra.mxu0 %v3129
        %3283 = vmatprep.subr.bf16.mxu0 %v3142
        %3284 = vmatpush1.bf16.msra.mxu0 %v3141
        %3285 = vmatprep.subr.bf16.mxu0 %v3154
        %3286 = vmatpush1.bf16.msra.mxu0 %v3153
        %3287 = vmatprep.subr.bf16.mxu0 %v3166
        %3288 = vmatpush1.bf16.msra.mxu0 %v3165
        %3289 = vmatprep.subr.bf16.mxu0 0
        %3290 = vmatpush1.bf16.msra.mxu0 0
        %3291 = vmatprep.subr.bf16.mxu0 0
        %3292 = vmatpush1.bf16.msra.mxu0 0
        %3293 = vmatprep.subr.bf16.mxu0 0
        %3294 = vmatpush1.bf16.msra.mxu0 0
        %3295 = vmatprep.subr.bf16.mxu0 0
        %3296 = vmatpush1.bf16.msra.mxu0 0
        %3297 = vmatprep.subr.bf16.mxu0 0
        %3298 = vmatpush1.bf16.msra.mxu0 0
        %3299 = vmatprep.subr.bf16.mxu0 0
        %3300 = vmatpush1.bf16.msra.mxu0 0
        %3301 = vmatprep.subr.bf16.mxu0 0
        %3302 = vmatpush1.bf16.msra.mxu0 0
        %3303 = vmatprep.subr.bf16.mxu0 0
        %3304 = vmatpush1.bf16.msra.mxu0 0
        %3305 = vmatprep.mubr.bf16.mxu0 0
        %3306 = vmatmul.mubr.bf16.gmra.mrb[0].mxu0 %v2630
        %v3307 = vpop.f32.mrb[0].mxu0
        %v3308 = vadd.f32 %v2736, %v3307
        %v3309 = vpop.f32.mrb[0].mxu0
        %v3310 = vadd.f32 %v2740, %v3309
        %v3311 = vpop.f32.mrb[0].mxu0
        %v3312 = vpop.f32.mrb[0].mxu0
        %3313 = vdwg.mxu0
        %3314 = vmatprep.subr.bf16.mxu0 %v3084
        %3315 = vmatpush1.bf16.msra.mxu0 %v3083
        %3316 = vmatprep.subr.bf16.mxu0 %v3096
        %3317 = vmatpush1.bf16.msra.mxu0 %v3095
        %3318 = vmatprep.subr.bf16.mxu0 %v3108
        %3319 = vmatpush1.bf16.msra.mxu0 %v3107
        %3320 = vmatprep.subr.bf16.mxu0 %v3120
        %3321 = vmatpush1.bf16.msra.mxu0 %v3119
        %3322 = vmatprep.subr.bf16.mxu0 %v3132
        %3323 = vmatpush1.bf16.msra.mxu0 %v3131
        %3324 = vmatprep.subr.bf16.mxu0 %v3144
        %3325 = vmatpush1.bf16.msra.mxu0 %v3143
        %3326 = vmatprep.subr.bf16.mxu0 %v3156
        %3327 = vmatpush1.bf16.msra.mxu0 %v3155
        %3328 = vmatprep.subr.bf16.mxu0 %v3168
        %3329 = vmatpush1.bf16.msra.mxu0 %v3167
        %3330 = vmatprep.subr.bf16.mxu0 0
        %3331 = vmatpush1.bf16.msra.mxu0 0
        %3332 = vmatprep.subr.bf16.mxu0 0
        %3333 = vmatpush1.bf16.msra.mxu0 0
        %3334 = vmatprep.subr.bf16.mxu0 0
        %3335 = vmatpush1.bf16.msra.mxu0 0
        %3336 = vmatprep.subr.bf16.mxu0 0
        %3337 = vmatpush1.bf16.msra.mxu0 0
        %3338 = vmatprep.subr.bf16.mxu0 0
        %3339 = vmatpush1.bf16.msra.mxu0 0
        %3340 = vmatprep.subr.bf16.mxu0 0
        %3341 = vmatpush1.bf16.msra.mxu0 0
        %3342 = vmatprep.subr.bf16.mxu0 0
        %3343 = vmatpush1.bf16.msra.mxu0 0
        %3344 = vmatprep.subr.bf16.mxu0 0
        %3345 = vmatpush1.bf16.msra.mxu0 0
        %3346 = vmatprep.mubr.bf16.mxu0 0
        %3347 = vmatmul.mubr.bf16.gmra.mrb[0].mxu0 %v2630
        %v3348 = vpop.f32.mrb[0].mxu0
        %v3349 = vadd.f32 %v2744, %v3348
        %v3350 = vpop.f32.mrb[0].mxu0
        %v3351 = vadd.f32 %v2748, %v3350
        %v3352 = vpop.f32.mrb[0].mxu0
        %v3353 = vpop.f32.mrb[0].mxu0
        %3354 = vdwg.mxu0
        %3355 = vmatprep.subr.bf16.mxu0 %v3086
        %3356 = vmatpush1.bf16.msra.mxu0 %v3085
        %3357 = vmatprep.subr.bf16.mxu0 %v3098
        %3358 = vmatpush1.bf16.msra.mxu0 %v3097
        %3359 = vmatprep.subr.bf16.mxu0 %v3110
        %3360 = vmatpush1.bf16.msra.mxu0 %v3109
        %3361 = vmatprep.subr.bf16.mxu0 %v3122
        %3362 = vmatpush1.bf16.msra.mxu0 %v3121
        %3363 = vmatprep.subr.bf16.mxu0 %v3134
        %3364 = vmatpush1.bf16.msra.mxu0 %v3133
        %3365 = vmatprep.subr.bf16.mxu0 %v3146
        %3366 = vmatpush1.bf16.msra.mxu0 %v3145
        %3367 = vmatprep.subr.bf16.mxu0 %v3158
        %3368 = vmatpush1.bf16.msra.mxu0 %v3157
        %3369 = vmatprep.subr.bf16.mxu0 %v3170
        %3370 = vmatpush1.bf16.msra.mxu0 %v3169
        %3371 = vmatprep.subr.bf16.mxu0 0
        %3372 = vmatpush1.bf16.msra.mxu0 0
        %3373 = vmatprep.subr.bf16.mxu0 0
        %3374 = vmatpush1.bf16.msra.mxu0 0
        %3375 = vmatprep.subr.bf16.mxu0 0
        %3376 = vmatpush1.bf16.msra.mxu0 0
        %3377 = vmatprep.subr.bf16.mxu0 0
        %3378 = vmatpush1.bf16.msra.mxu0 0
        %3379 = vmatprep.subr.bf16.mxu0 0
        %3380 = vmatpush1.bf16.msra.mxu0 0
        %3381 = vmatprep.subr.bf16.mxu0 0
        %3382 = vmatpush1.bf16.msra.mxu0 0
        %3383 = vmatprep.subr.bf16.mxu0 0
        %3384 = vmatpush1.bf16.msra.mxu0 0
        %3385 = vmatprep.subr.bf16.mxu0 0
        %3386 = vmatpush1.bf16.msra.mxu0 0
        %3387 = vmatprep.mubr.bf16.mxu0 0
        %3388 = vmatmul.mubr.bf16.gmra.mrb[0].mxu0 %v2630
        %v3389 = vpop.f32.mrb[0].mxu0
        %v3390 = vadd.f32 %v2752, %v3389
        %v3391 = vpop.f32.mrb[0].mxu0
        %v3392 = vadd.f32 %v2756, %v3391
        %v3393 = vpop.f32.mrb[0].mxu0
        %v3394 = vpop.f32.mrb[0].mxu0
        %3395 = vdwg.mxu0
        %3396 = vmatprep.subr.bf16.mxu0 %v3088
        %3397 = vmatpush1.bf16.msra.mxu0 %v3087
        %3398 = vmatprep.subr.bf16.mxu0 %v3100
        %3399 = vmatpush1.bf16.msra.mxu0 %v3099
        %3400 = vmatprep.subr.bf16.mxu0 %v3112
        %3401 = vmatpush1.bf16.msra.mxu0 %v3111
        %3402 = vmatprep.subr.bf16.mxu0 %v3124
        %3403 = vmatpush1.bf16.msra.mxu0 %v3123
        %3404 = vmatprep.subr.bf16.mxu0 %v3136
        %3405 = vmatpush1.bf16.msra.mxu0 %v3135
        %3406 = vmatprep.subr.bf16.mxu0 %v3148
        %3407 = vmatpush1.bf16.msra.mxu0 %v3147
        %3408 = vmatprep.subr.bf16.mxu0 %v3160
        %3409 = vmatpush1.bf16.msra.mxu0 %v3159
        %3410 = vmatprep.subr.bf16.mxu0 %v3172
        %3411 = vmatpush1.bf16.msra.mxu0 %v3171
        %3412 = vmatprep.subr.bf16.mxu0 0
        %3413 = vmatpush1.bf16.msra.mxu0 0
        %3414 = vmatprep.subr.bf16.mxu0 0
        %3415 = vmatpush1.bf16.msra.mxu0 0
        %3416 = vmatprep.subr.bf16.mxu0 0
        %3417 = vmatpush1.bf16.msra.mxu0 0
        %3418 = vmatprep.subr.bf16.mxu0 0
        %3419 = vmatpush1.bf16.msra.mxu0 0
        %3420 = vmatprep.subr.bf16.mxu0 0
        %3421 = vmatpush1.bf16.msra.mxu0 0
        %3422 = vmatprep.subr.bf16.mxu0 0
        %3423 = vmatpush1.bf16.msra.mxu0 0
        %3424 = vmatprep.subr.bf16.mxu0 0
        %3425 = vmatpush1.bf16.msra.mxu0 0
        %3426 = vmatprep.subr.bf16.mxu0 0
        %3427 = vmatpush1.bf16.msra.mxu0 0
        %3428 = vmatprep.mubr.bf16.mxu0 0
        %3429 = vmatmul.mubr.bf16.gmra.mrb[0].mxu0 %v2630
        %v3430 = vpop.f32.mrb[0].mxu0
        %v3431 = vadd.f32 %v2760, %v3430
        %v3432 = vpop.f32.mrb[0].mxu0
        %v3433 = vadd.f32 %v2764, %v3432
        %v3434 = vpop.f32.mrb[0].mxu0
        %v3435 = vpop.f32.mrb[0].mxu0
        %3436 = vdwg.mxu0
        %3437 = vmatprep.subr.bf16.mxu0 %v3090
        %3438 = vmatpush1.bf16.msra.mxu0 %v3089
        %3439 = vmatprep.subr.bf16.mxu0 %v3102
        %3440 = vmatpush1.bf16.msra.mxu0 %v3101
        %3441 = vmatprep.subr.bf16.mxu0 %v3114
        %3442 = vmatpush1.bf16.msra.mxu0 %v3113
        %3443 = vmatprep.subr.bf16.mxu0 %v3126
        %3444 = vmatpush1.bf16.msra.mxu0 %v3125
        %3445 = vmatprep.subr.bf16.mxu0 %v3138
        %3446 = vmatpush1.bf16.msra.mxu0 %v3137
        %3447 = vmatprep.subr.bf16.mxu0 %v3150
        %3448 = vmatpush1.bf16.msra.mxu0 %v3149
        %3449 = vmatprep.subr.bf16.mxu0 %v3162
        %3450 = vmatpush1.bf16.msra.mxu0 %v3161
        %3451 = vmatprep.subr.bf16.mxu0 %v3174
        %3452 = vmatpush1.bf16.msra.mxu0 %v3173
        %3453 = vmatprep.subr.bf16.mxu0 0
        %3454 = vmatpush1.bf16.msra.mxu0 0
        %3455 = vmatprep.subr.bf16.mxu0 0
        %3456 = vmatpush1.bf16.msra.mxu0 0
        %3457 = vmatprep.subr.bf16.mxu0 0
        %3458 = vmatpush1.bf16.msra.mxu0 0
        %3459 = vmatprep.subr.bf16.mxu0 0
        %3460 = vmatpush1.bf16.msra.mxu0 0
        %3461 = vmatprep.subr.bf16.mxu0 0
        %3462 = vmatpush1.bf16.msra.mxu0 0
        %3463 = vmatprep.subr.bf16.mxu0 0
        %3464 = vmatpush1.bf16.msra.mxu0 0
        %3465 = vmatprep.subr.bf16.mxu0 0
        %3466 = vmatpush1.bf16.msra.mxu0 0
        %3467 = vmatprep.subr.bf16.mxu0 0
        %3468 = vmatpush1.bf16.msra.mxu0 0
        %3469 = vmatprep.mubr.bf16.mxu0 0
        %3470 = vmatmul.mubr.bf16.gmra.mrb[0].mxu0 %v2630
        %v3471 = vpop.f32.mrb[0].mxu0
        %v3472 = vadd.f32 %v2768, %v3471
        %v3473 = vpop.f32.mrb[0].mxu0
        %v3474 = vadd.f32 %v2772, %v3473
        %v3475 = vpop.f32.mrb[0].mxu0
        %v3476 = vpop.f32.mrb[0].mxu0
        %3477 = vdwg.mxu0
        %3478 = vmatprep.subr.bf16.mxu0 %v3092
        %3479 = vmatpush1.bf16.msra.mxu0 %v3091
        %3480 = vmatprep.subr.bf16.mxu0 %v3104
        %3481 = vmatpush1.bf16.msra.mxu0 %v3103
        %3482 = vmatprep.subr.bf16.mxu0 %v3116
        %3483 = vmatpush1.bf16.msra.mxu0 %v3115
        %3484 = vmatprep.subr.bf16.mxu0 %v3128
        %3485 = vmatpush1.bf16.msra.mxu0 %v3127
        %3486 = vmatprep.subr.bf16.mxu0 %v3140
        %3487 = vmatpush1.bf16.msra.mxu0 %v3139
        %3488 = vmatprep.subr.bf16.mxu0 %v3152
        %3489 = vmatpush1.bf16.msra.mxu0 %v3151
        %3490 = vmatprep.subr.bf16.mxu0 %v3164
        %3491 = vmatpush1.bf16.msra.mxu0 %v3163
        %3492 = vmatprep.subr.bf16.mxu0 %v3176
        %3493 = vmatpush1.bf16.msra.mxu0 %v3175
        %3494 = vmatprep.subr.bf16.mxu0 0
        %3495 = vmatpush1.bf16.msra.mxu0 0
        %3496 = vmatprep.subr.bf16.mxu0 0
        %3497 = vmatpush1.bf16.msra.mxu0 0
        %3498 = vmatprep.subr.bf16.mxu0 0
        %3499 = vmatpush1.bf16.msra.mxu0 0
        %3500 = vmatprep.subr.bf16.mxu0 0
        %3501 = vmatpush1.bf16.msra.mxu0 0
        %3502 = vmatprep.subr.bf16.mxu0 0
        %3503 = vmatpush1.bf16.msra.mxu0 0
        %3504 = vmatprep.subr.bf16.mxu0 0
        %3505 = vmatpush1.bf16.msra.mxu0 0
        %3506 = vmatprep.subr.bf16.mxu0 0
        %3507 = vmatpush1.bf16.msra.mxu0 0
        %3508 = vmatprep.subr.bf16.mxu0 0
        %3509 = vmatpush1.bf16.msra.mxu0 0
        %3510 = vmatprep.mubr.bf16.mxu0 0
        %3511 = vmatmul.mubr.bf16.gmra.mrb[0].mxu0 %v2630
        %v3512 = vpop.f32.mrb[0].mxu0
        %v3513 = vadd.f32 %v2776, %v3512
        %v3514 = vpop.f32.mrb[0].mxu0
        %v3515 = vadd.f32 %v2780, %v3514
        %v3516 = vpop.f32.mrb[0].mxu0
        %v3517 = vpop.f32.mrb[0].mxu0
        %3518 = vdwg.mxu0
        %v3519 = vpack.c.bf16 %v3308, %v3308
        %v3520 = vpack.c.bf16 %v3310, %v3310
        %v3521 = vpack.c.bf16 %v3349, %v3349
        %v3522 = vpack.c.bf16 %v3351, %v3351
        %v3523 = vpack.c.bf16 %v3390, %v3390
        %v3524 = vpack.c.bf16 %v3392, %v3392
        %v3525 = vpack.c.bf16 %v3431, %v3431
        %v3526 = vpack.c.bf16 %v3433, %v3433
        %v3527 = vpack.c.bf16 %v3472, %v3472
        %v3528 = vpack.c.bf16 %v3474, %v3474
        %v3529 = vpack.c.bf16 %v3513, %v3513
        %v3530 = vpack.c.bf16 %v3515, %v3515
        %3531 = vmatprep.subr.bf16.mxu0 0
        %3532 = vmatpush1.bf16.xpose.msra.mxu0 %v3523
        %3533 = vmatprep.subr.bf16.mxu0 0
        %3534 = vmatpush1.bf16.xpose.msra.mxu0 0
        %3535 = vmatprep.subr.bf16.mxu0 0
        %3536 = vmatpush1.bf16.xpose.msra.mxu0 0
        %3537 = vmatprep.subr.bf16.mxu0 0
        %3538 = vmatpush1.bf16.xpose.msra.mxu0 0
        %3539 = vmatprep.subr.bf16.mxu0 0
        %3540 = vmatpush1.bf16.xpose.msra.mxu0 0
        %3541 = vmatprep.subr.bf16.mxu0 0
        %3542 = vmatpush1.bf16.xpose.msra.mxu0 0
        %3543 = vmatprep.subr.bf16.mxu0 0
        %3544 = vmatpush1.bf16.xpose.msra.mxu0 0
        %3545 = vmatprep.subr.bf16.mxu0 0
        %3546 = vmatpush1.bf16.xpose.msra.mxu0 0
        %3547 = vmatprep.subr.bf16.mxu0 0
        %3548 = vmatpush1.bf16.xpose.msra.mxu0 0
        %3549 = vmatprep.subr.bf16.mxu0 0
        %3550 = vmatpush1.bf16.xpose.msra.mxu0 0
        %3551 = vmatprep.subr.bf16.mxu0 0
        %3552 = vmatpush1.bf16.xpose.msra.mxu0 0
        %3553 = vmatprep.subr.bf16.mxu0 0
        %3554 = vmatpush1.bf16.xpose.msra.mxu0 0
        %3555 = vmatprep.subr.bf16.mxu0 0
        %3556 = vmatpush1.bf16.xpose.msra.mxu0 0
        %3557 = vmatprep.subr.bf16.mxu0 0
        %3558 = vmatpush1.bf16.xpose.msra.mxu0 0
        %3559 = vmatprep.subr.bf16.mxu0 0
        %3560 = vmatpush1.bf16.xpose.msra.mxu0 0
        %3561 = vmatprep.subr.bf16.mxu0 0
        %3562 = vmatpush1.bf16.xpose.msra.mxu0 0
        %3563 = vmatprep.mubr.bf16.mxu0 0
        %3564 = vmatmul.mubr.bf16.gmra.mrb[0].mxu0 %v3519
        %v3565 = vpop.f32.mrb[0].mxu0
        %v3566 = vadd.f32 %v1596, %v3565
        %v3567 = vpop.f32.mrb[0].mxu0
        %v3568 = vpop.f32.mrb[0].mxu0
        %v3569 = vpop.f32.mrb[0].mxu0
        %3570 = vdwg.mxu0
        %v3571 = vsel %vm1638, %v3566, -inf
        %3572 = vmax.xlane.f32.xlu0 %v3571
        %v3573 = vpop.xlane.xlu0 %3572
        %v3574 = vsub.f32 %v3566, %v3573
        %v3575 = vmul.f32 %v3574, 1.442695
        %v3576 = vpow.pop %v3575
        %v3577 = vsel %vm1638, %v3576, 0.0
        %3578 = vadd.xlane.f32.xlu0 %v3577
        %v3579 = vpop.xlane.xlu0 %3578
        %v3580 = vrcp.pop %v3579
        %v3581 = vmul.f32 %v3576, %v3580
        %v3582 = vpack.c.bf16 %v3581, %v3581
        %v3584 = vsel %vm1638, %v3582, 0
        %v3587 = vsel %vm1654, %v3527, 0
        %3589 = vmatprep.subr.bf16.mxu0 0
        %3590 = vmatpush1.bf16.msra.mxu0 %v3587
        %3591 = vmatprep.subr.bf16.mxu0 0
        %3592 = vmatpush1.bf16.msra.mxu0 0
        %3593 = vmatprep.subr.bf16.mxu0 0
        %3594 = vmatpush1.bf16.msra.mxu0 0
        %3595 = vmatprep.subr.bf16.mxu0 0
        %3596 = vmatpush1.bf16.msra.mxu0 0
        %3597 = vmatprep.subr.bf16.mxu0 0
        %3598 = vmatpush1.bf16.msra.mxu0 0
        %3599 = vmatprep.subr.bf16.mxu0 0
        %3600 = vmatpush1.bf16.msra.mxu0 0
        %3601 = vmatprep.subr.bf16.mxu0 0
        %3602 = vmatpush1.bf16.msra.mxu0 0
        %3603 = vmatprep.subr.bf16.mxu0 0
        %3604 = vmatpush1.bf16.msra.mxu0 0
        %3605 = vmatprep.subr.bf16.mxu0 0
        %3606 = vmatpush1.bf16.msra.mxu0 0
        %3607 = vmatprep.subr.bf16.mxu0 0
        %3608 = vmatpush1.bf16.msra.mxu0 0
        %3609 = vmatprep.subr.bf16.mxu0 0
        %3610 = vmatpush1.bf16.msra.mxu0 0
        %3611 = vmatprep.subr.bf16.mxu0 0
        %3612 = vmatpush1.bf16.msra.mxu0 0
        %3613 = vmatprep.subr.bf16.mxu0 0
        %3614 = vmatpush1.bf16.msra.mxu0 0
        %3615 = vmatprep.subr.bf16.mxu0 0
        %3616 = vmatpush1.bf16.msra.mxu0 0
        %3617 = vmatprep.subr.bf16.mxu0 0
        %3618 = vmatpush1.bf16.msra.mxu0 0
        %3619 = vmatprep.subr.bf16.mxu0 0
        %3620 = vmatpush1.bf16.msra.mxu0 0
        %3621 = vmatprep.mubr.bf16.mxu0 0
        %3622 = vmatmul.mubr.bf16.gmra.mrb[0].mxu0 %v3584
        %v3623 = vpop.f32.mrb[0].mxu0
        %v3624 = vadd.f32 0.0, %v3623
        %v3625 = vpop.f32.mrb[0].mxu0
        %v3626 = vpop.f32.mrb[0].mxu0
        %v3627 = vpop.f32.mrb[0].mxu0
        %3628 = vdwg.mxu0
        %3629 = vmatprep.subr.bf16.mxu0 0
        %3630 = vmatpush1.bf16.xpose.msra.mxu0 %v3524
        %3631 = vmatprep.subr.bf16.mxu0 0
        %3632 = vmatpush1.bf16.xpose.msra.mxu0 0
        %3633 = vmatprep.subr.bf16.mxu0 0
        %3634 = vmatpush1.bf16.xpose.msra.mxu0 0
        %3635 = vmatprep.subr.bf16.mxu0 0
        %3636 = vmatpush1.bf16.xpose.msra.mxu0 0
        %3637 = vmatprep.subr.bf16.mxu0 0
        %3638 = vmatpush1.bf16.xpose.msra.mxu0 0
        %3639 = vmatprep.subr.bf16.mxu0 0
        %3640 = vmatpush1.bf16.xpose.msra.mxu0 0
        %3641 = vmatprep.subr.bf16.mxu0 0
        %3642 = vmatpush1.bf16.xpose.msra.mxu0 0
        %3643 = vmatprep.subr.bf16.mxu0 0
        %3644 = vmatpush1.bf16.xpose.msra.mxu0 0
        %3645 = vmatprep.subr.bf16.mxu0 0
        %3646 = vmatpush1.bf16.xpose.msra.mxu0 0
        %3647 = vmatprep.subr.bf16.mxu0 0
        %3648 = vmatpush1.bf16.xpose.msra.mxu0 0
        %3649 = vmatprep.subr.bf16.mxu0 0
        %3650 = vmatpush1.bf16.xpose.msra.mxu0 0
        %3651 = vmatprep.subr.bf16.mxu0 0
        %3652 = vmatpush1.bf16.xpose.msra.mxu0 0
        %3653 = vmatprep.subr.bf16.mxu0 0
        %3654 = vmatpush1.bf16.xpose.msra.mxu0 0
        %3655 = vmatprep.subr.bf16.mxu0 0
        %3656 = vmatpush1.bf16.xpose.msra.mxu0 0
        %3657 = vmatprep.subr.bf16.mxu0 0
        %3658 = vmatpush1.bf16.xpose.msra.mxu0 0
        %3659 = vmatprep.subr.bf16.mxu0 0
        %3660 = vmatpush1.bf16.xpose.msra.mxu0 0
        %3661 = vmatprep.mubr.bf16.mxu0 0
        %3662 = vmatmul.mubr.bf16.gmra.mrb[0].mxu0 %v3520
        %v3663 = vpop.f32.mrb[0].mxu0
        %v3664 = vadd.f32 %v1596, %v3663
        %v3665 = vpop.f32.mrb[0].mxu0
        %v3666 = vpop.f32.mrb[0].mxu0
        %v3667 = vpop.f32.mrb[0].mxu0
        %3668 = vdwg.mxu0
        %v3669 = vsel %vm1638, %v3664, -inf
        %3670 = vmax.xlane.f32.xlu0 %v3669
        %v3671 = vpop.xlane.xlu0 %3670
        %v3672 = vsub.f32 %v3664, %v3671
        %v3673 = vmul.f32 %v3672, 1.442695
        %v3674 = vpow.pop %v3673
        %v3675 = vsel %vm1638, %v3674, 0.0
        %3676 = vadd.xlane.f32.xlu0 %v3675
        %v3677 = vpop.xlane.xlu0 %3676
        %v3678 = vrcp.pop %v3677
        %v3679 = vmul.f32 %v3674, %v3678
        %v3680 = vpack.c.bf16 %v3679, %v3679
        %v3682 = vsel %vm1638, %v3680, 0
        %v3685 = vsel %vm1654, %v3528, 0
        %3687 = vmatprep.subr.bf16.mxu0 0
        %3688 = vmatpush1.bf16.msra.mxu0 %v3685
        %3689 = vmatprep.subr.bf16.mxu0 0
        %3690 = vmatpush1.bf16.msra.mxu0 0
        %3691 = vmatprep.subr.bf16.mxu0 0
        %3692 = vmatpush1.bf16.msra.mxu0 0
        %3693 = vmatprep.subr.bf16.mxu0 0
        %3694 = vmatpush1.bf16.msra.mxu0 0
        %3695 = vmatprep.subr.bf16.mxu0 0
        %3696 = vmatpush1.bf16.msra.mxu0 0
        %3697 = vmatprep.subr.bf16.mxu0 0
        %3698 = vmatpush1.bf16.msra.mxu0 0
        %3699 = vmatprep.subr.bf16.mxu0 0
        %3700 = vmatpush1.bf16.msra.mxu0 0
        %3701 = vmatprep.subr.bf16.mxu0 0
        %3702 = vmatpush1.bf16.msra.mxu0 0
        %3703 = vmatprep.subr.bf16.mxu0 0
        %3704 = vmatpush1.bf16.msra.mxu0 0
        %3705 = vmatprep.subr.bf16.mxu0 0
        %3706 = vmatpush1.bf16.msra.mxu0 0
        %3707 = vmatprep.subr.bf16.mxu0 0
        %3708 = vmatpush1.bf16.msra.mxu0 0
        %3709 = vmatprep.subr.bf16.mxu0 0
        %3710 = vmatpush1.bf16.msra.mxu0 0
        %3711 = vmatprep.subr.bf16.mxu0 0
        %3712 = vmatpush1.bf16.msra.mxu0 0
        %3713 = vmatprep.subr.bf16.mxu0 0
        %3714 = vmatpush1.bf16.msra.mxu0 0
        %3715 = vmatprep.subr.bf16.mxu0 0
        %3716 = vmatpush1.bf16.msra.mxu0 0
        %3717 = vmatprep.subr.bf16.mxu0 0
        %3718 = vmatpush1.bf16.msra.mxu0 0
        %3719 = vmatprep.mubr.bf16.mxu0 0
        %3720 = vmatmul.mubr.bf16.gmra.mrb[0].mxu0 %v3682
        %v3721 = vpop.f32.mrb[0].mxu0
        %v3722 = vadd.f32 0.0, %v3721
        %v3723 = vpop.f32.mrb[0].mxu0
        %v3724 = vpop.f32.mrb[0].mxu0
        %v3725 = vpop.f32.mrb[0].mxu0
        %3726 = vdwg.mxu0
        %3727 = vmatprep.subr.bf16.mxu0 0
        %3728 = vmatpush1.bf16.xpose.msra.mxu0 %v3525
        %3729 = vmatprep.subr.bf16.mxu0 0
        %3730 = vmatpush1.bf16.xpose.msra.mxu0 0
        %3731 = vmatprep.subr.bf16.mxu0 0
        %3732 = vmatpush1.bf16.xpose.msra.mxu0 0
        %3733 = vmatprep.subr.bf16.mxu0 0
        %3734 = vmatpush1.bf16.xpose.msra.mxu0 0
        %3735 = vmatprep.subr.bf16.mxu0 0
        %3736 = vmatpush1.bf16.xpose.msra.mxu0 0
        %3737 = vmatprep.subr.bf16.mxu0 0
        %3738 = vmatpush1.bf16.xpose.msra.mxu0 0
        %3739 = vmatprep.subr.bf16.mxu0 0
        %3740 = vmatpush1.bf16.xpose.msra.mxu0 0
        %3741 = vmatprep.subr.bf16.mxu0 0
        %3742 = vmatpush1.bf16.xpose.msra.mxu0 0
        %3743 = vmatprep.subr.bf16.mxu0 0
        %3744 = vmatpush1.bf16.xpose.msra.mxu0 0
        %3745 = vmatprep.subr.bf16.mxu0 0
        %3746 = vmatpush1.bf16.xpose.msra.mxu0 0
        %3747 = vmatprep.subr.bf16.mxu0 0
        %3748 = vmatpush1.bf16.xpose.msra.mxu0 0
        %3749 = vmatprep.subr.bf16.mxu0 0
        %3750 = vmatpush1.bf16.xpose.msra.mxu0 0
        %3751 = vmatprep.subr.bf16.mxu0 0
        %3752 = vmatpush1.bf16.xpose.msra.mxu0 0
        %3753 = vmatprep.subr.bf16.mxu0 0
        %3754 = vmatpush1.bf16.xpose.msra.mxu0 0
        %3755 = vmatprep.subr.bf16.mxu0 0
        %3756 = vmatpush1.bf16.xpose.msra.mxu0 0
        %3757 = vmatprep.subr.bf16.mxu0 0
        %3758 = vmatpush1.bf16.xpose.msra.mxu0 0
        %3759 = vmatprep.mubr.bf16.mxu0 0
        %3760 = vmatmul.mubr.bf16.gmra.mrb[0].mxu0 %v3521
        %v3761 = vpop.f32.mrb[0].mxu0
        %v3762 = vadd.f32 %v1596, %v3761
        %v3763 = vpop.f32.mrb[0].mxu0
        %v3764 = vpop.f32.mrb[0].mxu0
        %v3765 = vpop.f32.mrb[0].mxu0
        %3766 = vdwg.mxu0
        %v3767 = vsel %vm1638, %v3762, -inf
        %3768 = vmax.xlane.f32.xlu0 %v3767
        %v3769 = vpop.xlane.xlu0 %3768
        %v3770 = vsub.f32 %v3762, %v3769
        %v3771 = vmul.f32 %v3770, 1.442695
        %v3772 = vpow.pop %v3771
        %v3773 = vsel %vm1638, %v3772, 0.0
        %3774 = vadd.xlane.f32.xlu0 %v3773
        %v3775 = vpop.xlane.xlu0 %3774
        %v3776 = vrcp.pop %v3775
        %v3777 = vmul.f32 %v3772, %v3776
        %v3778 = vpack.c.bf16 %v3777, %v3777
        %v3780 = vsel %vm1638, %v3778, 0
        %v3783 = vsel %vm1654, %v3529, 0
        %3785 = vmatprep.subr.bf16.mxu0 0
        %3786 = vmatpush1.bf16.msra.mxu0 %v3783
        %3787 = vmatprep.subr.bf16.mxu0 0
        %3788 = vmatpush1.bf16.msra.mxu0 0
        %3789 = vmatprep.subr.bf16.mxu0 0
        %3790 = vmatpush1.bf16.msra.mxu0 0
        %3791 = vmatprep.subr.bf16.mxu0 0
        %3792 = vmatpush1.bf16.msra.mxu0 0
        %3793 = vmatprep.subr.bf16.mxu0 0
        %3794 = vmatpush1.bf16.msra.mxu0 0
        %3795 = vmatprep.subr.bf16.mxu0 0
        %3796 = vmatpush1.bf16.msra.mxu0 0
        %3797 = vmatprep.subr.bf16.mxu0 0
        %3798 = vmatpush1.bf16.msra.mxu0 0
        %3799 = vmatprep.subr.bf16.mxu0 0
        %3800 = vmatpush1.bf16.msra.mxu0 0
        %3801 = vmatprep.subr.bf16.mxu0 0
        %3802 = vmatpush1.bf16.msra.mxu0 0
        %3803 = vmatprep.subr.bf16.mxu0 0
        %3804 = vmatpush1.bf16.msra.mxu0 0
        %3805 = vmatprep.subr.bf16.mxu0 0
        %3806 = vmatpush1.bf16.msra.mxu0 0
        %3807 = vmatprep.subr.bf16.mxu0 0
        %3808 = vmatpush1.bf16.msra.mxu0 0
        %3809 = vmatprep.subr.bf16.mxu0 0
        %3810 = vmatpush1.bf16.msra.mxu0 0
        %3811 = vmatprep.subr.bf16.mxu0 0
        %3812 = vmatpush1.bf16.msra.mxu0 0
        %3813 = vmatprep.subr.bf16.mxu0 0
        %3814 = vmatpush1.bf16.msra.mxu0 0
        %3815 = vmatprep.subr.bf16.mxu0 0
        %3816 = vmatpush1.bf16.msra.mxu0 0
        %3817 = vmatprep.mubr.bf16.mxu0 0
        %3818 = vmatmul.mubr.bf16.gmra.mrb[0].mxu0 %v3780
        %v3819 = vpop.f32.mrb[0].mxu0
        %v3820 = vadd.f32 0.0, %v3819
        %v3821 = vpop.f32.mrb[0].mxu0
        %v3822 = vpop.f32.mrb[0].mxu0
        %v3823 = vpop.f32.mrb[0].mxu0
        %3824 = vdwg.mxu0
        %3825 = vmatprep.subr.bf16.mxu0 0
        %3826 = vmatpush1.bf16.xpose.msra.mxu0 %v3526
        %3827 = vmatprep.subr.bf16.mxu0 0
        %3828 = vmatpush1.bf16.xpose.msra.mxu0 0
        %3829 = vmatprep.subr.bf16.mxu0 0
        %3830 = vmatpush1.bf16.xpose.msra.mxu0 0
        %3831 = vmatprep.subr.bf16.mxu0 0
        %3832 = vmatpush1.bf16.xpose.msra.mxu0 0
        %3833 = vmatprep.subr.bf16.mxu0 0
        %3834 = vmatpush1.bf16.xpose.msra.mxu0 0
        %3835 = vmatprep.subr.bf16.mxu0 0
        %3836 = vmatpush1.bf16.xpose.msra.mxu0 0
        %3837 = vmatprep.subr.bf16.mxu0 0
        %3838 = vmatpush1.bf16.xpose.msra.mxu0 0
        %3839 = vmatprep.subr.bf16.mxu0 0
        %3840 = vmatpush1.bf16.xpose.msra.mxu0 0
        %3841 = vmatprep.subr.bf16.mxu0 0
        %3842 = vmatpush1.bf16.xpose.msra.mxu0 0
        %3843 = vmatprep.subr.bf16.mxu0 0
        %3844 = vmatpush1.bf16.xpose.msra.mxu0 0
        %3845 = vmatprep.subr.bf16.mxu0 0
        %3846 = vmatpush1.bf16.xpose.msra.mxu0 0
        %3847 = vmatprep.subr.bf16.mxu0 0
        %3848 = vmatpush1.bf16.xpose.msra.mxu0 0
        %3849 = vmatprep.subr.bf16.mxu0 0
        %3850 = vmatpush1.bf16.xpose.msra.mxu0 0
        %3851 = vmatprep.subr.bf16.mxu0 0
        %3852 = vmatpush1.bf16.xpose.msra.mxu0 0
        %3853 = vmatprep.subr.bf16.mxu0 0
        %3854 = vmatpush1.bf16.xpose.msra.mxu0 0
        %3855 = vmatprep.subr.bf16.mxu0 0
        %3856 = vmatpush1.bf16.xpose.msra.mxu0 0
        %3857 = vmatprep.mubr.bf16.mxu0 0
        %3858 = vmatmul.mubr.bf16.gmra.mrb[0].mxu0 %v3522
        %v3859 = vpop.f32.mrb[0].mxu0
        %v3860 = vadd.f32 %v1596, %v3859
        %v3861 = vpop.f32.mrb[0].mxu0
        %v3862 = vpop.f32.mrb[0].mxu0
        %v3863 = vpop.f32.mrb[0].mxu0
        %3864 = vdwg.mxu0
        %v3865 = vsel %vm1638, %v3860, -inf
        %3866 = vmax.xlane.f32.xlu0 %v3865
        %v3867 = vpop.xlane.xlu0 %3866
        %v3868 = vsub.f32 %v3860, %v3867
        %v3869 = vmul.f32 %v3868, 1.442695
        %v3870 = vpow.pop %v3869
        %v3871 = vsel %vm1638, %v3870, 0.0
        %3872 = vadd.xlane.f32.xlu0 %v3871
        %v3873 = vpop.xlane.xlu0 %3872
        %v3874 = vrcp.pop %v3873
        %v3875 = vmul.f32 %v3870, %v3874
        %v3876 = vpack.c.bf16 %v3875, %v3875
        %v3878 = vsel %vm1638, %v3876, 0
        %v3881 = vsel %vm1654, %v3530, 0
        %3883 = vmatprep.subr.bf16.mxu0 0
        %3884 = vmatpush1.bf16.msra.mxu0 %v3881
        %3885 = vmatprep.subr.bf16.mxu0 0
        %3886 = vmatpush1.bf16.msra.mxu0 0
        %3887 = vmatprep.subr.bf16.mxu0 0
        %3888 = vmatpush1.bf16.msra.mxu0 0
        %3889 = vmatprep.subr.bf16.mxu0 0
        %3890 = vmatpush1.bf16.msra.mxu0 0
        %3891 = vmatprep.subr.bf16.mxu0 0
        %3892 = vmatpush1.bf16.msra.mxu0 0
        %3893 = vmatprep.subr.bf16.mxu0 0
        %3894 = vmatpush1.bf16.msra.mxu0 0
        %3895 = vmatprep.subr.bf16.mxu0 0
        %3896 = vmatpush1.bf16.msra.mxu0 0
        %3897 = vmatprep.subr.bf16.mxu0 0
        %3898 = vmatpush1.bf16.msra.mxu0 0
        %3899 = vmatprep.subr.bf16.mxu0 0
        %3900 = vmatpush1.bf16.msra.mxu0 0
        %3901 = vmatprep.subr.bf16.mxu0 0
        %3902 = vmatpush1.bf16.msra.mxu0 0
        %3903 = vmatprep.subr.bf16.mxu0 0
        %3904 = vmatpush1.bf16.msra.mxu0 0
        %3905 = vmatprep.subr.bf16.mxu0 0
        %3906 = vmatpush1.bf16.msra.mxu0 0
        %3907 = vmatprep.subr.bf16.mxu0 0
        %3908 = vmatpush1.bf16.msra.mxu0 0
        %3909 = vmatprep.subr.bf16.mxu0 0
        %3910 = vmatpush1.bf16.msra.mxu0 0
        %3911 = vmatprep.subr.bf16.mxu0 0
        %3912 = vmatpush1.bf16.msra.mxu0 0
        %3913 = vmatprep.subr.bf16.mxu0 0
        %3914 = vmatpush1.bf16.msra.mxu0 0
        %3915 = vmatprep.mubr.bf16.mxu0 0
        %3916 = vmatmul.mubr.bf16.gmra.mrb[0].mxu0 %v3878
        %v3917 = vpop.f32.mrb[0].mxu0
        %v3918 = vadd.f32 0.0, %v3917
        %v3919 = vpop.f32.mrb[0].mxu0
        %v3920 = vpop.f32.mrb[0].mxu0
        %v3921 = vpop.f32.mrb[0].mxu0
        %3922 = vdwg.mxu0
        %v3923 = vpack.c.bf16 %v3624, %v3624
        %v3924 = vpack.c.bf16 %v3722, %v3722
        %v3925 = vpack.c.bf16 %v3820, %v3820
        %v3926 = vpack.c.bf16 %v3918, %v3918
        %s3927 = scalar_lea.vmem [#allocation11], 256
        %v3928 = vld [vmem:[%s3927] sm:$0xf]
        %v3929 = vld [vmem:[%s3927 + $0x4] sm:$0xf]
        %v3930 = vld [vmem:[%s3927 + $0x8] sm:$0xf]
        %v3931 = vld [vmem:[%s3927 + $0xc] sm:$0xf]
        %v3932 = vld [vmem:[%s3927 + $0x10] sm:$0xf]
        %v3933 = vld [vmem:[%s3927 + $0x14] sm:$0xf]
        %v3934 = vld [vmem:[%s3927 + $0x18] sm:$0xf]
        %v3935 = vld [vmem:[%s3927 + $0x1c] sm:$0xf]
        %v3936 = vld [vmem:[%s3927 + $0x20] sm:$0xf]
        %v3937 = vld [vmem:[%s3927 + $0x24] sm:$0xf]
        %v3938 = vld [vmem:[%s3927 + $0x28] sm:$0xf]
        %v3939 = vld [vmem:[%s3927 + $0x2c] sm:$0xf]
        %v3940 = vld [vmem:[%s3927 + $0x30] sm:$0xf]
        %v3941 = vld [vmem:[%s3927 + $0x34] sm:$0xf]
        %v3942 = vld [vmem:[%s3927 + $0x38] sm:$0xf]
        %v3943 = vld [vmem:[%s3927 + $0x3c] sm:$0xf]
        %v3944 = vld [vmem:[%s3927 + $0x40] sm:$0xf]
        %v3945 = vld [vmem:[%s3927 + $0x44] sm:$0xf]
        %v3946 = vld [vmem:[%s3927 + $0x48] sm:$0xf]
        %v3947 = vld [vmem:[%s3927 + $0x4c] sm:$0xf]
        %v3948 = vld [vmem:[%s3927 + $0x50] sm:$0xf]
        %v3949 = vld [vmem:[%s3927 + $0x54] sm:$0xf]
        %v3950 = vld [vmem:[%s3927 + $0x58] sm:$0xf]
        %v3951 = vld [vmem:[%s3927 + $0x5c] sm:$0xf]
        %v3952 = vld [vmem:[%s3927 + $0x60] sm:$0xf]
        %v3953 = vld [vmem:[%s3927 + $0x64] sm:$0xf]
        %v3954 = vld [vmem:[%s3927 + $0x68] sm:$0xf]
        %v3955 = vld [vmem:[%s3927 + $0x6c] sm:$0xf]
        %v3956 = vld [vmem:[%s3927 + $0x70] sm:$0xf]
        %v3957 = vld [vmem:[%s3927 + $0x74] sm:$0xf]
        %v3958 = vld [vmem:[%s3927 + $0x78] sm:$0xf]
        %v3959 = vld [vmem:[%s3927 + $0x7c] sm:$0xf]
        %v3960 = vld [vmem:[%s3927 + $0x80] sm:$0xf]
        %v3961 = vld [vmem:[%s3927 + $0x84] sm:$0xf]
        %v3962 = vld [vmem:[%s3927 + $0x88] sm:$0xf]
        %v3963 = vld [vmem:[%s3927 + $0x8c] sm:$0xf]
        %v3964 = vld [vmem:[%s3927 + $0x90] sm:$0xf]
        %v3965 = vld [vmem:[%s3927 + $0x94] sm:$0xf]
        %v3966 = vld [vmem:[%s3927 + $0x98] sm:$0xf]
        %v3967 = vld [vmem:[%s3927 + $0x9c] sm:$0xf]
        %v3968 = vld [vmem:[%s3927 + $0xa0] sm:$0xf]
        %v3969 = vld [vmem:[%s3927 + $0xa4] sm:$0xf]
        %v3970 = vld [vmem:[%s3927 + $0xa8] sm:$0xf]
        %v3971 = vld [vmem:[%s3927 + $0xac] sm:$0xf]
        %v3972 = vld [vmem:[%s3927 + $0xb0] sm:$0xf]
        %v3973 = vld [vmem:[%s3927 + $0xb4] sm:$0xf]
        %v3974 = vld [vmem:[%s3927 + $0xb8] sm:$0xf]
        %v3975 = vld [vmem:[%s3927 + $0xbc] sm:$0xf]
        %v3976 = vld [vmem:[%s3927 + $0xc0] sm:$0xf]
        %v3977 = vld [vmem:[%s3927 + $0xc4] sm:$0xf]
        %v3978 = vld [vmem:[%s3927 + $0xc8] sm:$0xf]
        %v3979 = vld [vmem:[%s3927 + $0xcc] sm:$0xf]
        %v3980 = vld [vmem:[%s3927 + $0xd0] sm:$0xf]
        %v3981 = vld [vmem:[%s3927 + $0xd4] sm:$0xf]
        %v3982 = vld [vmem:[%s3927 + $0xd8] sm:$0xf]
        %v3983 = vld [vmem:[%s3927 + $0xdc] sm:$0xf]
        %v3984 = vld [vmem:[%s3927 + $0xe0] sm:$0xf]
        %v3985 = vld [vmem:[%s3927 + $0xe4] sm:$0xf]
        %v3986 = vld [vmem:[%s3927 + $0xe8] sm:$0xf]
        %v3987 = vld [vmem:[%s3927 + $0xec] sm:$0xf]
        %v3988 = vld [vmem:[%s3927 + $0xf0] sm:$0xf]
        %v3989 = vld [vmem:[%s3927 + $0xf4] sm:$0xf]
        %v3990 = vld [vmem:[%s3927 + $0xf8] sm:$0xf]
        %v3991 = vld [vmem:[%s3927 + $0xfc] sm:$0xf]
        %s3992 = scalar_lea.vmem %s7, 1
        %v3993 = vld [vmem:[%s3992] sm:$0x1]
        %v3995 = vlaneseq
        %v3996 = vshrl.u32 %v3995, 7
        %v3997 = vsub.s32 0, %v3996
        %v3998 = vrot.slane %v3993, %v3997
        %v4064 = vunpack.c.l.b16 %v3928
        %v4065 = vunpack.c.l.b16 %v3929
        %v4066 = vunpack.c.l.b16 %v3930
        %v4067 = vunpack.c.l.b16 %v3931
        %v4068 = vunpack.c.l.b16 %v3932
        %v4069 = vunpack.c.l.b16 %v3933
        %v4070 = vunpack.c.l.b16 %v3934
        %v4071 = vunpack.c.l.b16 %v3935
        %v4072 = vunpack.c.l.b16 %v3936
        %v4073 = vunpack.c.l.b16 %v3937
        %v4074 = vunpack.c.l.b16 %v3938
        %v4075 = vunpack.c.l.b16 %v3939
        %v4076 = vunpack.c.l.b16 %v3940
        %v4077 = vunpack.c.l.b16 %v3941
        %v4078 = vunpack.c.l.b16 %v3942
        %v4079 = vunpack.c.l.b16 %v3943
        %v4080 = vunpack.c.l.b16 %v3944
        %v4081 = vunpack.c.l.b16 %v3945
        %v4082 = vunpack.c.l.b16 %v3946
        %v4083 = vunpack.c.l.b16 %v3947
        %v4084 = vunpack.c.l.b16 %v3948
        %v4085 = vunpack.c.l.b16 %v3949
        %v4086 = vunpack.c.l.b16 %v3950
        %v4087 = vunpack.c.l.b16 %v3951
        %v4088 = vunpack.c.l.b16 %v3952
        %v4089 = vunpack.c.l.b16 %v3953
        %v4090 = vunpack.c.l.b16 %v3954
        %v4091 = vunpack.c.l.b16 %v3955
        %v4092 = vunpack.c.l.b16 %v3956
        %v4093 = vunpack.c.l.b16 %v3957
        %v4094 = vunpack.c.l.b16 %v3958
        %v4095 = vunpack.c.l.b16 %v3959
        %v4096 = vunpack.c.l.b16 %v3960
        %v4097 = vunpack.c.l.b16 %v3961
        %v4098 = vunpack.c.l.b16 %v3962
        %v4099 = vunpack.c.l.b16 %v3963
        %v4100 = vunpack.c.l.b16 %v3964
        %v4101 = vunpack.c.l.b16 %v3965
        %v4102 = vunpack.c.l.b16 %v3966
        %v4103 = vunpack.c.l.b16 %v3967
        %v4104 = vunpack.c.l.b16 %v3968
        %v4105 = vunpack.c.l.b16 %v3969
        %v4106 = vunpack.c.l.b16 %v3970
        %v4107 = vunpack.c.l.b16 %v3971
        %v4108 = vunpack.c.l.b16 %v3972
        %v4109 = vunpack.c.l.b16 %v3973
        %v4110 = vunpack.c.l.b16 %v3974
        %v4111 = vunpack.c.l.b16 %v3975
        %v4112 = vunpack.c.l.b16 %v3976
        %v4113 = vunpack.c.l.b16 %v3977
        %v4114 = vunpack.c.l.b16 %v3978
        %v4115 = vunpack.c.l.b16 %v3979
        %v4116 = vunpack.c.l.b16 %v3980
        %v4117 = vunpack.c.l.b16 %v3981
        %v4118 = vunpack.c.l.b16 %v3982
        %v4119 = vunpack.c.l.b16 %v3983
        %v4120 = vunpack.c.l.b16 %v3984
        %v4121 = vunpack.c.l.b16 %v3985
        %v4122 = vunpack.c.l.b16 %v3986
        %v4123 = vunpack.c.l.b16 %v3987
        %v4124 = vunpack.c.l.b16 %v3988
        %v4125 = vunpack.c.l.b16 %v3989
        %v4126 = vunpack.c.l.b16 %v3990
        %v4127 = vunpack.c.l.b16 %v3991
        %v4128 = vpack.c.b16 %v4065, %v4064
        %v4129 = vpack.c.b16 %v4067, %v4066
        %v4130 = vpack.c.b16 %v4069, %v4068
        %v4131 = vpack.c.b16 %v4071, %v4070
        %v4132 = vpack.c.b16 %v4073, %v4072
        %v4133 = vpack.c.b16 %v4075, %v4074
        %v4134 = vpack.c.b16 %v4077, %v4076
        %v4135 = vpack.c.b16 %v4079, %v4078
        %v4136 = vpack.c.b16 %v4081, %v4080
        %v4137 = vpack.c.b16 %v4083, %v4082
        %v4138 = vpack.c.b16 %v4085, %v4084
        %v4139 = vpack.c.b16 %v4087, %v4086
        %v4140 = vpack.c.b16 %v4089, %v4088
        %v4141 = vpack.c.b16 %v4091, %v4090
        %v4142 = vpack.c.b16 %v4093, %v4092
        %v4143 = vpack.c.b16 %v4095, %v4094
        %v4144 = vpack.c.b16 %v4097, %v4096
        %v4145 = vpack.c.b16 %v4099, %v4098
        %v4146 = vpack.c.b16 %v4101, %v4100
        %v4147 = vpack.c.b16 %v4103, %v4102
        %v4148 = vpack.c.b16 %v4105, %v4104
        %v4149 = vpack.c.b16 %v4107, %v4106
        %v4150 = vpack.c.b16 %v4109, %v4108
        %v4151 = vpack.c.b16 %v4111, %v4110
        %v4152 = vpack.c.b16 %v4113, %v4112
        %v4153 = vpack.c.b16 %v4115, %v4114
        %v4154 = vpack.c.b16 %v4117, %v4116
        %v4155 = vpack.c.b16 %v4119, %v4118
        %v4156 = vpack.c.b16 %v4121, %v4120
        %v4157 = vpack.c.b16 %v4123, %v4122
        %v4158 = vpack.c.b16 %v4125, %v4124
        %v4159 = vpack.c.b16 %v4127, %v4126
        %4192 = vmatprep.subr.bf16.mxu0 0
        %4193 = vmatpush1.bf16.msra.mxu0 %v4128
        %4194 = vmatprep.subr.bf16.mxu0 0
        %4195 = vmatpush1.bf16.msra.mxu0 %v4129
        %4196 = vmatprep.subr.bf16.mxu0 0
        %4197 = vmatpush1.bf16.msra.mxu0 %v4130
        %4198 = vmatprep.subr.bf16.mxu0 0
        %4199 = vmatpush1.bf16.msra.mxu0 %v4131
        %4200 = vmatprep.subr.bf16.mxu0 0
        %4201 = vmatpush1.bf16.msra.mxu0 %v4132
        %4202 = vmatprep.subr.bf16.mxu0 0
        %4203 = vmatpush1.bf16.msra.mxu0 %v4133
        %4204 = vmatprep.subr.bf16.mxu0 0
        %4205 = vmatpush1.bf16.msra.mxu0 %v4134
        %4206 = vmatprep.subr.bf16.mxu0 0
        %4207 = vmatpush1.bf16.msra.mxu0 %v4135
        %4208 = vmatprep.subr.bf16.mxu0 0
        %4209 = vmatpush1.bf16.msra.mxu0 %v4136
        %4210 = vmatprep.subr.bf16.mxu0 0
        %4211 = vmatpush1.bf16.msra.mxu0 %v4137
        %4212 = vmatprep.subr.bf16.mxu0 0
        %4213 = vmatpush1.bf16.msra.mxu0 %v4138
        %4214 = vmatprep.subr.bf16.mxu0 0
        %4215 = vmatpush1.bf16.msra.mxu0 %v4139
        %4216 = vmatprep.subr.bf16.mxu0 0
        %4217 = vmatpush1.bf16.msra.mxu0 %v4140
        %4218 = vmatprep.subr.bf16.mxu0 0
        %4219 = vmatpush1.bf16.msra.mxu0 %v4141
        %4220 = vmatprep.subr.bf16.mxu0 0
        %4221 = vmatpush1.bf16.msra.mxu0 %v4142
        %4222 = vmatprep.subr.bf16.mxu0 0
        %4223 = vmatpush1.bf16.msra.mxu0 %v4143
        %4224 = vmatprep.mubr.bf16.mxu0 %v3924
        %4225 = vmatmul.mubr.bf16.gmra.mrb[0].mxu0 %v3923
        %v4226 = vpop.f32.mrb[0].mxu0
        %v4227 = vadd.f32 %v3998, %v4226
        %v4228 = vpop.f32.mrb[0].mxu0
        %v4229 = vpop.f32.mrb[0].mxu0
        %v4230 = vpop.f32.mrb[0].mxu0
        %4231 = vdwg.mxu0
        %4232 = vmatprep.subr.bf16.mxu0 0
        %4233 = vmatpush1.bf16.msra.mxu0 %v4144
        %4234 = vmatprep.subr.bf16.mxu0 0
        %4235 = vmatpush1.bf16.msra.mxu0 %v4145
        %4236 = vmatprep.subr.bf16.mxu0 0
        %4237 = vmatpush1.bf16.msra.mxu0 %v4146
        %4238 = vmatprep.subr.bf16.mxu0 0
        %4239 = vmatpush1.bf16.msra.mxu0 %v4147
        %4240 = vmatprep.subr.bf16.mxu0 0
        %4241 = vmatpush1.bf16.msra.mxu0 %v4148
        %4242 = vmatprep.subr.bf16.mxu0 0
        %4243 = vmatpush1.bf16.msra.mxu0 %v4149
        %4244 = vmatprep.subr.bf16.mxu0 0
        %4245 = vmatpush1.bf16.msra.mxu0 %v4150
        %4246 = vmatprep.subr.bf16.mxu0 0
        %4247 = vmatpush1.bf16.msra.mxu0 %v4151
        %4248 = vmatprep.subr.bf16.mxu0 0
        %4249 = vmatpush1.bf16.msra.mxu0 %v4152
        %4250 = vmatprep.subr.bf16.mxu0 0
        %4251 = vmatpush1.bf16.msra.mxu0 %v4153
        %4252 = vmatprep.subr.bf16.mxu0 0
        %4253 = vmatpush1.bf16.msra.mxu0 %v4154
        %4254 = vmatprep.subr.bf16.mxu0 0
        %4255 = vmatpush1.bf16.msra.mxu0 %v4155
        %4256 = vmatprep.subr.bf16.mxu0 0
        %4257 = vmatpush1.bf16.msra.mxu0 %v4156
        %4258 = vmatprep.subr.bf16.mxu0 0
        %4259 = vmatpush1.bf16.msra.mxu0 %v4157
        %4260 = vmatprep.subr.bf16.mxu0 0
        %4261 = vmatpush1.bf16.msra.mxu0 %v4158
        %4262 = vmatprep.subr.bf16.mxu0 0
        %4263 = vmatpush1.bf16.msra.mxu0 %v4159
        %4264 = vmatprep.mubr.bf16.mxu0 %v3926
        %4265 = vmatmul.mubr.bf16.gmra.mrb[0].mxu0 %v3925
        %v4266 = vpop.f32.mrb[0].mxu0
        %v4267 = vadd.f32 %v4227, %v4266
        %v4268 = vpop.f32.mrb[0].mxu0
        %v4269 = vpop.f32.mrb[0].mxu0
        %v4270 = vpop.f32.mrb[0].mxu0
        %4271 = vdwg.mxu0
        %v4272 = vadd.f32 %v2629, %v4267
        %s4273 = scalar_lea.vmem %s8, 1
        %v4274 = vld [vmem:[%s4273] sm:$0x1]
        %s4275 = scalar_lea.vmem %s9, 1
        %v4276 = vld [vmem:[%s4275] sm:$0x1]
        %4277 = vadd.xlane.f32.xlu0 %v4272
        %v4278 = vpop.xlane.xlu0 %4277
        %v4279 = vmul.f32 %v4278, 0.03125
        %v4280 = vsub.f32 %v4272, %v4279
        %v4281 = vsel %vm667, %v4280, 0.0
        %v4282 = vmul.f32 %v4281, %v4281
        %4283 = vadd.xlane.f32.xlu0 %v4282
        %v4284 = vpop.xlane.xlu0 %4283
        %v4285 = vmul.f32 %v4284, 0.03125
        %v4286 = vadd.f32 %v4285, 1e-12
        %v4287 = vrsqrt.pop %v4286
        %v4288 = vmul.f32 %v4281, %v4287
        %v4290 = vlaneseq
        %v4291 = vshrl.u32 %v4290, 7
        %v4292 = vsub.s32 0, %v4291
        %v4293 = vrot.slane %v4274, %v4292
        %v4295 = vmul.f32 %v4288, %v4293
        %v4297 = vlaneseq
        %v4298 = vshrl.u32 %v4297, 7
        %v4299 = vsub.s32 0, %v4298
        %v4300 = vrot.slane %v4276, %v4299
        %v4302 = vadd.f32 %v4295, %v4300
        %v4303 = vpack.c.bf16 %v4302, %v4302
        %s4304 = scalar_lea.vmem [#allocation13], 64
        %v4305 = vld [vmem:[%s4304] sm:$0xf]
        %v4306 = vld [vmem:[%s4304 + $0x4] sm:$0xf]
        %v4307 = vld [vmem:[%s4304 + $0x8] sm:$0xf]
        %v4308 = vld [vmem:[%s4304 + $0xc] sm:$0xf]
        %v4309 = vld [vmem:[%s4304 + $0x10] sm:$0xf]
        %v4310 = vld [vmem:[%s4304 + $0x14] sm:$0xf]
        %v4311 = vld [vmem:[%s4304 + $0x18] sm:$0xf]
        %v4312 = vld [vmem:[%s4304 + $0x1c] sm:$0xf]
        %v4313 = vld [vmem:[%s4304 + $0x20] sm:$0xf]
        %v4314 = vld [vmem:[%s4304 + $0x24] sm:$0xf]
        %v4315 = vld [vmem:[%s4304 + $0x28] sm:$0xf]
        %v4316 = vld [vmem:[%s4304 + $0x2c] sm:$0xf]
        %v4317 = vld [vmem:[%s4304 + $0x30] sm:$0xf]
        %v4318 = vld [vmem:[%s4304 + $0x34] sm:$0xf]
        %v4319 = vld [vmem:[%s4304 + $0x38] sm:$0xf]
        %v4320 = vld [vmem:[%s4304 + $0x3c] sm:$0xf]
        %s4321 = scalar_lea.vmem %s11, 1
        %v4322 = vld [vmem:[%s4321] sm:$0x1]
        %v4324 = vlaneseq
        %v4325 = vshrl.u32 %v4324, 7
        %v4326 = vsub.s32 0, %v4325
        %v4327 = vrot.slane %v4322, %v4326
        %v4345 = vunpack.c.l.b16 %v4305
        %v4346 = vunpack.c.l.b16 %v4306
        %v4347 = vunpack.c.l.b16 %v4307
        %v4348 = vunpack.c.l.b16 %v4308
        %v4349 = vunpack.c.l.b16 %v4309
        %v4350 = vunpack.c.l.b16 %v4310
        %v4351 = vunpack.c.l.b16 %v4311
        %v4352 = vunpack.c.l.b16 %v4312
        %v4353 = vunpack.c.l.b16 %v4313
        %v4354 = vunpack.c.l.b16 %v4314
        %v4355 = vunpack.c.l.b16 %v4315
        %v4356 = vunpack.c.l.b16 %v4316
        %v4357 = vunpack.c.l.b16 %v4317
        %v4358 = vunpack.c.l.b16 %v4318
        %v4359 = vunpack.c.l.b16 %v4319
        %v4360 = vunpack.c.l.b16 %v4320
        %v4361 = vpack.c.b16 %v4346, %v4345
        %v4362 = vpack.c.b16 %v4348, %v4347
        %v4363 = vpack.c.b16 %v4350, %v4349
        %v4364 = vpack.c.b16 %v4352, %v4351
        %v4365 = vpack.c.b16 %v4354, %v4353
        %v4366 = vpack.c.b16 %v4356, %v4355
        %v4367 = vpack.c.b16 %v4358, %v4357
        %v4368 = vpack.c.b16 %v4360, %v4359
        %4377 = vmatprep.subr.bf16.mxu0 0
        %4378 = vmatpush1.bf16.msra.mxu0 %v4361
        %4379 = vmatprep.subr.bf16.mxu0 0
        %4380 = vmatpush1.bf16.msra.mxu0 %v4362
        %4381 = vmatprep.subr.bf16.mxu0 0
        %4382 = vmatpush1.bf16.msra.mxu0 %v4363
        %4383 = vmatprep.subr.bf16.mxu0 0
        %4384 = vmatpush1.bf16.msra.mxu0 %v4364
        %4385 = vmatprep.subr.bf16.mxu0 0
        %4386 = vmatpush1.bf16.msra.mxu0 %v4365
        %4387 = vmatprep.subr.bf16.mxu0 0
        %4388 = vmatpush1.bf16.msra.mxu0 %v4366
        %4389 = vmatprep.subr.bf16.mxu0 0
        %4390 = vmatpush1.bf16.msra.mxu0 %v4367
        %4391 = vmatprep.subr.bf16.mxu0 0
        %4392 = vmatpush1.bf16.msra.mxu0 %v4368
        %4393 = vmatprep.subr.bf16.mxu0 0
        %4394 = vmatpush1.bf16.msra.mxu0 0
        %4395 = vmatprep.subr.bf16.mxu0 0
        %4396 = vmatpush1.bf16.msra.mxu0 0
        %4397 = vmatprep.subr.bf16.mxu0 0
        %4398 = vmatpush1.bf16.msra.mxu0 0
        %4399 = vmatprep.subr.bf16.mxu0 0
        %4400 = vmatpush1.bf16.msra.mxu0 0
        %4401 = vmatprep.subr.bf16.mxu0 0
        %4402 = vmatpush1.bf16.msra.mxu0 0
        %4403 = vmatprep.subr.bf16.mxu0 0
        %4404 = vmatpush1.bf16.msra.mxu0 0
        %4405 = vmatprep.subr.bf16.mxu0 0
        %4406 = vmatpush1.bf16.msra.mxu0 0
        %4407 = vmatprep.subr.bf16.mxu0 0
        %4408 = vmatpush1.bf16.msra.mxu0 0
        %4409 = vmatprep.mubr.bf16.mxu0 0
        %4410 = vmatmul.mubr.bf16.gmra.mrb[0].mxu0 %v4303
        %v4411 = vpop.f32.mrb[0].mxu0
        %v4412 = vadd.f32 %v4327, %v4411
        %v4413 = vpop.f32.mrb[0].mxu0
        %v4414 = vpop.f32.mrb[0].mxu0
        %v4415 = vpop.f32.mrb[0].mxu0
        %4416 = vdwg.mxu0
        %v4417 = vmul.f32 %v4412, 0.5
        %v4418 = vmul.f32 %v4412, 0.044715
        %v4419 = vmul.f32 %v4418, %v4412
        %v4420 = vmul.f32 %v4419, %v4412
        %v4421 = vadd.f32 %v4412, %v4420
        %v4422 = vmul.f32 %v4421, 0.7978846
        %v4423 = vtanh.pop %v4422
        %v4424 = vadd.f32 %v4423, 1.0
        %v4425 = vmul.f32 %v4417, %v4424
        %v4426 = vpack.c.bf16 %v4425, %v4425
        %s4427 = scalar_lea.vmem [#allocation14], 64
        %v4428 = vld [vmem:[%s4427] sm:$0xf]
        %v4429 = vld [vmem:[%s4427 + $0x4] sm:$0xf]
        %v4430 = vld [vmem:[%s4427 + $0x8] sm:$0xf]
        %v4431 = vld [vmem:[%s4427 + $0xc] sm:$0xf]
        %v4432 = vld [vmem:[%s4427 + $0x10] sm:$0xf]
        %v4433 = vld [vmem:[%s4427 + $0x14] sm:$0xf]
        %v4434 = vld [vmem:[%s4427 + $0x18] sm:$0xf]
        %v4435 = vld [vmem:[%s4427 + $0x1c] sm:$0xf]
        %v4436 = vld [vmem:[%s4427 + $0x20] sm:$0xf]
        %v4437 = vld [vmem:[%s4427 + $0x24] sm:$0xf]
        %v4438 = vld [vmem:[%s4427 + $0x28] sm:$0xf]
        %v4439 = vld [vmem:[%s4427 + $0x2c] sm:$0xf]
        %v4440 = vld [vmem:[%s4427 + $0x30] sm:$0xf]
        %v4441 = vld [vmem:[%s4427 + $0x34] sm:$0xf]
        %v4442 = vld [vmem:[%s4427 + $0x38] sm:$0xf]
        %v4443 = vld [vmem:[%s4427 + $0x3c] sm:$0xf]
        %s4444 = scalar_lea.vmem %s13, 1
        %v4445 = vld [vmem:[%s4444] sm:$0x1]
        %v4447 = vlaneseq
        %v4448 = vshrl.u32 %v4447, 7
        %v4449 = vsub.s32 0, %v4448
        %v4450 = vrot.slane %v4445, %v4449
        %v4468 = vunpack.c.l.b16 %v4428
        %v4469 = vunpack.c.l.b16 %v4429
        %v4470 = vunpack.c.l.b16 %v4430
        %v4471 = vunpack.c.l.b16 %v4431
        %v4472 = vunpack.c.l.b16 %v4432
        %v4473 = vunpack.c.l.b16 %v4433
        %v4474 = vunpack.c.l.b16 %v4434
        %v4475 = vunpack.c.l.b16 %v4435
        %v4476 = vunpack.c.l.b16 %v4436
        %v4477 = vunpack.c.l.b16 %v4437
        %v4478 = vunpack.c.l.b16 %v4438
        %v4479 = vunpack.c.l.b16 %v4439
        %v4480 = vunpack.c.l.b16 %v4440
        %v4481 = vunpack.c.l.b16 %v4441
        %v4482 = vunpack.c.l.b16 %v4442
        %v4483 = vunpack.c.l.b16 %v4443
        %v4484 = vpack.c.b16 %v4469, %v4468
        %v4485 = vpack.c.b16 %v4471, %v4470
        %v4486 = vpack.c.b16 %v4473, %v4472
        %v4487 = vpack.c.b16 %v4475, %v4474
        %v4488 = vpack.c.b16 %v4477, %v4476
        %v4489 = vpack.c.b16 %v4479, %v4478
        %v4490 = vpack.c.b16 %v4481, %v4480
        %v4491 = vpack.c.b16 %v4483, %v4482
        %4500 = vmatprep.subr.bf16.mxu0 0
        %4501 = vmatpush1.bf16.msra.mxu0 %v4484
        %4502 = vmatprep.subr.bf16.mxu0 0
        %4503 = vmatpush1.bf16.msra.mxu0 %v4485
        %4504 = vmatprep.subr.bf16.mxu0 0
        %4505 = vmatpush1.bf16.msra.mxu0 %v4486
        %4506 = vmatprep.subr.bf16.mxu0 0
        %4507 = vmatpush1.bf16.msra.mxu0 %v4487
        %4508 = vmatprep.subr.bf16.mxu0 0
        %4509 = vmatpush1.bf16.msra.mxu0 %v4488
        %4510 = vmatprep.subr.bf16.mxu0 0
        %4511 = vmatpush1.bf16.msra.mxu0 %v4489
        %4512 = vmatprep.subr.bf16.mxu0 0
        %4513 = vmatpush1.bf16.msra.mxu0 %v4490
        %4514 = vmatprep.subr.bf16.mxu0 0
        %4515 = vmatpush1.bf16.msra.mxu0 %v4491
        %4516 = vmatprep.subr.bf16.mxu0 0
        %4517 = vmatpush1.bf16.msra.mxu0 0
        %4518 = vmatprep.subr.bf16.mxu0 0
        %4519 = vmatpush1.bf16.msra.mxu0 0
        %4520 = vmatprep.subr.bf16.mxu0 0
        %4521 = vmatpush1.bf16.msra.mxu0 0
        %4522 = vmatprep.subr.bf16.mxu0 0
        %4523 = vmatpush1.bf16.msra.mxu0 0
        %4524 = vmatprep.subr.bf16.mxu0 0
        %4525 = vmatpush1.bf16.msra.mxu0 0
        %4526 = vmatprep.subr.bf16.mxu0 0
        %4527 = vmatpush1.bf16.msra.mxu0 0
        %4528 = vmatprep.subr.bf16.mxu0 0
        %4529 = vmatpush1.bf16.msra.mxu0 0
        %4530 = vmatprep.subr.bf16.mxu0 0
        %4531 = vmatpush1.bf16.msra.mxu0 0
        %4532 = vmatprep.mubr.bf16.mxu0 0
        %4533 = vmatmul.mubr.bf16.gmra.mrb[0].mxu0 %v4426
        %v4534 = vpop.f32.mrb[0].mxu0
        %v4535 = vadd.f32 %v4450, %v4534
        %v4536 = vpop.f32.mrb[0].mxu0
        %v4537 = vpop.f32.mrb[0].mxu0
        %v4538 = vpop.f32.mrb[0].mxu0
        %4539 = vdwg.mxu0
        %v4540 = vadd.f32 %v4302, %v4535
        %s4541 = scalar_lea.vmem %s14, 1
        %v4542 = vld [vmem:[%s4541] sm:$0x1]
        %s4543 = scalar_lea.vmem %s15, 1
        %v4544 = vld [vmem:[%s4543] sm:$0x1]
        %4545 = vadd.xlane.f32.xlu0 %v4540
        %v4546 = vpop.xlane.xlu0 %4545
        %v4547 = vmul.f32 %v4546, 0.03125
        %v4548 = vsub.f32 %v4540, %v4547
        %v4549 = vsel %vm667, %v4548, 0.0
        %v4550 = vmul.f32 %v4549, %v4549
        %4551 = vadd.xlane.f32.xlu0 %v4550
        %v4552 = vpop.xlane.xlu0 %4551
        %v4553 = vmul.f32 %v4552, 0.03125
        %v4554 = vadd.f32 %v4553, 1e-12
        %v4555 = vrsqrt.pop %v4554
        %v4556 = vmul.f32 %v4549, %v4555
        %v4558 = vlaneseq
        %v4559 = vshrl.u32 %v4558, 7
        %v4560 = vsub.s32 0, %v4559
        %v4561 = vrot.slane %v4542, %v4560
        %v4563 = vmul.f32 %v4556, %v4561
        %v4565 = vlaneseq
        %v4566 = vshrl.u32 %v4565, 7
        %v4567 = vsub.s32 0, %v4566
        %v4568 = vrot.slane %v4544, %v4567
        %v4570 = vadd.f32 %v4563, %v4568
        %4571 = vst [vmem:[%s654] sm:$0x1] %v4570
        %s4572 = sand.u32 %s393, 1
        %s4573 = scalar_lea.sflag [#allocation4], %s4572
        %s4574 = sand.u32 %s393, 1
        %s4575 = scalar_lea.vmem [#allocation16], %s4574
        // Predicated region
        $region117: #{tpu_custom_call.1} parent=83 // pred_check
          %p4576 = pneg %p403
        $region118: #{tpu_custom_call.1} parent=83 // pred_check_branch
          %4578 = sbr.rel (%p4576) target = $region120
        $region119: #{tpu_custom_call.1} parent=83 // pred_region
          %s4580 = ssub.s32 16, 16
          %4581 = vsyncadd %s4573, %s4580
          %s4582 = smul.addr %s39, 16
          %s4583 = scalar_lea.hbm %s16, %s4582
          %s4585 = sshll.u32 %s4575, 4
          %s4586 = int_to_ptr.vmem [resolvable:$true] %s4585
          %4588 = dma.vmem_to_hbm [thread:$0]  %s4586, 16, %s4583, %s4573
        $region120: #{tpu_custom_call.1} parent=83 // pred_fallthru
          _
      $region84: #{tpu_custom_call.1} parent=5 // pred_fallthru
        _
      %p4589 = scmp.le.s32.totalorder 2, %s34
      // Predicated region
      $region121: #{tpu_custom_call.1} parent=5 // pred_check
        %p4590 = pneg %p4589
      $region122: #{tpu_custom_call.1} parent=5 // pred_check_branch
        %4592 = sbr.rel (%p4590) target = $region124
      $region123: #{tpu_custom_call.1} parent=5 // pred_region
        %s4593 = ssub.s32 %s34, 2
        // Predicated region
        $region125: #{tpu_custom_call.1} parent=123 // pred_check
          %p4594 = pneg %p409
        $region126: #{tpu_custom_call.1} parent=123 // pred_check_branch
          %4596 = sbr.rel (%p4594) target = $region128
        $region127: #{tpu_custom_call.1} parent=123 // pred_region
          %s4597 = sand.u32 %s394, 1
          %s4598 = scalar_lea.sflag [#allocation4], %s4597
          %s4599 = sand.u32 %s394, 1
          %s4600 = scalar_lea.vmem [#allocation16], %s4599
          %4601 = dma.done %s4598, 16
        $region128: #{tpu_custom_call.1} parent=123 // pred_fallthru
          _
      $region124: #{tpu_custom_call.1} parent=5 // pred_fallthru
        _
    $region6: #{tpu_custom_call.1} parent=1 // loop_footer
      %s38 = sadd.s32 1, %s34
    $region7: #{tpu_custom_call.1} parent=1 // loop_footer_branch
      %33 = sbr.rel target = $region3
    $region8: #{tpu_custom_call.1} parent=1 // loop_exit
      _
    %4602 = vsyncpa [#allocation3], 1
    %s4603 = scalar_lea.sflag [#allocation3], 1
    %4604 = vsyncpa %s4603, 1
    %4605 = vsyncpa [#allocation6], 1
    %s4606 = scalar_lea.sflag [#allocation6], 1
    %4607 = vsyncpa %s4606, 1
    %4608 = vsyncpa [#allocation9], 1
    %4609 = vsyncpa [#allocation12], 1
    %4610 = vsyncpa [#allocation15], 1
    %4611 = vsyncpa [#allocation4], 1
    %s4612 = scalar_lea.sflag [#allocation4], 1
    %4613 = vsyncpa %s4612, 1

</llo_original>
